<compile_context>
chip_gen: v5e
topology: v5e:2x2
jax: 0.10.0
libtpu: 0.0.40
codegen_flags: <defaults>
</compile_context>

<pallas_src>
import functools

import jax
import jax.numpy as jnp
from jax import lax
from jax.experimental import pallas as pl
from jax.experimental.pallas import tpu as pltpu


def _round_up(x, m):
    return ((x + m - 1) // m) * m


def gru_kernel(x_ref,                         # (T*Bp, Ip) time-major, batch-flattened input
               wih0_ref, bih0_ref,            # (Ip, 3*Hp), (1, 3*Hp)
               whh0_ref, bhh0_ref,            # (Hp, 3*Hp), (1, 3*Hp)
               wih1_ref, whh1_ref,            # (Hp, 3*Hp), (Hp, 3*Hp)
               bih1_ref, bhh1_ref,            # (1, 3*Hp),  (1, 3*Hp)
               fcw_ref, fcb_ref,              # (Hp, Op),   (1, Op)
               out_ref,                       # (Bp, Op)
               *, T, Bp):
    G = wih0_ref.shape[1]
    Hp = whh0_ref.shape[0]

    # Layer-0 input projection for all timesteps at once (independent of the
    # recurrence): a single MXU matmul instead of T tiny ones.
    gi0_all = (jnp.dot(x_ref[...], wih0_ref[...], preferred_element_type=jnp.float32)
               + jnp.broadcast_to(bih0_ref[...], (T * Bp, G)))

    # Hoist bias broadcasts out of the unrolled time loop.
    bhh0 = jnp.broadcast_to(bhh0_ref[...], (Bp, G))
    bih1 = jnp.broadcast_to(bih1_ref[...], (Bp, G))
    bhh1 = jnp.broadcast_to(bhh1_ref[...], (Bp, G))

    h0 = jnp.zeros((Bp, Hp), jnp.float32)
    h1 = jnp.zeros((Bp, Hp), jnp.float32)

    def gate_update(gi, gh, h_prev):
        # PyTorch GRU cell (gate order r, z, n); all slices are 128-lane aligned.
        #   r  = sigmoid(gi_r + gh_r)
        #   z  = sigmoid(gi_z + gh_z)
        #   n  = tanh  (gi_n + r * gh_n)
        #   h' = (1 - z) * n + z * h
        r = jax.nn.sigmoid(gi[:, 0 * Hp:1 * Hp] + gh[:, 0 * Hp:1 * Hp])
        z = jax.nn.sigmoid(gi[:, 1 * Hp:2 * Hp] + gh[:, 1 * Hp:2 * Hp])
        n = jnp.tanh(gi[:, 2 * Hp:3 * Hp] + r * gh[:, 2 * Hp:3 * Hp])
        return (1.0 - z) * n + z * h_prev

    # T is static and small -> fully unrolled at trace time; only the hidden-state
    # dependent matmuls remain on the serial critical path.
    for t in range(T):
        gi0 = gi0_all[t * Bp:(t + 1) * Bp]                       # static, sublane-aligned
        gh0 = jnp.dot(h0, whh0_ref[...], preferred_element_type=jnp.float32) + bhh0
        h0 = gate_update(gi0, gh0, h0)

        gi1 = jnp.dot(h0, wih1_ref[...], preferred_element_type=jnp.float32) + bih1
        gh1 = jnp.dot(h1, whh1_ref[...], preferred_element_type=jnp.float32) + bhh1
        h1 = gate_update(gi1, gh1, h1)

    # fc(out[:, -1, :]) : single lane-dense (Bp, Op) store.
    out_ref[...] = (jnp.dot(h1, fcw_ref[...], preferred_element_type=jnp.float32)
                    + jnp.broadcast_to(fcb_ref[...], out_ref.shape)).astype(out_ref.dtype)


def prepare_params(params):
    """One-time padding / gate-slab re-layout of the weights (off the per-call path)."""
    I = params["wih0"].shape[0]
    H = params["whh0"].shape[0]
    O = params["fcw"].shape[1]
    Ip = _round_up(I, 128)
    Hp = _round_up(H, 128)    # lane granule -> gate slices stay lane-aligned
    Op = _round_up(O, 128)    # lane-dense output store
    G = 3 * Hp

    def pad_gate_mat(w, in_pad):
        # (In, 3H) -> (in_pad, 3*Hp) with each (r, z, n) slab zero-padded to Hp lanes.
        In = w.shape[0]
        w3 = w.reshape(In, 3, H)
        w3 = jnp.pad(w3, ((0, in_pad - In), (0, 0), (0, Hp - H)))
        return w3.reshape(in_pad, G)

    def pad_gate_bias(b):
        b3 = b.reshape(1, 3, H)
        return jnp.pad(b3, ((0, 0), (0, 0), (0, Hp - H))).reshape(1, G)

    return {
        "wih0": pad_gate_mat(params["wih0"], Ip),
        "bih0": pad_gate_bias(params["bih0"]),
        "whh0": pad_gate_mat(params["whh0"], Hp),
        "bhh0": pad_gate_bias(params["bhh0"]),
        "wih1": pad_gate_mat(params["wih1"], Hp),
        "whh1": pad_gate_mat(params["whh1"], Hp),
        "bih1": pad_gate_bias(params["bih1"]),
        "bhh1": pad_gate_bias(params["bhh1"]),
        "fcw": jnp.pad(params["fcw"], ((0, Hp - H), (0, Op - O))),
        "fcb": jnp.pad(params["fcb"], ((0, 0), (0, Op - O))),
    }


@functools.partial(jax.jit, static_argnames=("output_size",))
def gru_model_forward(x, p, *, output_size):
    """x: (B, T, I) float32. p: prepare_params() output. Returns (B, output_size)."""
    B, T, I = x.shape
    Ip, G = p["wih0"].shape
    Hp = p["whh0"].shape[0]
    Op = p["fcw"].shape[1]
    Bp = _round_up(B, 8)      # sublane granule

    # Time-major, batch/feature zero-padded, flattened: (T*Bp, Ip).
    xt = jnp.transpose(x.astype(jnp.float32), (1, 0, 2))          # (T, B, I)
    xt = jnp.pad(xt, ((0, 0), (0, Bp - B), (0, Ip - I)))          # (T, Bp, Ip)
    x_flat = xt.reshape(T * Bp, Ip)

    ins = (x_flat,
           p["wih0"], p["bih0"], p["whh0"], p["bhh0"],
           p["wih1"], p["whh1"], p["bih1"], p["bhh1"],
           p["fcw"], p["fcb"])

    def full_spec(a):
        nd = a.ndim
        return pl.BlockSpec(a.shape, lambda i, _nd=nd: (0,) * _nd)

    grid_spec = pltpu.PrefetchScalarGridSpec(
        num_scalar_prefetch=0,
        grid=(1,),                               # single invocation; time loop in-kernel
        in_specs=[full_spec(a) for a in ins],
        out_specs=pl.BlockSpec((Bp, Op), lambda i: (0, 0)),
    )

    out_padded = pl.pallas_call(
        functools.partial(gru_kernel, T=T, Bp=Bp),
        out_shape=jax.ShapeDtypeStruct((Bp, Op), jnp.float32),
        grid_spec=grid_spec,
        compiler_params=pltpu.CompilerParams(
            dimension_semantics=("arbitrary",)),
    )(*ins)

    return out_padded[:B, :output_size]


def init_params(key, input_size=1, hidden_size=50, output_size=1):
    """Deterministic init mirroring PyTorch's U(-1/sqrt(H), 1/sqrt(H)) default."""
    H, I, O = hidden_size, input_size, output_size
    bound = 1.0 / jnp.sqrt(jnp.float32(H))
    ks = jax.random.split(key, 10)
    u = lambda k, shape: jax.random.uniform(k, shape, jnp.float32, -bound, bound)
    return {
        # layer 0 (input -> hidden), stored pre-transposed for x @ W
        "wih0": u(ks[0], (I, 3 * H)),
        "whh0": u(ks[1], (H, 3 * H)),
        "bih0": u(ks[2], (1, 3 * H)),
        "bhh0": u(ks[3], (1, 3 * H)),
        # layer 1 (hidden -> hidden)
        "wih1": u(ks[4], (H, 3 * H)),
        "whh1": u(ks[5], (H, 3 * H)),
        "bih1": u(ks[6], (1, 3 * H)),
        "bhh1": u(ks[7], (1, 3 * H)),
        # fc (hidden -> output), pre-transposed to (H, O)
        "fcw": u(ks[8], (H, O)),
        "fcb": u(ks[9], (1, O)),
    }


def reference_forward(x, params):
    """Pure-JAX reference (same math as torch.nn.GRU(num_layers=2) + Linear)."""
    H = params["whh0"].shape[0]

    def cell(x_in, h_prev, wih, whh, bih, bhh):
        gi = x_in @ wih + bih
        gh = h_prev @ whh + bhh
        r = jax.nn.sigmoid(gi[:, :H] + gh[:, :H])
        z = jax.nn.sigmoid(gi[:, H:2 * H] + gh[:, H:2 * H])
        n = jnp.tanh(gi[:, 2 * H:] + r * gh[:, 2 * H:])
        return (1.0 - z) * n + z * h_prev

    B = x.shape[0]
    h0 = jnp.zeros((B, H), jnp.float32)
    h1 = jnp.zeros((B, H), jnp.float32)

    def step(carry, x_t):
        h0, h1 = carry
        h0 = cell(x_t, h0, params["wih0"], params["whh0"], params["bih0"], params["bhh0"])
        h1 = cell(h0, h1, params["wih1"], params["whh1"], params["bih1"], params["bhh1"])
        return (h0, h1), None

    (h0, h1), _ = lax.scan(step, (h0, h1), jnp.swapaxes(x, 0, 1))
    return h1 @ params["fcw"] + params["fcb"]


if __name__ == "__main__":
    B, T, I, H, O = 2, 8, 1, 50, 1   # input_size=1, hidden_size=50, output_size=1 per module

    key = jax.random.PRNGKey(0)
    kx, kp = jax.random.split(key)
    x = jax.random.normal(kx, (B, T, I), jnp.float32)
    params = init_params(kp, input_size=I, hidden_size=H, output_size=O)

    prepped = jax.tree_util.tree_map(jax.block_until_ready, prepare_params(params))

    out = jax.block_until_ready(gru_model_forward(x, prepped, output_size=O))

    ref = reference_forward(x, params)
    assert out.shape == (B, O), out.shape
    assert jnp.allclose(out, ref, atol=1e-5, rtol=1e-5), (out, ref)

    print("KERNEL_OK")
</pallas_src>

<mosaic_0001>
module attributes {stable_mosaic.version = 11 : i64} {
  func.func @gru_kernel(%arg0: i32, %arg1: memref<64x128xf32, #tpu.memory_space<vmem>>, %arg2: memref<128x384xf32, #tpu.memory_space<vmem>>, %arg3: memref<1x384xf32, #tpu.memory_space<vmem>>, %arg4: memref<128x384xf32, #tpu.memory_space<vmem>>, %arg5: memref<1x384xf32, #tpu.memory_space<vmem>>, %arg6: memref<128x384xf32, #tpu.memory_space<vmem>>, %arg7: memref<128x384xf32, #tpu.memory_space<vmem>>, %arg8: memref<1x384xf32, #tpu.memory_space<vmem>>, %arg9: memref<1x384xf32, #tpu.memory_space<vmem>>, %arg10: memref<128x128xf32, #tpu.memory_space<vmem>>, %arg11: memref<1x128xf32, #tpu.memory_space<vmem>>, %arg12: memref<8x128xf32, #tpu.memory_space<vmem>>) attributes {dimension_semantics = [#tpu.dimension_semantics<arbitrary>], iteration_bounds = array<i64: 1>, scalar_prefetch = 0 : i64, scratch_operands = 0 : i64, tpu.core_type = #tpu.core_type<tc>, window_params = [{pipeline_mode = #tpu.pipeline_mode<synchronous>, transform_indices = @transform_0, window_bounds = array<i64: 64, 128>}, {pipeline_mode = #tpu.pipeline_mode<synchronous>, transform_indices = @transform_1, window_bounds = array<i64: 128, 384>}, {pipeline_mode = #tpu.pipeline_mode<synchronous>, transform_indices = @transform_2, window_bounds = array<i64: 1, 384>}, {pipeline_mode = #tpu.pipeline_mode<synchronous>, transform_indices = @transform_3, window_bounds = array<i64: 128, 384>}, {pipeline_mode = #tpu.pipeline_mode<synchronous>, transform_indices = @transform_4, window_bounds = array<i64: 1, 384>}, {pipeline_mode = #tpu.pipeline_mode<synchronous>, transform_indices = @transform_5, window_bounds = array<i64: 128, 384>}, {pipeline_mode = #tpu.pipeline_mode<synchronous>, transform_indices = @transform_6, window_bounds = array<i64: 128, 384>}, {pipeline_mode = #tpu.pipeline_mode<synchronous>, transform_indices = @transform_7, window_bounds = array<i64: 1, 384>}, {pipeline_mode = #tpu.pipeline_mode<synchronous>, transform_indices = @transform_8, window_bounds = array<i64: 1, 384>}, {pipeline_mode = #tpu.pipeline_mode<synchronous>, transform_indices = @transform_9, window_bounds = array<i64: 128, 128>}, {pipeline_mode = #tpu.pipeline_mode<synchronous>, transform_indices = @transform_10, window_bounds = array<i64: 1, 128>}, {pipeline_mode = #tpu.pipeline_mode<synchronous>, transform_indices = @transform_11, window_bounds = array<i64: 8, 128>}]} {
    %c0 = arith.constant 0 : index
    %c0_0 = arith.constant 0 : index
    %0 = vector.load %arg1[%c0, %c0_0] : memref<64x128xf32, #tpu.memory_space<vmem>>, vector<64x128xf32>
    %c0_1 = arith.constant 0 : index
    %c0_2 = arith.constant 0 : index
    %1 = vector.load %arg2[%c0_1, %c0_2] : memref<128x384xf32, #tpu.memory_space<vmem>>, vector<128x384xf32>
    %cst = arith.constant dense<0.000000e+00> : vector<64x384xf32>
    %2 = tpu.matmul %0, %1, %cst {dimension_numbers = #tpu.dot_dimension_numbers<[1], [0], [0], [1], [0, 0, 1, 1], [], []>} : vector<64x128xf32>, vector<128x384xf32>, vector<64x384xf32> -> vector<64x384xf32>
    %c0_3 = arith.constant 0 : index
    %c0_4 = arith.constant 0 : index
    %3 = vector.load %arg3[%c0_3, %c0_4] : memref<1x384xf32, #tpu.memory_space<vmem>>, vector<1x384xf32>
    %4 = vector.shape_cast %3 : vector<1x384xf32> to vector<1x384xf32>
    %5 = vector.broadcast %4 : vector<1x384xf32> to vector<64x384xf32>
    %6 = arith.addf %2, %5 : vector<64x384xf32>
    %c0_5 = arith.constant 0 : index
    %c0_6 = arith.constant 0 : index
    %7 = vector.load %arg5[%c0_5, %c0_6] : memref<1x384xf32, #tpu.memory_space<vmem>>, vector<1x384xf32>
    %8 = vector.shape_cast %7 : vector<1x384xf32> to vector<1x384xf32>
    %9 = vector.broadcast %8 : vector<1x384xf32> to vector<8x384xf32>
    %c0_7 = arith.constant 0 : index
    %c0_8 = arith.constant 0 : index
    %10 = vector.load %arg8[%c0_7, %c0_8] : memref<1x384xf32, #tpu.memory_space<vmem>>, vector<1x384xf32>
    %11 = vector.shape_cast %10 : vector<1x384xf32> to vector<1x384xf32>
    %12 = vector.broadcast %11 : vector<1x384xf32> to vector<8x384xf32>
    %c0_9 = arith.constant 0 : index
    %c0_10 = arith.constant 0 : index
    %13 = vector.load %arg9[%c0_9, %c0_10] : memref<1x384xf32, #tpu.memory_space<vmem>>, vector<1x384xf32>
    %14 = vector.shape_cast %13 : vector<1x384xf32> to vector<1x384xf32>
    %15 = vector.broadcast %14 : vector<1x384xf32> to vector<8x384xf32>
    %cst_11 = arith.constant 0.000000e+00 : f32
    %16 = vector.broadcast %cst_11 : f32 to vector<8x128xf32>
    %cst_12 = arith.constant 0.000000e+00 : f32
    %17 = vector.broadcast %cst_12 : f32 to vector<8x128xf32>
    %18 = vector.extract_strided_slice %6 {offsets = [0, 0], sizes = [8, 384], strides = [1, 1]} : vector<64x384xf32> to vector<8x384xf32>
    %c0_13 = arith.constant 0 : index
    %c0_14 = arith.constant 0 : index
    %19 = vector.load %arg4[%c0_13, %c0_14] : memref<128x384xf32, #tpu.memory_space<vmem>>, vector<128x384xf32>
    %cst_15 = arith.constant dense<0.000000e+00> : vector<8x384xf32>
    %20 = tpu.matmul %16, %19, %cst_15 {dimension_numbers = #tpu.dot_dimension_numbers<[1], [0], [0], [1], [0, 0, 1, 1], [], []>} : vector<8x128xf32>, vector<128x384xf32>, vector<8x384xf32> -> vector<8x384xf32>
    %21 = arith.addf %20, %9 : vector<8x384xf32>
    %22 = vector.extract_strided_slice %18 {offsets = [0, 0], sizes = [8, 128], strides = [1, 1]} : vector<8x384xf32> to vector<8x128xf32>
    %23 = vector.extract_strided_slice %21 {offsets = [0, 0], sizes = [8, 128], strides = [1, 1]} : vector<8x384xf32> to vector<8x128xf32>
    %24 = arith.addf %22, %23 : vector<8x128xf32>
    %25 = arith.negf %24 : vector<8x128xf32>
    %26 = math.exp %25 : vector<8x128xf32>
    %cst_16 = arith.constant 1.000000e+00 : f32
    %27 = vector.broadcast %cst_16 : f32 to vector<8x128xf32>
    %28 = arith.addf %27, %26 : vector<8x128xf32>
    %29 = arith.divf %27, %28 : vector<8x128xf32>
    %30 = vector.extract_strided_slice %18 {offsets = [0, 128], sizes = [8, 128], strides = [1, 1]} : vector<8x384xf32> to vector<8x128xf32>
    %31 = vector.extract_strided_slice %21 {offsets = [0, 128], sizes = [8, 128], strides = [1, 1]} : vector<8x384xf32> to vector<8x128xf32>
    %32 = arith.addf %30, %31 : vector<8x128xf32>
    %33 = arith.negf %32 : vector<8x128xf32>
    %34 = math.exp %33 : vector<8x128xf32>
    %cst_17 = arith.constant 1.000000e+00 : f32
    %35 = vector.broadcast %cst_17 : f32 to vector<8x128xf32>
    %36 = arith.addf %35, %34 : vector<8x128xf32>
    %37 = arith.divf %35, %36 : vector<8x128xf32>
    %38 = vector.extract_strided_slice %18 {offsets = [0, 256], sizes = [8, 128], strides = [1, 1]} : vector<8x384xf32> to vector<8x128xf32>
    %39 = vector.extract_strided_slice %21 {offsets = [0, 256], sizes = [8, 128], strides = [1, 1]} : vector<8x384xf32> to vector<8x128xf32>
    %40 = arith.mulf %29, %39 : vector<8x128xf32>
    %41 = arith.addf %38, %40 : vector<8x128xf32>
    %42 = math.tanh %41 : vector<8x128xf32>
    %cst_18 = arith.constant 1.000000e+00 : f32
    %43 = vector.broadcast %cst_18 : f32 to vector<8x128xf32>
    %44 = arith.subf %43, %37 : vector<8x128xf32>
    %45 = arith.mulf %44, %42 : vector<8x128xf32>
    %46 = arith.mulf %37, %16 : vector<8x128xf32>
    %47 = arith.addf %45, %46 : vector<8x128xf32>
    %c0_19 = arith.constant 0 : index
    %c0_20 = arith.constant 0 : index
    %48 = vector.load %arg6[%c0_19, %c0_20] : memref<128x384xf32, #tpu.memory_space<vmem>>, vector<128x384xf32>
    %cst_21 = arith.constant dense<0.000000e+00> : vector<8x384xf32>
    %49 = tpu.matmul %47, %48, %cst_21 {dimension_numbers = #tpu.dot_dimension_numbers<[1], [0], [0], [1], [0, 0, 1, 1], [], []>} : vector<8x128xf32>, vector<128x384xf32>, vector<8x384xf32> -> vector<8x384xf32>
    %50 = arith.addf %49, %12 : vector<8x384xf32>
    %c0_22 = arith.constant 0 : index
    %c0_23 = arith.constant 0 : index
    %51 = vector.load %arg7[%c0_22, %c0_23] : memref<128x384xf32, #tpu.memory_space<vmem>>, vector<128x384xf32>
    %cst_24 = arith.constant dense<0.000000e+00> : vector<8x384xf32>
    %52 = tpu.matmul %17, %51, %cst_24 {dimension_numbers = #tpu.dot_dimension_numbers<[1], [0], [0], [1], [0, 0, 1, 1], [], []>} : vector<8x128xf32>, vector<128x384xf32>, vector<8x384xf32> -> vector<8x384xf32>
    %53 = arith.addf %52, %15 : vector<8x384xf32>
    %54 = vector.extract_strided_slice %50 {offsets = [0, 0], sizes = [8, 128], strides = [1, 1]} : vector<8x384xf32> to vector<8x128xf32>
    %55 = vector.extract_strided_slice %53 {offsets = [0, 0], sizes = [8, 128], strides = [1, 1]} : vector<8x384xf32> to vector<8x128xf32>
    %56 = arith.addf %54, %55 : vector<8x128xf32>
    %57 = arith.negf %56 : vector<8x128xf32>
    %58 = math.exp %57 : vector<8x128xf32>
    %cst_25 = arith.constant 1.000000e+00 : f32
    %59 = vector.broadcast %cst_25 : f32 to vector<8x128xf32>
    %60 = arith.addf %59, %58 : vector<8x128xf32>
    %61 = arith.divf %59, %60 : vector<8x128xf32>
    %62 = vector.extract_strided_slice %50 {offsets = [0, 128], sizes = [8, 128], strides = [1, 1]} : vector<8x384xf32> to vector<8x128xf32>
    %63 = vector.extract_strided_slice %53 {offsets = [0, 128], sizes = [8, 128], strides = [1, 1]} : vector<8x384xf32> to vector<8x128xf32>
    %64 = arith.addf %62, %63 : vector<8x128xf32>
    %65 = arith.negf %64 : vector<8x128xf32>
    %66 = math.exp %65 : vector<8x128xf32>
    %cst_26 = arith.constant 1.000000e+00 : f32
    %67 = vector.broadcast %cst_26 : f32 to vector<8x128xf32>
    %68 = arith.addf %67, %66 : vector<8x128xf32>
    %69 = arith.divf %67, %68 : vector<8x128xf32>
    %70 = vector.extract_strided_slice %50 {offsets = [0, 256], sizes = [8, 128], strides = [1, 1]} : vector<8x384xf32> to vector<8x128xf32>
    %71 = vector.extract_strided_slice %53 {offsets = [0, 256], sizes = [8, 128], strides = [1, 1]} : vector<8x384xf32> to vector<8x128xf32>
    %72 = arith.mulf %61, %71 : vector<8x128xf32>
    %73 = arith.addf %70, %72 : vector<8x128xf32>
    %74 = math.tanh %73 : vector<8x128xf32>
    %cst_27 = arith.constant 1.000000e+00 : f32
    %75 = vector.broadcast %cst_27 : f32 to vector<8x128xf32>
    %76 = arith.subf %75, %69 : vector<8x128xf32>
    %77 = arith.mulf %76, %74 : vector<8x128xf32>
    %78 = arith.mulf %69, %17 : vector<8x128xf32>
    %79 = arith.addf %77, %78 : vector<8x128xf32>
    %80 = vector.extract_strided_slice %6 {offsets = [8, 0], sizes = [8, 384], strides = [1, 1]} : vector<64x384xf32> to vector<8x384xf32>
    %c0_28 = arith.constant 0 : index
    %c0_29 = arith.constant 0 : index
    %81 = vector.load %arg4[%c0_28, %c0_29] : memref<128x384xf32, #tpu.memory_space<vmem>>, vector<128x384xf32>
    %cst_30 = arith.constant dense<0.000000e+00> : vector<8x384xf32>
    %82 = tpu.matmul %47, %81, %cst_30 {dimension_numbers = #tpu.dot_dimension_numbers<[1], [0], [0], [1], [0, 0, 1, 1], [], []>} : vector<8x128xf32>, vector<128x384xf32>, vector<8x384xf32> -> vector<8x384xf32>
    %83 = arith.addf %82, %9 : vector<8x384xf32>
    %84 = vector.extract_strided_slice %80 {offsets = [0, 0], sizes = [8, 128], strides = [1, 1]} : vector<8x384xf32> to vector<8x128xf32>
    %85 = vector.extract_strided_slice %83 {offsets = [0, 0], sizes = [8, 128], strides = [1, 1]} : vector<8x384xf32> to vector<8x128xf32>
    %86 = arith.addf %84, %85 : vector<8x128xf32>
    %87 = arith.negf %86 : vector<8x128xf32>
    %88 = math.exp %87 : vector<8x128xf32>
    %cst_31 = arith.constant 1.000000e+00 : f32
    %89 = vector.broadcast %cst_31 : f32 to vector<8x128xf32>
    %90 = arith.addf %89, %88 : vector<8x128xf32>
    %91 = arith.divf %89, %90 : vector<8x128xf32>
    %92 = vector.extract_strided_slice %80 {offsets = [0, 128], sizes = [8, 128], strides = [1, 1]} : vector<8x384xf32> to vector<8x128xf32>
    %93 = vector.extract_strided_slice %83 {offsets = [0, 128], sizes = [8, 128], strides = [1, 1]} : vector<8x384xf32> to vector<8x128xf32>
    %94 = arith.addf %92, %93 : vector<8x128xf32>
    %95 = arith.negf %94 : vector<8x128xf32>
    %96 = math.exp %95 : vector<8x128xf32>
    %cst_32 = arith.constant 1.000000e+00 : f32
    %97 = vector.broadcast %cst_32 : f32 to vector<8x128xf32>
    %98 = arith.addf %97, %96 : vector<8x128xf32>
    %99 = arith.divf %97, %98 : vector<8x128xf32>
    %100 = vector.extract_strided_slice %80 {offsets = [0, 256], sizes = [8, 128], strides = [1, 1]} : vector<8x384xf32> to vector<8x128xf32>
    %101 = vector.extract_strided_slice %83 {offsets = [0, 256], sizes = [8, 128], strides = [1, 1]} : vector<8x384xf32> to vector<8x128xf32>
    %102 = arith.mulf %91, %101 : vector<8x128xf32>
    %103 = arith.addf %100, %102 : vector<8x128xf32>
    %104 = math.tanh %103 : vector<8x128xf32>
    %cst_33 = arith.constant 1.000000e+00 : f32
    %105 = vector.broadcast %cst_33 : f32 to vector<8x128xf32>
    %106 = arith.subf %105, %99 : vector<8x128xf32>
    %107 = arith.mulf %106, %104 : vector<8x128xf32>
    %108 = arith.mulf %99, %47 : vector<8x128xf32>
    %109 = arith.addf %107, %108 : vector<8x128xf32>
    %c0_34 = arith.constant 0 : index
    %c0_35 = arith.constant 0 : index
    %110 = vector.load %arg6[%c0_34, %c0_35] : memref<128x384xf32, #tpu.memory_space<vmem>>, vector<128x384xf32>
    %cst_36 = arith.constant dense<0.000000e+00> : vector<8x384xf32>
    %111 = tpu.matmul %109, %110, %cst_36 {dimension_numbers = #tpu.dot_dimension_numbers<[1], [0], [0], [1], [0, 0, 1, 1], [], []>} : vector<8x128xf32>, vector<128x384xf32>, vector<8x384xf32> -> vector<8x384xf32>
    %112 = arith.addf %111, %12 : vector<8x384xf32>
    %c0_37 = arith.constant 0 : index
    %c0_38 = arith.constant 0 : index
    %113 = vector.load %arg7[%c0_37, %c0_38] : memref<128x384xf32, #tpu.memory_space<vmem>>, vector<128x384xf32>
    %cst_39 = arith.constant dense<0.000000e+00> : vector<8x384xf32>
    %114 = tpu.matmul %79, %113, %cst_39 {dimension_numbers = #tpu.dot_dimension_numbers<[1], [0], [0], [1], [0, 0, 1, 1], [], []>} : vector<8x128xf32>, vector<128x384xf32>, vector<8x384xf32> -> vector<8x384xf32>
    %115 = arith.addf %114, %15 : vector<8x384xf32>
    %116 = vector.extract_strided_slice %112 {offsets = [0, 0], sizes = [8, 128], strides = [1, 1]} : vector<8x384xf32> to vector<8x128xf32>
    %117 = vector.extract_strided_slice %115 {offsets = [0, 0], sizes = [8, 128], strides = [1, 1]} : vector<8x384xf32> to vector<8x128xf32>
    %118 = arith.addf %116, %117 : vector<8x128xf32>
    %119 = arith.negf %118 : vector<8x128xf32>
    %120 = math.exp %119 : vector<8x128xf32>
    %cst_40 = arith.constant 1.000000e+00 : f32
    %121 = vector.broadcast %cst_40 : f32 to vector<8x128xf32>
    %122 = arith.addf %121, %120 : vector<8x128xf32>
    %123 = arith.divf %121, %122 : vector<8x128xf32>
    %124 = vector.extract_strided_slice %112 {offsets = [0, 128], sizes = [8, 128], strides = [1, 1]} : vector<8x384xf32> to vector<8x128xf32>
    %125 = vector.extract_strided_slice %115 {offsets = [0, 128], sizes = [8, 128], strides = [1, 1]} : vector<8x384xf32> to vector<8x128xf32>
    %126 = arith.addf %124, %125 : vector<8x128xf32>
    %127 = arith.negf %126 : vector<8x128xf32>
    %128 = math.exp %127 : vector<8x128xf32>
    %cst_41 = arith.constant 1.000000e+00 : f32
    %129 = vector.broadcast %cst_41 : f32 to vector<8x128xf32>
    %130 = arith.addf %129, %128 : vector<8x128xf32>
    %131 = arith.divf %129, %130 : vector<8x128xf32>
    %132 = vector.extract_strided_slice %112 {offsets = [0, 256], sizes = [8, 128], strides = [1, 1]} : vector<8x384xf32> to vector<8x128xf32>
    %133 = vector.extract_strided_slice %115 {offsets = [0, 256], sizes = [8, 128], strides = [1, 1]} : vector<8x384xf32> to vector<8x128xf32>
    %134 = arith.mulf %123, %133 : vector<8x128xf32>
    %135 = arith.addf %132, %134 : vector<8x128xf32>
    %136 = math.tanh %135 : vector<8x128xf32>
    %cst_42 = arith.constant 1.000000e+00 : f32
    %137 = vector.broadcast %cst_42 : f32 to vector<8x128xf32>
    %138 = arith.subf %137, %131 : vector<8x128xf32>
    %139 = arith.mulf %138, %136 : vector<8x128xf32>
    %140 = arith.mulf %131, %79 : vector<8x128xf32>
    %141 = arith.addf %139, %140 : vector<8x128xf32>
    %142 = vector.extract_strided_slice %6 {offsets = [16, 0], sizes = [8, 384], strides = [1, 1]} : vector<64x384xf32> to vector<8x384xf32>
    %c0_43 = arith.constant 0 : index
    %c0_44 = arith.constant 0 : index
    %143 = vector.load %arg4[%c0_43, %c0_44] : memref<128x384xf32, #tpu.memory_space<vmem>>, vector<128x384xf32>
    %cst_45 = arith.constant dense<0.000000e+00> : vector<8x384xf32>
    %144 = tpu.matmul %109, %143, %cst_45 {dimension_numbers = #tpu.dot_dimension_numbers<[1], [0], [0], [1], [0, 0, 1, 1], [], []>} : vector<8x128xf32>, vector<128x384xf32>, vector<8x384xf32> -> vector<8x384xf32>
    %145 = arith.addf %144, %9 : vector<8x384xf32>
    %146 = vector.extract_strided_slice %142 {offsets = [0, 0], sizes = [8, 128], strides = [1, 1]} : vector<8x384xf32> to vector<8x128xf32>
    %147 = vector.extract_strided_slice %145 {offsets = [0, 0], sizes = [8, 128], strides = [1, 1]} : vector<8x384xf32> to vector<8x128xf32>
    %148 = arith.addf %146, %147 : vector<8x128xf32>
    %149 = arith.negf %148 : vector<8x128xf32>
    %150 = math.exp %149 : vector<8x128xf32>
    %cst_46 = arith.constant 1.000000e+00 : f32
    %151 = vector.broadcast %cst_46 : f32 to vector<8x128xf32>
    %152 = arith.addf %151, %150 : vector<8x128xf32>
    %153 = arith.divf %151, %152 : vector<8x128xf32>
    %154 = vector.extract_strided_slice %142 {offsets = [0, 128], sizes = [8, 128], strides = [1, 1]} : vector<8x384xf32> to vector<8x128xf32>
    %155 = vector.extract_strided_slice %145 {offsets = [0, 128], sizes = [8, 128], strides = [1, 1]} : vector<8x384xf32> to vector<8x128xf32>
    %156 = arith.addf %154, %155 : vector<8x128xf32>
    %157 = arith.negf %156 : vector<8x128xf32>
    %158 = math.exp %157 : vector<8x128xf32>
    %cst_47 = arith.constant 1.000000e+00 : f32
    %159 = vector.broadcast %cst_47 : f32 to vector<8x128xf32>
    %160 = arith.addf %159, %158 : vector<8x128xf32>
    %161 = arith.divf %159, %160 : vector<8x128xf32>
    %162 = vector.extract_strided_slice %142 {offsets = [0, 256], sizes = [8, 128], strides = [1, 1]} : vector<8x384xf32> to vector<8x128xf32>
    %163 = vector.extract_strided_slice %145 {offsets = [0, 256], sizes = [8, 128], strides = [1, 1]} : vector<8x384xf32> to vector<8x128xf32>
    %164 = arith.mulf %153, %163 : vector<8x128xf32>
    %165 = arith.addf %162, %164 : vector<8x128xf32>
    %166 = math.tanh %165 : vector<8x128xf32>
    %cst_48 = arith.constant 1.000000e+00 : f32
    %167 = vector.broadcast %cst_48 : f32 to vector<8x128xf32>
    %168 = arith.subf %167, %161 : vector<8x128xf32>
    %169 = arith.mulf %168, %166 : vector<8x128xf32>
    %170 = arith.mulf %161, %109 : vector<8x128xf32>
    %171 = arith.addf %169, %170 : vector<8x128xf32>
    %c0_49 = arith.constant 0 : index
    %c0_50 = arith.constant 0 : index
    %172 = vector.load %arg6[%c0_49, %c0_50] : memref<128x384xf32, #tpu.memory_space<vmem>>, vector<128x384xf32>
    %cst_51 = arith.constant dense<0.000000e+00> : vector<8x384xf32>
    %173 = tpu.matmul %171, %172, %cst_51 {dimension_numbers = #tpu.dot_dimension_numbers<[1], [0], [0], [1], [0, 0, 1, 1], [], []>} : vector<8x128xf32>, vector<128x384xf32>, vector<8x384xf32> -> vector<8x384xf32>
    %174 = arith.addf %173, %12 : vector<8x384xf32>
    %c0_52 = arith.constant 0 : index
    %c0_53 = arith.constant 0 : index
    %175 = vector.load %arg7[%c0_52, %c0_53] : memref<128x384xf32, #tpu.memory_space<vmem>>, vector<128x384xf32>
    %cst_54 = arith.constant dense<0.000000e+00> : vector<8x384xf32>
    %176 = tpu.matmul %141, %175, %cst_54 {dimension_numbers = #tpu.dot_dimension_numbers<[1], [0], [0], [1], [0, 0, 1, 1], [], []>} : vector<8x128xf32>, vector<128x384xf32>, vector<8x384xf32> -> vector<8x384xf32>
    %177 = arith.addf %176, %15 : vector<8x384xf32>
    %178 = vector.extract_strided_slice %174 {offsets = [0, 0], sizes = [8, 128], strides = [1, 1]} : vector<8x384xf32> to vector<8x128xf32>
    %179 = vector.extract_strided_slice %177 {offsets = [0, 0], sizes = [8, 128], strides = [1, 1]} : vector<8x384xf32> to vector<8x128xf32>
    %180 = arith.addf %178, %179 : vector<8x128xf32>
    %181 = arith.negf %180 : vector<8x128xf32>
    %182 = math.exp %181 : vector<8x128xf32>
    %cst_55 = arith.constant 1.000000e+00 : f32
    %183 = vector.broadcast %cst_55 : f32 to vector<8x128xf32>
    %184 = arith.addf %183, %182 : vector<8x128xf32>
    %185 = arith.divf %183, %184 : vector<8x128xf32>
    %186 = vector.extract_strided_slice %174 {offsets = [0, 128], sizes = [8, 128], strides = [1, 1]} : vector<8x384xf32> to vector<8x128xf32>
    %187 = vector.extract_strided_slice %177 {offsets = [0, 128], sizes = [8, 128], strides = [1, 1]} : vector<8x384xf32> to vector<8x128xf32>
    %188 = arith.addf %186, %187 : vector<8x128xf32>
    %189 = arith.negf %188 : vector<8x128xf32>
    %190 = math.exp %189 : vector<8x128xf32>
    %cst_56 = arith.constant 1.000000e+00 : f32
    %191 = vector.broadcast %cst_56 : f32 to vector<8x128xf32>
    %192 = arith.addf %191, %190 : vector<8x128xf32>
    %193 = arith.divf %191, %192 : vector<8x128xf32>
    %194 = vector.extract_strided_slice %174 {offsets = [0, 256], sizes = [8, 128], strides = [1, 1]} : vector<8x384xf32> to vector<8x128xf32>
    %195 = vector.extract_strided_slice %177 {offsets = [0, 256], sizes = [8, 128], strides = [1, 1]} : vector<8x384xf32> to vector<8x128xf32>
    %196 = arith.mulf %185, %195 : vector<8x128xf32>
    %197 = arith.addf %194, %196 : vector<8x128xf32>
    %198 = math.tanh %197 : vector<8x128xf32>
    %cst_57 = arith.constant 1.000000e+00 : f32
    %199 = vector.broadcast %cst_57 : f32 to vector<8x128xf32>
    %200 = arith.subf %199, %193 : vector<8x128xf32>
    %201 = arith.mulf %200, %198 : vector<8x128xf32>
    %202 = arith.mulf %193, %141 : vector<8x128xf32>
    %203 = arith.addf %201, %202 : vector<8x128xf32>
    %204 = vector.extract_strided_slice %6 {offsets = [24, 0], sizes = [8, 384], strides = [1, 1]} : vector<64x384xf32> to vector<8x384xf32>
    %c0_58 = arith.constant 0 : index
    %c0_59 = arith.constant 0 : index
    %205 = vector.load %arg4[%c0_58, %c0_59] : memref<128x384xf32, #tpu.memory_space<vmem>>, vector<128x384xf32>
    %cst_60 = arith.constant dense<0.000000e+00> : vector<8x384xf32>
    %206 = tpu.matmul %171, %205, %cst_60 {dimension_numbers = #tpu.dot_dimension_numbers<[1], [0], [0], [1], [0, 0, 1, 1], [], []>} : vector<8x128xf32>, vector<128x384xf32>, vector<8x384xf32> -> vector<8x384xf32>
    %207 = arith.addf %206, %9 : vector<8x384xf32>
    %208 = vector.extract_strided_slice %204 {offsets = [0, 0], sizes = [8, 128], strides = [1, 1]} : vector<8x384xf32> to vector<8x128xf32>
    %209 = vector.extract_strided_slice %207 {offsets = [0, 0], sizes = [8, 128], strides = [1, 1]} : vector<8x384xf32> to vector<8x128xf32>
    %210 = arith.addf %208, %209 : vector<8x128xf32>
    %211 = arith.negf %210 : vector<8x128xf32>
    %212 = math.exp %211 : vector<8x128xf32>
    %cst_61 = arith.constant 1.000000e+00 : f32
    %213 = vector.broadcast %cst_61 : f32 to vector<8x128xf32>
    %214 = arith.addf %213, %212 : vector<8x128xf32>
    %215 = arith.divf %213, %214 : vector<8x128xf32>
    %216 = vector.extract_strided_slice %204 {offsets = [0, 128], sizes = [8, 128], strides = [1, 1]} : vector<8x384xf32> to vector<8x128xf32>
    %217 = vector.extract_strided_slice %207 {offsets = [0, 128], sizes = [8, 128], strides = [1, 1]} : vector<8x384xf32> to vector<8x128xf32>
    %218 = arith.addf %216, %217 : vector<8x128xf32>
    %219 = arith.negf %218 : vector<8x128xf32>
    %220 = math.exp %219 : vector<8x128xf32>
    %cst_62 = arith.constant 1.000000e+00 : f32
    %221 = vector.broadcast %cst_62 : f32 to vector<8x128xf32>
    %222 = arith.addf %221, %220 : vector<8x128xf32>
    %223 = arith.divf %221, %222 : vector<8x128xf32>
    %224 = vector.extract_strided_slice %204 {offsets = [0, 256], sizes = [8, 128], strides = [1, 1]} : vector<8x384xf32> to vector<8x128xf32>
    %225 = vector.extract_strided_slice %207 {offsets = [0, 256], sizes = [8, 128], strides = [1, 1]} : vector<8x384xf32> to vector<8x128xf32>
    %226 = arith.mulf %215, %225 : vector<8x128xf32>
    %227 = arith.addf %224, %226 : vector<8x128xf32>
    %228 = math.tanh %227 : vector<8x128xf32>
    %cst_63 = arith.constant 1.000000e+00 : f32
    %229 = vector.broadcast %cst_63 : f32 to vector<8x128xf32>
    %230 = arith.subf %229, %223 : vector<8x128xf32>
    %231 = arith.mulf %230, %228 : vector<8x128xf32>
    %232 = arith.mulf %223, %171 : vector<8x128xf32>
    %233 = arith.addf %231, %232 : vector<8x128xf32>
    %c0_64 = arith.constant 0 : index
    %c0_65 = arith.constant 0 : index
    %234 = vector.load %arg6[%c0_64, %c0_65] : memref<128x384xf32, #tpu.memory_space<vmem>>, vector<128x384xf32>
    %cst_66 = arith.constant dense<0.000000e+00> : vector<8x384xf32>
    %235 = tpu.matmul %233, %234, %cst_66 {dimension_numbers = #tpu.dot_dimension_numbers<[1], [0], [0], [1], [0, 0, 1, 1], [], []>} : vector<8x128xf32>, vector<128x384xf32>, vector<8x384xf32> -> vector<8x384xf32>
    %236 = arith.addf %235, %12 : vector<8x384xf32>
    %c0_67 = arith.constant 0 : index
    %c0_68 = arith.constant 0 : index
    %237 = vector.load %arg7[%c0_67, %c0_68] : memref<128x384xf32, #tpu.memory_space<vmem>>, vector<128x384xf32>
    %cst_69 = arith.constant dense<0.000000e+00> : vector<8x384xf32>
    %238 = tpu.matmul %203, %237, %cst_69 {dimension_numbers = #tpu.dot_dimension_numbers<[1], [0], [0], [1], [0, 0, 1, 1], [], []>} : vector<8x128xf32>, vector<128x384xf32>, vector<8x384xf32> -> vector<8x384xf32>
    %239 = arith.addf %238, %15 : vector<8x384xf32>
    %240 = vector.extract_strided_slice %236 {offsets = [0, 0], sizes = [8, 128], strides = [1, 1]} : vector<8x384xf32> to vector<8x128xf32>
    %241 = vector.extract_strided_slice %239 {offsets = [0, 0], sizes = [8, 128], strides = [1, 1]} : vector<8x384xf32> to vector<8x128xf32>
    %242 = arith.addf %240, %241 : vector<8x128xf32>
    %243 = arith.negf %242 : vector<8x128xf32>
    %244 = math.exp %243 : vector<8x128xf32>
    %cst_70 = arith.constant 1.000000e+00 : f32
    %245 = vector.broadcast %cst_70 : f32 to vector<8x128xf32>
    %246 = arith.addf %245, %244 : vector<8x128xf32>
    %247 = arith.divf %245, %246 : vector<8x128xf32>
    %248 = vector.extract_strided_slice %236 {offsets = [0, 128], sizes = [8, 128], strides = [1, 1]} : vector<8x384xf32> to vector<8x128xf32>
    %249 = vector.extract_strided_slice %239 {offsets = [0, 128], sizes = [8, 128], strides = [1, 1]} : vector<8x384xf32> to vector<8x128xf32>
    %250 = arith.addf %248, %249 : vector<8x128xf32>
    %251 = arith.negf %250 : vector<8x128xf32>
    %252 = math.exp %251 : vector<8x128xf32>
    %cst_71 = arith.constant 1.000000e+00 : f32
    %253 = vector.broadcast %cst_71 : f32 to vector<8x128xf32>
    %254 = arith.addf %253, %252 : vector<8x128xf32>
    %255 = arith.divf %253, %254 : vector<8x128xf32>
    %256 = vector.extract_strided_slice %236 {offsets = [0, 256], sizes = [8, 128], strides = [1, 1]} : vector<8x384xf32> to vector<8x128xf32>
    %257 = vector.extract_strided_slice %239 {offsets = [0, 256], sizes = [8, 128], strides = [1, 1]} : vector<8x384xf32> to vector<8x128xf32>
    %258 = arith.mulf %247, %257 : vector<8x128xf32>
    %259 = arith.addf %256, %258 : vector<8x128xf32>
    %260 = math.tanh %259 : vector<8x128xf32>
    %cst_72 = arith.constant 1.000000e+00 : f32
    %261 = vector.broadcast %cst_72 : f32 to vector<8x128xf32>
    %262 = arith.subf %261, %255 : vector<8x128xf32>
    %263 = arith.mulf %262, %260 : vector<8x128xf32>
    %264 = arith.mulf %255, %203 : vector<8x128xf32>
    %265 = arith.addf %263, %264 : vector<8x128xf32>
    %266 = vector.extract_strided_slice %6 {offsets = [32, 0], sizes = [8, 384], strides = [1, 1]} : vector<64x384xf32> to vector<8x384xf32>
    %c0_73 = arith.constant 0 : index
    %c0_74 = arith.constant 0 : index
    %267 = vector.load %arg4[%c0_73, %c0_74] : memref<128x384xf32, #tpu.memory_space<vmem>>, vector<128x384xf32>
    %cst_75 = arith.constant dense<0.000000e+00> : vector<8x384xf32>
    %268 = tpu.matmul %233, %267, %cst_75 {dimension_numbers = #tpu.dot_dimension_numbers<[1], [0], [0], [1], [0, 0, 1, 1], [], []>} : vector<8x128xf32>, vector<128x384xf32>, vector<8x384xf32> -> vector<8x384xf32>
    %269 = arith.addf %268, %9 : vector<8x384xf32>
    %270 = vector.extract_strided_slice %266 {offsets = [0, 0], sizes = [8, 128], strides = [1, 1]} : vector<8x384xf32> to vector<8x128xf32>
    %271 = vector.extract_strided_slice %269 {offsets = [0, 0], sizes = [8, 128], strides = [1, 1]} : vector<8x384xf32> to vector<8x128xf32>
    %272 = arith.addf %270, %271 : vector<8x128xf32>
    %273 = arith.negf %272 : vector<8x128xf32>
    %274 = math.exp %273 : vector<8x128xf32>
    %cst_76 = arith.constant 1.000000e+00 : f32
    %275 = vector.broadcast %cst_76 : f32 to vector<8x128xf32>
    %276 = arith.addf %275, %274 : vector<8x128xf32>
    %277 = arith.divf %275, %276 : vector<8x128xf32>
    %278 = vector.extract_strided_slice %266 {offsets = [0, 128], sizes = [8, 128], strides = [1, 1]} : vector<8x384xf32> to vector<8x128xf32>
    %279 = vector.extract_strided_slice %269 {offsets = [0, 128], sizes = [8, 128], strides = [1, 1]} : vector<8x384xf32> to vector<8x128xf32>
    %280 = arith.addf %278, %279 : vector<8x128xf32>
    %281 = arith.negf %280 : vector<8x128xf32>
    %282 = math.exp %281 : vector<8x128xf32>
    %cst_77 = arith.constant 1.000000e+00 : f32
    %283 = vector.broadcast %cst_77 : f32 to vector<8x128xf32>
    %284 = arith.addf %283, %282 : vector<8x128xf32>
    %285 = arith.divf %283, %284 : vector<8x128xf32>
    %286 = vector.extract_strided_slice %266 {offsets = [0, 256], sizes = [8, 128], strides = [1, 1]} : vector<8x384xf32> to vector<8x128xf32>
    %287 = vector.extract_strided_slice %269 {offsets = [0, 256], sizes = [8, 128], strides = [1, 1]} : vector<8x384xf32> to vector<8x128xf32>
    %288 = arith.mulf %277, %287 : vector<8x128xf32>
    %289 = arith.addf %286, %288 : vector<8x128xf32>
    %290 = math.tanh %289 : vector<8x128xf32>
    %cst_78 = arith.constant 1.000000e+00 : f32
    %291 = vector.broadcast %cst_78 : f32 to vector<8x128xf32>
    %292 = arith.subf %291, %285 : vector<8x128xf32>
    %293 = arith.mulf %292, %290 : vector<8x128xf32>
    %294 = arith.mulf %285, %233 : vector<8x128xf32>
    %295 = arith.addf %293, %294 : vector<8x128xf32>
    %c0_79 = arith.constant 0 : index
    %c0_80 = arith.constant 0 : index
    %296 = vector.load %arg6[%c0_79, %c0_80] : memref<128x384xf32, #tpu.memory_space<vmem>>, vector<128x384xf32>
    %cst_81 = arith.constant dense<0.000000e+00> : vector<8x384xf32>
    %297 = tpu.matmul %295, %296, %cst_81 {dimension_numbers = #tpu.dot_dimension_numbers<[1], [0], [0], [1], [0, 0, 1, 1], [], []>} : vector<8x128xf32>, vector<128x384xf32>, vector<8x384xf32> -> vector<8x384xf32>
    %298 = arith.addf %297, %12 : vector<8x384xf32>
    %c0_82 = arith.constant 0 : index
    %c0_83 = arith.constant 0 : index
    %299 = vector.load %arg7[%c0_82, %c0_83] : memref<128x384xf32, #tpu.memory_space<vmem>>, vector<128x384xf32>
    %cst_84 = arith.constant dense<0.000000e+00> : vector<8x384xf32>
    %300 = tpu.matmul %265, %299, %cst_84 {dimension_numbers = #tpu.dot_dimension_numbers<[1], [0], [0], [1], [0, 0, 1, 1], [], []>} : vector<8x128xf32>, vector<128x384xf32>, vector<8x384xf32> -> vector<8x384xf32>
    %301 = arith.addf %300, %15 : vector<8x384xf32>
    %302 = vector.extract_strided_slice %298 {offsets = [0, 0], sizes = [8, 128], strides = [1, 1]} : vector<8x384xf32> to vector<8x128xf32>
    %303 = vector.extract_strided_slice %301 {offsets = [0, 0], sizes = [8, 128], strides = [1, 1]} : vector<8x384xf32> to vector<8x128xf32>
    %304 = arith.addf %302, %303 : vector<8x128xf32>
    %305 = arith.negf %304 : vector<8x128xf32>
    %306 = math.exp %305 : vector<8x128xf32>
    %cst_85 = arith.constant 1.000000e+00 : f32
    %307 = vector.broadcast %cst_85 : f32 to vector<8x128xf32>
    %308 = arith.addf %307, %306 : vector<8x128xf32>
    %309 = arith.divf %307, %308 : vector<8x128xf32>
    %310 = vector.extract_strided_slice %298 {offsets = [0, 128], sizes = [8, 128], strides = [1, 1]} : vector<8x384xf32> to vector<8x128xf32>
    %311 = vector.extract_strided_slice %301 {offsets = [0, 128], sizes = [8, 128], strides = [1, 1]} : vector<8x384xf32> to vector<8x128xf32>
    %312 = arith.addf %310, %311 : vector<8x128xf32>
    %313 = arith.negf %312 : vector<8x128xf32>
    %314 = math.exp %313 : vector<8x128xf32>
    %cst_86 = arith.constant 1.000000e+00 : f32
    %315 = vector.broadcast %cst_86 : f32 to vector<8x128xf32>
    %316 = arith.addf %315, %314 : vector<8x128xf32>
    %317 = arith.divf %315, %316 : vector<8x128xf32>
    %318 = vector.extract_strided_slice %298 {offsets = [0, 256], sizes = [8, 128], strides = [1, 1]} : vector<8x384xf32> to vector<8x128xf32>
    %319 = vector.extract_strided_slice %301 {offsets = [0, 256], sizes = [8, 128], strides = [1, 1]} : vector<8x384xf32> to vector<8x128xf32>
    %320 = arith.mulf %309, %319 : vector<8x128xf32>
    %321 = arith.addf %318, %320 : vector<8x128xf32>
    %322 = math.tanh %321 : vector<8x128xf32>
    %cst_87 = arith.constant 1.000000e+00 : f32
    %323 = vector.broadcast %cst_87 : f32 to vector<8x128xf32>
    %324 = arith.subf %323, %317 : vector<8x128xf32>
    %325 = arith.mulf %324, %322 : vector<8x128xf32>
    %326 = arith.mulf %317, %265 : vector<8x128xf32>
    %327 = arith.addf %325, %326 : vector<8x128xf32>
    %328 = vector.extract_strided_slice %6 {offsets = [40, 0], sizes = [8, 384], strides = [1, 1]} : vector<64x384xf32> to vector<8x384xf32>
    %c0_88 = arith.constant 0 : index
    %c0_89 = arith.constant 0 : index
    %329 = vector.load %arg4[%c0_88, %c0_89] : memref<128x384xf32, #tpu.memory_space<vmem>>, vector<128x384xf32>
    %cst_90 = arith.constant dense<0.000000e+00> : vector<8x384xf32>
    %330 = tpu.matmul %295, %329, %cst_90 {dimension_numbers = #tpu.dot_dimension_numbers<[1], [0], [0], [1], [0, 0, 1, 1], [], []>} : vector<8x128xf32>, vector<128x384xf32>, vector<8x384xf32> -> vector<8x384xf32>
    %331 = arith.addf %330, %9 : vector<8x384xf32>
    %332 = vector.extract_strided_slice %328 {offsets = [0, 0], sizes = [8, 128], strides = [1, 1]} : vector<8x384xf32> to vector<8x128xf32>
    %333 = vector.extract_strided_slice %331 {offsets = [0, 0], sizes = [8, 128], strides = [1, 1]} : vector<8x384xf32> to vector<8x128xf32>
    %334 = arith.addf %332, %333 : vector<8x128xf32>
    %335 = arith.negf %334 : vector<8x128xf32>
    %336 = math.exp %335 : vector<8x128xf32>
    %cst_91 = arith.constant 1.000000e+00 : f32
    %337 = vector.broadcast %cst_91 : f32 to vector<8x128xf32>
    %338 = arith.addf %337, %336 : vector<8x128xf32>
    %339 = arith.divf %337, %338 : vector<8x128xf32>
    %340 = vector.extract_strided_slice %328 {offsets = [0, 128], sizes = [8, 128], strides = [1, 1]} : vector<8x384xf32> to vector<8x128xf32>
    %341 = vector.extract_strided_slice %331 {offsets = [0, 128], sizes = [8, 128], strides = [1, 1]} : vector<8x384xf32> to vector<8x128xf32>
    %342 = arith.addf %340, %341 : vector<8x128xf32>
    %343 = arith.negf %342 : vector<8x128xf32>
    %344 = math.exp %343 : vector<8x128xf32>
    %cst_92 = arith.constant 1.000000e+00 : f32
    %345 = vector.broadcast %cst_92 : f32 to vector<8x128xf32>
    %346 = arith.addf %345, %344 : vector<8x128xf32>
    %347 = arith.divf %345, %346 : vector<8x128xf32>
    %348 = vector.extract_strided_slice %328 {offsets = [0, 256], sizes = [8, 128], strides = [1, 1]} : vector<8x384xf32> to vector<8x128xf32>
    %349 = vector.extract_strided_slice %331 {offsets = [0, 256], sizes = [8, 128], strides = [1, 1]} : vector<8x384xf32> to vector<8x128xf32>
    %350 = arith.mulf %339, %349 : vector<8x128xf32>
    %351 = arith.addf %348, %350 : vector<8x128xf32>
    %352 = math.tanh %351 : vector<8x128xf32>
    %cst_93 = arith.constant 1.000000e+00 : f32
    %353 = vector.broadcast %cst_93 : f32 to vector<8x128xf32>
    %354 = arith.subf %353, %347 : vector<8x128xf32>
    %355 = arith.mulf %354, %352 : vector<8x128xf32>
    %356 = arith.mulf %347, %295 : vector<8x128xf32>
    %357 = arith.addf %355, %356 : vector<8x128xf32>
    %c0_94 = arith.constant 0 : index
    %c0_95 = arith.constant 0 : index
    %358 = vector.load %arg6[%c0_94, %c0_95] : memref<128x384xf32, #tpu.memory_space<vmem>>, vector<128x384xf32>
    %cst_96 = arith.constant dense<0.000000e+00> : vector<8x384xf32>
    %359 = tpu.matmul %357, %358, %cst_96 {dimension_numbers = #tpu.dot_dimension_numbers<[1], [0], [0], [1], [0, 0, 1, 1], [], []>} : vector<8x128xf32>, vector<128x384xf32>, vector<8x384xf32> -> vector<8x384xf32>
    %360 = arith.addf %359, %12 : vector<8x384xf32>
    %c0_97 = arith.constant 0 : index
    %c0_98 = arith.constant 0 : index
    %361 = vector.load %arg7[%c0_97, %c0_98] : memref<128x384xf32, #tpu.memory_space<vmem>>, vector<128x384xf32>
    %cst_99 = arith.constant dense<0.000000e+00> : vector<8x384xf32>
    %362 = tpu.matmul %327, %361, %cst_99 {dimension_numbers = #tpu.dot_dimension_numbers<[1], [0], [0], [1], [0, 0, 1, 1], [], []>} : vector<8x128xf32>, vector<128x384xf32>, vector<8x384xf32> -> vector<8x384xf32>
    %363 = arith.addf %362, %15 : vector<8x384xf32>
    %364 = vector.extract_strided_slice %360 {offsets = [0, 0], sizes = [8, 128], strides = [1, 1]} : vector<8x384xf32> to vector<8x128xf32>
    %365 = vector.extract_strided_slice %363 {offsets = [0, 0], sizes = [8, 128], strides = [1, 1]} : vector<8x384xf32> to vector<8x128xf32>
    %366 = arith.addf %364, %365 : vector<8x128xf32>
    %367 = arith.negf %366 : vector<8x128xf32>
    %368 = math.exp %367 : vector<8x128xf32>
    %cst_100 = arith.constant 1.000000e+00 : f32
    %369 = vector.broadcast %cst_100 : f32 to vector<8x128xf32>
    %370 = arith.addf %369, %368 : vector<8x128xf32>
    %371 = arith.divf %369, %370 : vector<8x128xf32>
    %372 = vector.extract_strided_slice %360 {offsets = [0, 128], sizes = [8, 128], strides = [1, 1]} : vector<8x384xf32> to vector<8x128xf32>
    %373 = vector.extract_strided_slice %363 {offsets = [0, 128], sizes = [8, 128], strides = [1, 1]} : vector<8x384xf32> to vector<8x128xf32>
    %374 = arith.addf %372, %373 : vector<8x128xf32>
    %375 = arith.negf %374 : vector<8x128xf32>
    %376 = math.exp %375 : vector<8x128xf32>
    %cst_101 = arith.constant 1.000000e+00 : f32
    %377 = vector.broadcast %cst_101 : f32 to vector<8x128xf32>
    %378 = arith.addf %377, %376 : vector<8x128xf32>
    %379 = arith.divf %377, %378 : vector<8x128xf32>
    %380 = vector.extract_strided_slice %360 {offsets = [0, 256], sizes = [8, 128], strides = [1, 1]} : vector<8x384xf32> to vector<8x128xf32>
    %381 = vector.extract_strided_slice %363 {offsets = [0, 256], sizes = [8, 128], strides = [1, 1]} : vector<8x384xf32> to vector<8x128xf32>
    %382 = arith.mulf %371, %381 : vector<8x128xf32>
    %383 = arith.addf %380, %382 : vector<8x128xf32>
    %384 = math.tanh %383 : vector<8x128xf32>
    %cst_102 = arith.constant 1.000000e+00 : f32
    %385 = vector.broadcast %cst_102 : f32 to vector<8x128xf32>
    %386 = arith.subf %385, %379 : vector<8x128xf32>
    %387 = arith.mulf %386, %384 : vector<8x128xf32>
    %388 = arith.mulf %379, %327 : vector<8x128xf32>
    %389 = arith.addf %387, %388 : vector<8x128xf32>
    %390 = vector.extract_strided_slice %6 {offsets = [48, 0], sizes = [8, 384], strides = [1, 1]} : vector<64x384xf32> to vector<8x384xf32>
    %c0_103 = arith.constant 0 : index
    %c0_104 = arith.constant 0 : index
    %391 = vector.load %arg4[%c0_103, %c0_104] : memref<128x384xf32, #tpu.memory_space<vmem>>, vector<128x384xf32>
    %cst_105 = arith.constant dense<0.000000e+00> : vector<8x384xf32>
    %392 = tpu.matmul %357, %391, %cst_105 {dimension_numbers = #tpu.dot_dimension_numbers<[1], [0], [0], [1], [0, 0, 1, 1], [], []>} : vector<8x128xf32>, vector<128x384xf32>, vector<8x384xf32> -> vector<8x384xf32>
    %393 = arith.addf %392, %9 : vector<8x384xf32>
    %394 = vector.extract_strided_slice %390 {offsets = [0, 0], sizes = [8, 128], strides = [1, 1]} : vector<8x384xf32> to vector<8x128xf32>
    %395 = vector.extract_strided_slice %393 {offsets = [0, 0], sizes = [8, 128], strides = [1, 1]} : vector<8x384xf32> to vector<8x128xf32>
    %396 = arith.addf %394, %395 : vector<8x128xf32>
    %397 = arith.negf %396 : vector<8x128xf32>
    %398 = math.exp %397 : vector<8x128xf32>
    %cst_106 = arith.constant 1.000000e+00 : f32
    %399 = vector.broadcast %cst_106 : f32 to vector<8x128xf32>
    %400 = arith.addf %399, %398 : vector<8x128xf32>
    %401 = arith.divf %399, %400 : vector<8x128xf32>
    %402 = vector.extract_strided_slice %390 {offsets = [0, 128], sizes = [8, 128], strides = [1, 1]} : vector<8x384xf32> to vector<8x128xf32>
    %403 = vector.extract_strided_slice %393 {offsets = [0, 128], sizes = [8, 128], strides = [1, 1]} : vector<8x384xf32> to vector<8x128xf32>
    %404 = arith.addf %402, %403 : vector<8x128xf32>
    %405 = arith.negf %404 : vector<8x128xf32>
    %406 = math.exp %405 : vector<8x128xf32>
    %cst_107 = arith.constant 1.000000e+00 : f32
    %407 = vector.broadcast %cst_107 : f32 to vector<8x128xf32>
    %408 = arith.addf %407, %406 : vector<8x128xf32>
    %409 = arith.divf %407, %408 : vector<8x128xf32>
    %410 = vector.extract_strided_slice %390 {offsets = [0, 256], sizes = [8, 128], strides = [1, 1]} : vector<8x384xf32> to vector<8x128xf32>
    %411 = vector.extract_strided_slice %393 {offsets = [0, 256], sizes = [8, 128], strides = [1, 1]} : vector<8x384xf32> to vector<8x128xf32>
    %412 = arith.mulf %401, %411 : vector<8x128xf32>
    %413 = arith.addf %410, %412 : vector<8x128xf32>
    %414 = math.tanh %413 : vector<8x128xf32>
    %cst_108 = arith.constant 1.000000e+00 : f32
    %415 = vector.broadcast %cst_108 : f32 to vector<8x128xf32>
    %416 = arith.subf %415, %409 : vector<8x128xf32>
    %417 = arith.mulf %416, %414 : vector<8x128xf32>
    %418 = arith.mulf %409, %357 : vector<8x128xf32>
    %419 = arith.addf %417, %418 : vector<8x128xf32>
    %c0_109 = arith.constant 0 : index
    %c0_110 = arith.constant 0 : index
    %420 = vector.load %arg6[%c0_109, %c0_110] : memref<128x384xf32, #tpu.memory_space<vmem>>, vector<128x384xf32>
    %cst_111 = arith.constant dense<0.000000e+00> : vector<8x384xf32>
    %421 = tpu.matmul %419, %420, %cst_111 {dimension_numbers = #tpu.dot_dimension_numbers<[1], [0], [0], [1], [0, 0, 1, 1], [], []>} : vector<8x128xf32>, vector<128x384xf32>, vector<8x384xf32> -> vector<8x384xf32>
    %422 = arith.addf %421, %12 : vector<8x384xf32>
    %c0_112 = arith.constant 0 : index
    %c0_113 = arith.constant 0 : index
    %423 = vector.load %arg7[%c0_112, %c0_113] : memref<128x384xf32, #tpu.memory_space<vmem>>, vector<128x384xf32>
    %cst_114 = arith.constant dense<0.000000e+00> : vector<8x384xf32>
    %424 = tpu.matmul %389, %423, %cst_114 {dimension_numbers = #tpu.dot_dimension_numbers<[1], [0], [0], [1], [0, 0, 1, 1], [], []>} : vector<8x128xf32>, vector<128x384xf32>, vector<8x384xf32> -> vector<8x384xf32>
    %425 = arith.addf %424, %15 : vector<8x384xf32>
    %426 = vector.extract_strided_slice %422 {offsets = [0, 0], sizes = [8, 128], strides = [1, 1]} : vector<8x384xf32> to vector<8x128xf32>
    %427 = vector.extract_strided_slice %425 {offsets = [0, 0], sizes = [8, 128], strides = [1, 1]} : vector<8x384xf32> to vector<8x128xf32>
    %428 = arith.addf %426, %427 : vector<8x128xf32>
    %429 = arith.negf %428 : vector<8x128xf32>
    %430 = math.exp %429 : vector<8x128xf32>
    %cst_115 = arith.constant 1.000000e+00 : f32
    %431 = vector.broadcast %cst_115 : f32 to vector<8x128xf32>
    %432 = arith.addf %431, %430 : vector<8x128xf32>
    %433 = arith.divf %431, %432 : vector<8x128xf32>
    %434 = vector.extract_strided_slice %422 {offsets = [0, 128], sizes = [8, 128], strides = [1, 1]} : vector<8x384xf32> to vector<8x128xf32>
    %435 = vector.extract_strided_slice %425 {offsets = [0, 128], sizes = [8, 128], strides = [1, 1]} : vector<8x384xf32> to vector<8x128xf32>
    %436 = arith.addf %434, %435 : vector<8x128xf32>
    %437 = arith.negf %436 : vector<8x128xf32>
    %438 = math.exp %437 : vector<8x128xf32>
    %cst_116 = arith.constant 1.000000e+00 : f32
    %439 = vector.broadcast %cst_116 : f32 to vector<8x128xf32>
    %440 = arith.addf %439, %438 : vector<8x128xf32>
    %441 = arith.divf %439, %440 : vector<8x128xf32>
    %442 = vector.extract_strided_slice %422 {offsets = [0, 256], sizes = [8, 128], strides = [1, 1]} : vector<8x384xf32> to vector<8x128xf32>
    %443 = vector.extract_strided_slice %425 {offsets = [0, 256], sizes = [8, 128], strides = [1, 1]} : vector<8x384xf32> to vector<8x128xf32>
    %444 = arith.mulf %433, %443 : vector<8x128xf32>
    %445 = arith.addf %442, %444 : vector<8x128xf32>
    %446 = math.tanh %445 : vector<8x128xf32>
    %cst_117 = arith.constant 1.000000e+00 : f32
    %447 = vector.broadcast %cst_117 : f32 to vector<8x128xf32>
    %448 = arith.subf %447, %441 : vector<8x128xf32>
    %449 = arith.mulf %448, %446 : vector<8x128xf32>
    %450 = arith.mulf %441, %389 : vector<8x128xf32>
    %451 = arith.addf %449, %450 : vector<8x128xf32>
    %452 = vector.extract_strided_slice %6 {offsets = [56, 0], sizes = [8, 384], strides = [1, 1]} : vector<64x384xf32> to vector<8x384xf32>
    %c0_118 = arith.constant 0 : index
    %c0_119 = arith.constant 0 : index
    %453 = vector.load %arg4[%c0_118, %c0_119] : memref<128x384xf32, #tpu.memory_space<vmem>>, vector<128x384xf32>
    %cst_120 = arith.constant dense<0.000000e+00> : vector<8x384xf32>
    %454 = tpu.matmul %419, %453, %cst_120 {dimension_numbers = #tpu.dot_dimension_numbers<[1], [0], [0], [1], [0, 0, 1, 1], [], []>} : vector<8x128xf32>, vector<128x384xf32>, vector<8x384xf32> -> vector<8x384xf32>
    %455 = arith.addf %454, %9 : vector<8x384xf32>
    %456 = vector.extract_strided_slice %452 {offsets = [0, 0], sizes = [8, 128], strides = [1, 1]} : vector<8x384xf32> to vector<8x128xf32>
    %457 = vector.extract_strided_slice %455 {offsets = [0, 0], sizes = [8, 128], strides = [1, 1]} : vector<8x384xf32> to vector<8x128xf32>
    %458 = arith.addf %456, %457 : vector<8x128xf32>
    %459 = arith.negf %458 : vector<8x128xf32>
    %460 = math.exp %459 : vector<8x128xf32>
    %cst_121 = arith.constant 1.000000e+00 : f32
    %461 = vector.broadcast %cst_121 : f32 to vector<8x128xf32>
    %462 = arith.addf %461, %460 : vector<8x128xf32>
    %463 = arith.divf %461, %462 : vector<8x128xf32>
    %464 = vector.extract_strided_slice %452 {offsets = [0, 128], sizes = [8, 128], strides = [1, 1]} : vector<8x384xf32> to vector<8x128xf32>
    %465 = vector.extract_strided_slice %455 {offsets = [0, 128], sizes = [8, 128], strides = [1, 1]} : vector<8x384xf32> to vector<8x128xf32>
    %466 = arith.addf %464, %465 : vector<8x128xf32>
    %467 = arith.negf %466 : vector<8x128xf32>
    %468 = math.exp %467 : vector<8x128xf32>
    %cst_122 = arith.constant 1.000000e+00 : f32
    %469 = vector.broadcast %cst_122 : f32 to vector<8x128xf32>
    %470 = arith.addf %469, %468 : vector<8x128xf32>
    %471 = arith.divf %469, %470 : vector<8x128xf32>
    %472 = vector.extract_strided_slice %452 {offsets = [0, 256], sizes = [8, 128], strides = [1, 1]} : vector<8x384xf32> to vector<8x128xf32>
    %473 = vector.extract_strided_slice %455 {offsets = [0, 256], sizes = [8, 128], strides = [1, 1]} : vector<8x384xf32> to vector<8x128xf32>
    %474 = arith.mulf %463, %473 : vector<8x128xf32>
    %475 = arith.addf %472, %474 : vector<8x128xf32>
    %476 = math.tanh %475 : vector<8x128xf32>
    %cst_123 = arith.constant 1.000000e+00 : f32
    %477 = vector.broadcast %cst_123 : f32 to vector<8x128xf32>
    %478 = arith.subf %477, %471 : vector<8x128xf32>
    %479 = arith.mulf %478, %476 : vector<8x128xf32>
    %480 = arith.mulf %471, %419 : vector<8x128xf32>
    %481 = arith.addf %479, %480 : vector<8x128xf32>
    %c0_124 = arith.constant 0 : index
    %c0_125 = arith.constant 0 : index
    %482 = vector.load %arg6[%c0_124, %c0_125] : memref<128x384xf32, #tpu.memory_space<vmem>>, vector<128x384xf32>
    %cst_126 = arith.constant dense<0.000000e+00> : vector<8x384xf32>
    %483 = tpu.matmul %481, %482, %cst_126 {dimension_numbers = #tpu.dot_dimension_numbers<[1], [0], [0], [1], [0, 0, 1, 1], [], []>} : vector<8x128xf32>, vector<128x384xf32>, vector<8x384xf32> -> vector<8x384xf32>
    %484 = arith.addf %483, %12 : vector<8x384xf32>
    %c0_127 = arith.constant 0 : index
    %c0_128 = arith.constant 0 : index
    %485 = vector.load %arg7[%c0_127, %c0_128] : memref<128x384xf32, #tpu.memory_space<vmem>>, vector<128x384xf32>
    %cst_129 = arith.constant dense<0.000000e+00> : vector<8x384xf32>
    %486 = tpu.matmul %451, %485, %cst_129 {dimension_numbers = #tpu.dot_dimension_numbers<[1], [0], [0], [1], [0, 0, 1, 1], [], []>} : vector<8x128xf32>, vector<128x384xf32>, vector<8x384xf32> -> vector<8x384xf32>
    %487 = arith.addf %486, %15 : vector<8x384xf32>
    %488 = vector.extract_strided_slice %484 {offsets = [0, 0], sizes = [8, 128], strides = [1, 1]} : vector<8x384xf32> to vector<8x128xf32>
    %489 = vector.extract_strided_slice %487 {offsets = [0, 0], sizes = [8, 128], strides = [1, 1]} : vector<8x384xf32> to vector<8x128xf32>
    %490 = arith.addf %488, %489 : vector<8x128xf32>
    %491 = arith.negf %490 : vector<8x128xf32>
    %492 = math.exp %491 : vector<8x128xf32>
    %cst_130 = arith.constant 1.000000e+00 : f32
    %493 = vector.broadcast %cst_130 : f32 to vector<8x128xf32>
    %494 = arith.addf %493, %492 : vector<8x128xf32>
    %495 = arith.divf %493, %494 : vector<8x128xf32>
    %496 = vector.extract_strided_slice %484 {offsets = [0, 128], sizes = [8, 128], strides = [1, 1]} : vector<8x384xf32> to vector<8x128xf32>
    %497 = vector.extract_strided_slice %487 {offsets = [0, 128], sizes = [8, 128], strides = [1, 1]} : vector<8x384xf32> to vector<8x128xf32>
    %498 = arith.addf %496, %497 : vector<8x128xf32>
    %499 = arith.negf %498 : vector<8x128xf32>
    %500 = math.exp %499 : vector<8x128xf32>
    %cst_131 = arith.constant 1.000000e+00 : f32
    %501 = vector.broadcast %cst_131 : f32 to vector<8x128xf32>
    %502 = arith.addf %501, %500 : vector<8x128xf32>
    %503 = arith.divf %501, %502 : vector<8x128xf32>
    %504 = vector.extract_strided_slice %484 {offsets = [0, 256], sizes = [8, 128], strides = [1, 1]} : vector<8x384xf32> to vector<8x128xf32>
    %505 = vector.extract_strided_slice %487 {offsets = [0, 256], sizes = [8, 128], strides = [1, 1]} : vector<8x384xf32> to vector<8x128xf32>
    %506 = arith.mulf %495, %505 : vector<8x128xf32>
    %507 = arith.addf %504, %506 : vector<8x128xf32>
    %508 = math.tanh %507 : vector<8x128xf32>
    %cst_132 = arith.constant 1.000000e+00 : f32
    %509 = vector.broadcast %cst_132 : f32 to vector<8x128xf32>
    %510 = arith.subf %509, %503 : vector<8x128xf32>
    %511 = arith.mulf %510, %508 : vector<8x128xf32>
    %512 = arith.mulf %503, %451 : vector<8x128xf32>
    %513 = arith.addf %511, %512 : vector<8x128xf32>
    %c0_133 = arith.constant 0 : index
    %c0_134 = arith.constant 0 : index
    %514 = vector.load %arg10[%c0_133, %c0_134] : memref<128x128xf32, #tpu.memory_space<vmem>>, vector<128x128xf32>
    %cst_135 = arith.constant dense<0.000000e+00> : vector<8x128xf32>
    %515 = tpu.matmul %513, %514, %cst_135 {dimension_numbers = #tpu.dot_dimension_numbers<[1], [0], [0], [1], [0, 0, 1, 1], [], []>} : vector<8x128xf32>, vector<128x128xf32>, vector<8x128xf32> -> vector<8x128xf32>
    %c0_136 = arith.constant 0 : index
    %c0_137 = arith.constant 0 : index
    %516 = vector.load %arg11[%c0_136, %c0_137] : memref<1x128xf32, #tpu.memory_space<vmem>>, vector<1x128xf32>
    %517 = vector.shape_cast %516 : vector<1x128xf32> to vector<1x128xf32>
    %518 = vector.broadcast %517 : vector<1x128xf32> to vector<8x128xf32>
    %519 = arith.addf %515, %518 : vector<8x128xf32>
    %c0_138 = arith.constant 0 : index
    %c0_139 = arith.constant 0 : index
    %520 = vector.load %arg12[%c0_138, %c0_139] : memref<8x128xf32, #tpu.memory_space<vmem>>, vector<8x128xf32>
    tpu.vector_store %arg12[%c0_138, %c0_139], %519 {strides = array<i32>} : memref<8x128xf32, #tpu.memory_space<vmem>>, vector<8x128xf32>,
    return
  }
  func.func @transform_0(%arg0: i32) -> (i32, i32) {
    %c0_i32 = arith.constant 0 : i32
    %c0_i32_0 = arith.constant 0 : i32
    %c0_i32_1 = arith.constant 0 : i32
    return %c0_i32, %c0_i32_0 : i32, i32
  }
  func.func @transform_1(%arg0: i32) -> (i32, i32) {
    %c0_i32 = arith.constant 0 : i32
    %c0_i32_0 = arith.constant 0 : i32
    %c0_i32_1 = arith.constant 0 : i32
    return %c0_i32, %c0_i32_0 : i32, i32
  }
  func.func @transform_2(%arg0: i32) -> (i32, i32) {
    %c0_i32 = arith.constant 0 : i32
    %c0_i32_0 = arith.constant 0 : i32
    %c0_i32_1 = arith.constant 0 : i32
    return %c0_i32, %c0_i32_0 : i32, i32
  }
  func.func @transform_3(%arg0: i32) -> (i32, i32) {
    %c0_i32 = arith.constant 0 : i32
    %c0_i32_0 = arith.constant 0 : i32
    %c0_i32_1 = arith.constant 0 : i32
    return %c0_i32, %c0_i32_0 : i32, i32
  }
  func.func @transform_4(%arg0: i32) -> (i32, i32) {
    %c0_i32 = arith.constant 0 : i32
    %c0_i32_0 = arith.constant 0 : i32
    %c0_i32_1 = arith.constant 0 : i32
    return %c0_i32, %c0_i32_0 : i32, i32
  }
  func.func @transform_5(%arg0: i32) -> (i32, i32) {
    %c0_i32 = arith.constant 0 : i32
    %c0_i32_0 = arith.constant 0 : i32
    %c0_i32_1 = arith.constant 0 : i32
    return %c0_i32, %c0_i32_0 : i32, i32
  }
  func.func @transform_6(%arg0: i32) -> (i32, i32) {
    %c0_i32 = arith.constant 0 : i32
    %c0_i32_0 = arith.constant 0 : i32
    %c0_i32_1 = arith.constant 0 : i32
    return %c0_i32, %c0_i32_0 : i32, i32
  }
  func.func @transform_7(%arg0: i32) -> (i32, i32) {
    %c0_i32 = arith.constant 0 : i32
    %c0_i32_0 = arith.constant 0 : i32
    %c0_i32_1 = arith.constant 0 : i32
    return %c0_i32, %c0_i32_0 : i32, i32
  }
  func.func @transform_8(%arg0: i32) -> (i32, i32) {
    %c0_i32 = arith.constant 0 : i32
    %c0_i32_0 = arith.constant 0 : i32
    %c0_i32_1 = arith.constant 0 : i32
    return %c0_i32, %c0_i32_0 : i32, i32
  }
  func.func @transform_9(%arg0: i32) -> (i32, i32) {
    %c0_i32 = arith.constant 0 : i32
    %c0_i32_0 = arith.constant 0 : i32
    %c0_i32_1 = arith.constant 0 : i32
    return %c0_i32, %c0_i32_0 : i32, i32
  }
  func.func @transform_10(%arg0: i32) -> (i32, i32) {
    %c0_i32 = arith.constant 0 : i32
    %c0_i32_0 = arith.constant 0 : i32
    %c0_i32_1 = arith.constant 0 : i32
    return %c0_i32, %c0_i32_0 : i32, i32
  }
  func.func @transform_11(%arg0: i32) -> (i32, i32) {
    %c0_i32 = arith.constant 0 : i32
    %c0_i32_0 = arith.constant 0 : i32
    %c0_i32_1 = arith.constant 0 : i32
    return %c0_i32, %c0_i32_0 : i32, i32
  }
}

</mosaic_0001>

<llo_original>
// kernel: gru_model_forward.1
$region0: #{gru_model_forward.1}
  #allocation0 [shape = 'u32[]', space=smem, size = 0x4, offset = 0x4, fixed_abs, tag = 'smem constant byte address 0x4 - core index']
  #allocation1 [shape = 'u32[72,128]{1,0:T(1,128)}', space=vmem, size = 0x9000, scoped, tag = 'internal scratch']
  %s0 = inlined_call_operand.vmem [shape: f32[64,128], index: 0, kind: input, shape index: {}]
  %s1 = inlined_call_operand.hbm [shape: f32[128,384], index: 1, kind: input, shape index: {}]
  %s2 = inlined_call_operand.vmem [shape: f32[1,384], index: 2, kind: input, shape index: {}]
  %s3 = inlined_call_operand.hbm [shape: f32[128,384], index: 3, kind: input, shape index: {}]
  %s4 = inlined_call_operand.vmem [shape: f32[1,384], index: 4, kind: input, shape index: {}]
  %s5 = inlined_call_operand.hbm [shape: f32[128,384], index: 5, kind: input, shape index: {}]
  %s6 = inlined_call_operand.hbm [shape: f32[128,384], index: 6, kind: input, shape index: {}]
  %s7 = inlined_call_operand.vmem [shape: f32[1,384], index: 7, kind: input, shape index: {}]
  %s8 = inlined_call_operand.vmem [shape: f32[1,384], index: 8, kind: input, shape index: {}]
  %s9 = inlined_call_operand.hbm [shape: f32[128,128], index: 9, kind: input, shape index: {}]
  %s10 = inlined_call_operand.vmem [shape: f32[1,128], index: 10, kind: input, shape index: {}]
  %s11 = inlined_call_operand.vmem [shape: f32[8,128], index: 11, kind: output, shape index: {}]
  %s12 = sld [smem:[#allocation0]]
  $region74: #{gru_model_forward.1} parent=0
    _
  %s14 = ssub.s32 1, %s12
  %s15 = scalar_select 0, %s14, %s12
  $region1: #{gru_model_forward.1} parent=0
    #allocation2 [shape = 'u8[196608]{0}', space=vmem, size = 0x30000, scoped, tag = 'input window, operand 1, single buffered']
    #allocation3 [shape = 's32[1]{0}', space=sflag, size = 0x4, scoped, tag = 'scoped memory for gru_model_forward.1']
    #allocation4 [shape = 'u8[196608]{0}', space=vmem, size = 0x30000, scoped, tag = 'input window, operand 3, single buffered']
    #allocation5 [shape = 's32[1]{0}', space=sflag, size = 0x4, scoped, tag = 'scoped memory for gru_model_forward.1']
    #allocation6 [shape = 'u8[196608]{0}', space=vmem, size = 0x30000, scoped, tag = 'input window, operand 5, single buffered']
    #allocation7 [shape = 'u8[196608]{0}', space=vmem, size = 0x30000, scoped, tag = 'input window, operand 6, single buffered']
    #allocation8 [shape = 's32[1]{0}', space=sflag, size = 0x4, scoped, tag = 'scoped memory for gru_model_forward.1']
    #allocation9 [shape = 'u8[65536]{0}', space=vmem, size = 0x10000, scoped, tag = 'input window, operand 9, single buffered']
    %16 = vsyncpa [#allocation3], 0
    %17 = vsyncpa [#allocation5], 0
    %18 = vsyncpa [#allocation8], 0
    // Predicated region
    $region2: #{gru_model_forward.1} parent=1 // pred_check
      _
    $region3: #{gru_model_forward.1} parent=1 // pred_check_branch
      %20 = sbr.rel (0) target = $region5
    $region4: #{gru_model_forward.1} parent=1 // pred_region
      _
    $region5: #{gru_model_forward.1} parent=1 // pred_fallthru
      _
    // Predicated region
    $region6: #{gru_model_forward.1} parent=1 // pred_check
      _
    $region7: #{gru_model_forward.1} parent=1 // pred_check_branch
      %22 = sbr.rel (0) target = $region9
    $region8: #{gru_model_forward.1} parent=1 // pred_region
      %24 = vsyncadd [#allocation3], 0
      %s25 = sshll.u32 %s1, 4
      %s26 = int_to_ptr.hbm [resolvable:$true] %s25
      %s27 = sshll.u32 [#allocation2], 4
      %s28 = int_to_ptr.vmem [resolvable:$true] %s27
      %33 = dma.hbm_to_vmem [thread:$0]  %s26, 6144, %s28, [#allocation3], 384, 384, 24
    $region9: #{gru_model_forward.1} parent=1 // pred_fallthru
      _
    // Predicated region
    $region10: #{gru_model_forward.1} parent=1 // pred_check
      _
    $region11: #{gru_model_forward.1} parent=1 // pred_check_branch
      %35 = sbr.rel (0) target = $region13
    $region12: #{gru_model_forward.1} parent=1 // pred_region
      _
    $region13: #{gru_model_forward.1} parent=1 // pred_fallthru
      _
    // Predicated region
    $region14: #{gru_model_forward.1} parent=1 // pred_check
      _
    $region15: #{gru_model_forward.1} parent=1 // pred_check_branch
      %37 = sbr.rel (0) target = $region17
    $region16: #{gru_model_forward.1} parent=1 // pred_region
      %39 = vsyncadd [#allocation5], 0
      %s40 = sshll.u32 %s3, 4
      %s41 = int_to_ptr.hbm [resolvable:$true] %s40
      %s42 = sshll.u32 [#allocation4], 4
      %s43 = int_to_ptr.vmem [resolvable:$true] %s42
      %48 = dma.hbm_to_vmem [thread:$0]  %s41, 6144, %s43, [#allocation5], 384, 384, 24
    $region17: #{gru_model_forward.1} parent=1 // pred_fallthru
      _
    // Predicated region
    $region18: #{gru_model_forward.1} parent=1 // pred_check
      _
    $region19: #{gru_model_forward.1} parent=1 // pred_check_branch
      %50 = sbr.rel (0) target = $region21
    $region20: #{gru_model_forward.1} parent=1 // pred_region
      _
    $region21: #{gru_model_forward.1} parent=1 // pred_fallthru
      _
    // Predicated region
    $region22: #{gru_model_forward.1} parent=1 // pred_check
      _
    $region23: #{gru_model_forward.1} parent=1 // pred_check_branch
      %52 = sbr.rel (0) target = $region25
    $region24: #{gru_model_forward.1} parent=1 // pred_region
      %54 = vsyncadd [#allocation5], 0
      %s55 = sshll.u32 %s5, 4
      %s56 = int_to_ptr.hbm [resolvable:$true] %s55
      %s57 = sshll.u32 [#allocation6], 4
      %s58 = int_to_ptr.vmem [resolvable:$true] %s57
      %63 = dma.hbm_to_vmem [thread:$0]  %s56, 6144, %s58, [#allocation5], 384, 384, 24
    $region25: #{gru_model_forward.1} parent=1 // pred_fallthru
      _
    // Predicated region
    $region26: #{gru_model_forward.1} parent=1 // pred_check
      _
    $region27: #{gru_model_forward.1} parent=1 // pred_check_branch
      %65 = sbr.rel (0) target = $region29
    $region28: #{gru_model_forward.1} parent=1 // pred_region
      %67 = vsyncadd [#allocation8], 0
      %s68 = sshll.u32 %s6, 4
      %s69 = int_to_ptr.hbm [resolvable:$true] %s68
      %s70 = sshll.u32 [#allocation7], 4
      %s71 = int_to_ptr.vmem [resolvable:$true] %s70
      %76 = dma.hbm_to_vmem [thread:$0]  %s69, 6144, %s71, [#allocation8], 384, 384, 24
    $region29: #{gru_model_forward.1} parent=1 // pred_fallthru
      _
    // Predicated region
    $region30: #{gru_model_forward.1} parent=1 // pred_check
      _
    $region31: #{gru_model_forward.1} parent=1 // pred_check_branch
      %78 = sbr.rel (0) target = $region33
    $region32: #{gru_model_forward.1} parent=1 // pred_region
      _
    $region33: #{gru_model_forward.1} parent=1 // pred_fallthru
      _
    // Predicated region
    $region34: #{gru_model_forward.1} parent=1 // pred_check
      _
    $region35: #{gru_model_forward.1} parent=1 // pred_check_branch
      %80 = sbr.rel (0) target = $region37
    $region36: #{gru_model_forward.1} parent=1 // pred_region
      _
    $region37: #{gru_model_forward.1} parent=1 // pred_fallthru
      _
    // Predicated region
    $region38: #{gru_model_forward.1} parent=1 // pred_check
      _
    $region39: #{gru_model_forward.1} parent=1 // pred_check_branch
      %82 = sbr.rel (0) target = $region41
    $region40: #{gru_model_forward.1} parent=1 // pred_region
      %84 = vsyncadd [#allocation8], 0
      %s85 = sshll.u32 %s9, 4
      %s86 = int_to_ptr.hbm [resolvable:$true] %s85
      %s87 = sshll.u32 [#allocation9], 4
      %s88 = int_to_ptr.vmem [resolvable:$true] %s87
      %93 = dma.hbm_to_vmem [thread:$0]  %s86, 2048, %s88, [#allocation8], 128, 128, 8
    $region41: #{gru_model_forward.1} parent=1 // pred_fallthru
      _
    // Predicated region
    $region42: #{gru_model_forward.1} parent=1 // pred_check
      _
    $region43: #{gru_model_forward.1} parent=1 // pred_check_branch
      %95 = sbr.rel (0) target = $region45
    $region44: #{gru_model_forward.1} parent=1 // pred_region
      _
    $region45: #{gru_model_forward.1} parent=1 // pred_fallthru
      _
    // Predicated region
    $region46: #{gru_model_forward.1} parent=1 // pred_check
      _
    $region47: #{gru_model_forward.1} parent=1 // pred_check_branch
      %97 = sbr.rel (0) target = $region49
    $region48: #{gru_model_forward.1} parent=1 // pred_region
      %99 = dma.done [#allocation3], 6144
    $region49: #{gru_model_forward.1} parent=1 // pred_fallthru
      _
    // Predicated region
    $region50: #{gru_model_forward.1} parent=1 // pred_check
      _
    $region51: #{gru_model_forward.1} parent=1 // pred_check_branch
      %101 = sbr.rel (0) target = $region53
    $region52: #{gru_model_forward.1} parent=1 // pred_region
      %103 = dma.done [#allocation5], 6144
    $region53: #{gru_model_forward.1} parent=1 // pred_fallthru
      _
    // Predicated region
    $region54: #{gru_model_forward.1} parent=1 // pred_check
      _
    $region55: #{gru_model_forward.1} parent=1 // pred_check_branch
      %105 = sbr.rel (0) target = $region57
    $region56: #{gru_model_forward.1} parent=1 // pred_region
      %107 = dma.done [#allocation5], 6144
    $region57: #{gru_model_forward.1} parent=1 // pred_fallthru
      _
    // Predicated region
    $region58: #{gru_model_forward.1} parent=1 // pred_check
      _
    $region59: #{gru_model_forward.1} parent=1 // pred_check_branch
      %109 = sbr.rel (0) target = $region61
    $region60: #{gru_model_forward.1} parent=1 // pred_region
      %111 = dma.done [#allocation8], 6144
    $region61: #{gru_model_forward.1} parent=1 // pred_fallthru
      _
    // Predicated region
    $region62: #{gru_model_forward.1} parent=1 // pred_check
      _
    $region63: #{gru_model_forward.1} parent=1 // pred_check_branch
      %113 = sbr.rel (0) target = $region65
    $region64: #{gru_model_forward.1} parent=1 // pred_region
      %115 = dma.done [#allocation8], 2048
    $region65: #{gru_model_forward.1} parent=1 // pred_fallthru
      _
    %v116 = vld [vmem:[%s0] sm:$0xff]
    %v117 = vld [vmem:[%s0 + $0x8] sm:$0xff]
    %v118 = vld [vmem:[%s0 + $0x10] sm:$0xff]
    %v119 = vld [vmem:[%s0 + $0x18] sm:$0xff]
    %v120 = vld [vmem:[%s0 + $0x20] sm:$0xff]
    %v121 = vld [vmem:[%s0 + $0x28] sm:$0xff]
    %v122 = vld [vmem:[%s0 + $0x30] sm:$0xff]
    %v123 = vld [vmem:[%s0 + $0x38] sm:$0xff]
    %v124 = vld [vmem:[#allocation2] sm:$0xff]
    %v125 = vld [vmem:[#allocation2 + $0x8] sm:$0xff]
    %v126 = vld [vmem:[#allocation2 + $0x10] sm:$0xff]
    %v127 = vld [vmem:[#allocation2 + $0x18] sm:$0xff]
    %v128 = vld [vmem:[#allocation2 + $0x20] sm:$0xff]
    %v129 = vld [vmem:[#allocation2 + $0x28] sm:$0xff]
    %v130 = vld [vmem:[#allocation2 + $0x30] sm:$0xff]
    %v131 = vld [vmem:[#allocation2 + $0x38] sm:$0xff]
    %v132 = vld [vmem:[#allocation2 + $0x40] sm:$0xff]
    %v133 = vld [vmem:[#allocation2 + $0x48] sm:$0xff]
    %v134 = vld [vmem:[#allocation2 + $0x50] sm:$0xff]
    %v135 = vld [vmem:[#allocation2 + $0x58] sm:$0xff]
    %v136 = vld [vmem:[#allocation2 + $0x60] sm:$0xff]
    %v137 = vld [vmem:[#allocation2 + $0x68] sm:$0xff]
    %v138 = vld [vmem:[#allocation2 + $0x70] sm:$0xff]
    %v139 = vld [vmem:[#allocation2 + $0x78] sm:$0xff]
    %v140 = vld [vmem:[#allocation2 + $0x80] sm:$0xff]
    %v141 = vld [vmem:[#allocation2 + $0x88] sm:$0xff]
    %v142 = vld [vmem:[#allocation2 + $0x90] sm:$0xff]
    %v143 = vld [vmem:[#allocation2 + $0x98] sm:$0xff]
    %v144 = vld [vmem:[#allocation2 + $0xa0] sm:$0xff]
    %v145 = vld [vmem:[#allocation2 + $0xa8] sm:$0xff]
    %v146 = vld [vmem:[#allocation2 + $0xb0] sm:$0xff]
    %v147 = vld [vmem:[#allocation2 + $0xb8] sm:$0xff]
    %v148 = vld [vmem:[#allocation2 + $0xc0] sm:$0xff]
    %v149 = vld [vmem:[#allocation2 + $0xc8] sm:$0xff]
    %v150 = vld [vmem:[#allocation2 + $0xd0] sm:$0xff]
    %v151 = vld [vmem:[#allocation2 + $0xd8] sm:$0xff]
    %v152 = vld [vmem:[#allocation2 + $0xe0] sm:$0xff]
    %v153 = vld [vmem:[#allocation2 + $0xe8] sm:$0xff]
    %v154 = vld [vmem:[#allocation2 + $0xf0] sm:$0xff]
    %v155 = vld [vmem:[#allocation2 + $0xf8] sm:$0xff]
    %v156 = vld [vmem:[#allocation2 + $0x100] sm:$0xff]
    %v157 = vld [vmem:[#allocation2 + $0x108] sm:$0xff]
    %v158 = vld [vmem:[#allocation2 + $0x110] sm:$0xff]
    %v159 = vld [vmem:[#allocation2 + $0x118] sm:$0xff]
    %v160 = vld [vmem:[#allocation2 + $0x120] sm:$0xff]
    %v161 = vld [vmem:[#allocation2 + $0x128] sm:$0xff]
    %v162 = vld [vmem:[#allocation2 + $0x130] sm:$0xff]
    %v163 = vld [vmem:[#allocation2 + $0x138] sm:$0xff]
    %v164 = vld [vmem:[#allocation2 + $0x140] sm:$0xff]
    %v165 = vld [vmem:[#allocation2 + $0x148] sm:$0xff]
    %v166 = vld [vmem:[#allocation2 + $0x150] sm:$0xff]
    %v167 = vld [vmem:[#allocation2 + $0x158] sm:$0xff]
    %v168 = vld [vmem:[#allocation2 + $0x160] sm:$0xff]
    %v169 = vld [vmem:[#allocation2 + $0x168] sm:$0xff]
    %v170 = vld [vmem:[#allocation2 + $0x170] sm:$0xff]
    %v171 = vld [vmem:[#allocation2 + $0x178] sm:$0xff]
    %v172 = vld [vmem:[%s2] sm:$0x7]
    %v174 = vperm.slane %v172, 0
    %v175 = vperm.slane %v172, 1
    %v176 = vperm.slane %v172, 2
    %180 = vmatpush.msra.mxu0 %v169
    %181 = vmatpush.msra.mxu0 %v166
    %182 = vmatpush.msra.mxu0 %v163
    %183 = vmatpush.msra.mxu0 %v160
    %184 = vmatpush.msra.mxu0 %v157
    %185 = vmatpush.msra.mxu0 %v154
    %186 = vmatpush.msra.mxu0 %v151
    %187 = vmatpush.msra.mxu0 %v148
    %188 = vmatpush.msra.mxu0 %v145
    %189 = vmatpush.msra.mxu0 %v142
    %190 = vmatpush.msra.mxu0 %v139
    %191 = vmatpush.msra.mxu0 %v136
    %192 = vmatpush.msra.mxu0 %v133
    %193 = vmatpush.msra.mxu0 %v130
    %194 = vmatpush.msra.mxu0 %v127
    %195 = vmatpush.msra.mxu0 %v124
    %196 = vmatmul.f32.gmra.mxu0 %v116
    %v197 = vpop.f32.mrf.mxu0
    %v198 = vadd.f32 %v174, %v197
    %199 = vmatmul.f32.gmra.mxu0 %v117
    %v200 = vpop.f32.mrf.mxu0
    %v201 = vadd.f32 %v174, %v200
    %202 = vmatmul.f32.gmra.mxu0 %v118
    %v203 = vpop.f32.mrf.mxu0
    %v204 = vadd.f32 %v174, %v203
    %205 = vmatmul.f32.gmra.mxu0 %v119
    %v206 = vpop.f32.mrf.mxu0
    %v207 = vadd.f32 %v174, %v206
    %208 = vmatmul.f32.gmra.mxu0 %v120
    %v209 = vpop.f32.mrf.mxu0
    %v210 = vadd.f32 %v174, %v209
    %211 = vmatmul.f32.gmra.mxu0 %v121
    %v212 = vpop.f32.mrf.mxu0
    %v213 = vadd.f32 %v174, %v212
    %214 = vmatmul.f32.gmra.mxu0 %v122
    %v215 = vpop.f32.mrf.mxu0
    %v216 = vadd.f32 %v174, %v215
    %217 = vmatmul.f32.gmra.mxu0 %v123
    %v218 = vpop.f32.mrf.mxu0
    %v219 = vadd.f32 %v174, %v218
    %220 = vdwg.mxu0
    %221 = vmatpush.msra.mxu0 %v170
    %222 = vmatpush.msra.mxu0 %v167
    %223 = vmatpush.msra.mxu0 %v164
    %224 = vmatpush.msra.mxu0 %v161
    %225 = vmatpush.msra.mxu0 %v158
    %226 = vmatpush.msra.mxu0 %v155
    %227 = vmatpush.msra.mxu0 %v152
    %228 = vmatpush.msra.mxu0 %v149
    %229 = vmatpush.msra.mxu0 %v146
    %230 = vmatpush.msra.mxu0 %v143
    %231 = vmatpush.msra.mxu0 %v140
    %232 = vmatpush.msra.mxu0 %v137
    %233 = vmatpush.msra.mxu0 %v134
    %234 = vmatpush.msra.mxu0 %v131
    %235 = vmatpush.msra.mxu0 %v128
    %236 = vmatpush.msra.mxu0 %v125
    %237 = vmatmul.f32.gmra.mxu0 %v116
    %v238 = vpop.f32.mrf.mxu0
    %v239 = vadd.f32 %v175, %v238
    %240 = vmatmul.f32.gmra.mxu0 %v117
    %v241 = vpop.f32.mrf.mxu0
    %v242 = vadd.f32 %v175, %v241
    %243 = vmatmul.f32.gmra.mxu0 %v118
    %v244 = vpop.f32.mrf.mxu0
    %v245 = vadd.f32 %v175, %v244
    %246 = vmatmul.f32.gmra.mxu0 %v119
    %v247 = vpop.f32.mrf.mxu0
    %v248 = vadd.f32 %v175, %v247
    %249 = vmatmul.f32.gmra.mxu0 %v120
    %v250 = vpop.f32.mrf.mxu0
    %v251 = vadd.f32 %v175, %v250
    %252 = vmatmul.f32.gmra.mxu0 %v121
    %v253 = vpop.f32.mrf.mxu0
    %v254 = vadd.f32 %v175, %v253
    %255 = vmatmul.f32.gmra.mxu0 %v122
    %v256 = vpop.f32.mrf.mxu0
    %v257 = vadd.f32 %v175, %v256
    %258 = vmatmul.f32.gmra.mxu0 %v123
    %v259 = vpop.f32.mrf.mxu0
    %v260 = vadd.f32 %v175, %v259
    %261 = vdwg.mxu0
    %262 = vmatpush.msra.mxu0 %v171
    %263 = vmatpush.msra.mxu0 %v168
    %264 = vmatpush.msra.mxu0 %v165
    %265 = vmatpush.msra.mxu0 %v162
    %266 = vmatpush.msra.mxu0 %v159
    %267 = vmatpush.msra.mxu0 %v156
    %268 = vmatpush.msra.mxu0 %v153
    %269 = vmatpush.msra.mxu0 %v150
    %270 = vmatpush.msra.mxu0 %v147
    %271 = vmatpush.msra.mxu0 %v144
    %272 = vmatpush.msra.mxu0 %v141
    %273 = vmatpush.msra.mxu0 %v138
    %274 = vmatpush.msra.mxu0 %v135
    %275 = vmatpush.msra.mxu0 %v132
    %276 = vmatpush.msra.mxu0 %v129
    %277 = vmatpush.msra.mxu0 %v126
    %278 = vmatmul.f32.gmra.mxu0 %v116
    %v279 = vpop.f32.mrf.mxu0
    %v280 = vadd.f32 %v176, %v279
    %281 = vmatmul.f32.gmra.mxu0 %v117
    %v282 = vpop.f32.mrf.mxu0
    %v283 = vadd.f32 %v176, %v282
    %284 = vmatmul.f32.gmra.mxu0 %v118
    %v285 = vpop.f32.mrf.mxu0
    %v286 = vadd.f32 %v176, %v285
    %287 = vmatmul.f32.gmra.mxu0 %v119
    %v288 = vpop.f32.mrf.mxu0
    %v289 = vadd.f32 %v176, %v288
    %290 = vmatmul.f32.gmra.mxu0 %v120
    %v291 = vpop.f32.mrf.mxu0
    %v292 = vadd.f32 %v176, %v291
    %293 = vmatmul.f32.gmra.mxu0 %v121
    %v294 = vpop.f32.mrf.mxu0
    %v295 = vadd.f32 %v176, %v294
    %296 = vmatmul.f32.gmra.mxu0 %v122
    %v297 = vpop.f32.mrf.mxu0
    %v298 = vadd.f32 %v176, %v297
    %299 = vmatmul.f32.gmra.mxu0 %v123
    %v300 = vpop.f32.mrf.mxu0
    %v301 = vadd.f32 %v176, %v300
    %302 = vdwg.mxu0
    %v303 = vld [vmem:[%s4] sm:$0x7]
    %v305 = vperm.slane %v303, 0
    %v306 = vperm.slane %v303, 1
    %v307 = vperm.slane %v303, 2
    %v311 = vld [vmem:[%s7] sm:$0x7]
    %v313 = vperm.slane %v311, 0
    %v314 = vperm.slane %v311, 1
    %v315 = vperm.slane %v311, 2
    %v319 = vld [vmem:[%s8] sm:$0x7]
    %v321 = vperm.slane %v319, 0
    %v322 = vperm.slane %v319, 1
    %v323 = vperm.slane %v319, 2
    %v327 = vld [vmem:[#allocation4] sm:$0xff]
    %v328 = vld [vmem:[#allocation4 + $0x8] sm:$0xff]
    %v329 = vld [vmem:[#allocation4 + $0x10] sm:$0xff]
    %v330 = vld [vmem:[#allocation4 + $0x18] sm:$0xff]
    %v331 = vld [vmem:[#allocation4 + $0x20] sm:$0xff]
    %v332 = vld [vmem:[#allocation4 + $0x28] sm:$0xff]
    %v333 = vld [vmem:[#allocation4 + $0x30] sm:$0xff]
    %v334 = vld [vmem:[#allocation4 + $0x38] sm:$0xff]
    %v335 = vld [vmem:[#allocation4 + $0x40] sm:$0xff]
    %v336 = vld [vmem:[#allocation4 + $0x48] sm:$0xff]
    %v337 = vld [vmem:[#allocation4 + $0x50] sm:$0xff]
    %v338 = vld [vmem:[#allocation4 + $0x58] sm:$0xff]
    %v339 = vld [vmem:[#allocation4 + $0x60] sm:$0xff]
    %v340 = vld [vmem:[#allocation4 + $0x68] sm:$0xff]
    %v341 = vld [vmem:[#allocation4 + $0x70] sm:$0xff]
    %v342 = vld [vmem:[#allocation4 + $0x78] sm:$0xff]
    %v343 = vld [vmem:[#allocation4 + $0x80] sm:$0xff]
    %v344 = vld [vmem:[#allocation4 + $0x88] sm:$0xff]
    %v345 = vld [vmem:[#allocation4 + $0x90] sm:$0xff]
    %v346 = vld [vmem:[#allocation4 + $0x98] sm:$0xff]
    %v347 = vld [vmem:[#allocation4 + $0xa0] sm:$0xff]
    %v348 = vld [vmem:[#allocation4 + $0xa8] sm:$0xff]
    %v349 = vld [vmem:[#allocation4 + $0xb0] sm:$0xff]
    %v350 = vld [vmem:[#allocation4 + $0xb8] sm:$0xff]
    %v351 = vld [vmem:[#allocation4 + $0xc0] sm:$0xff]
    %v352 = vld [vmem:[#allocation4 + $0xc8] sm:$0xff]
    %v353 = vld [vmem:[#allocation4 + $0xd0] sm:$0xff]
    %v354 = vld [vmem:[#allocation4 + $0xd8] sm:$0xff]
    %v355 = vld [vmem:[#allocation4 + $0xe0] sm:$0xff]
    %v356 = vld [vmem:[#allocation4 + $0xe8] sm:$0xff]
    %v357 = vld [vmem:[#allocation4 + $0xf0] sm:$0xff]
    %v358 = vld [vmem:[#allocation4 + $0xf8] sm:$0xff]
    %v359 = vld [vmem:[#allocation4 + $0x100] sm:$0xff]
    %v360 = vld [vmem:[#allocation4 + $0x108] sm:$0xff]
    %v361 = vld [vmem:[#allocation4 + $0x110] sm:$0xff]
    %v362 = vld [vmem:[#allocation4 + $0x118] sm:$0xff]
    %v363 = vld [vmem:[#allocation4 + $0x120] sm:$0xff]
    %v364 = vld [vmem:[#allocation4 + $0x128] sm:$0xff]
    %v365 = vld [vmem:[#allocation4 + $0x130] sm:$0xff]
    %v366 = vld [vmem:[#allocation4 + $0x138] sm:$0xff]
    %v367 = vld [vmem:[#allocation4 + $0x140] sm:$0xff]
    %v368 = vld [vmem:[#allocation4 + $0x148] sm:$0xff]
    %v369 = vld [vmem:[#allocation4 + $0x150] sm:$0xff]
    %v370 = vld [vmem:[#allocation4 + $0x158] sm:$0xff]
    %v371 = vld [vmem:[#allocation4 + $0x160] sm:$0xff]
    %v372 = vld [vmem:[#allocation4 + $0x168] sm:$0xff]
    %v373 = vld [vmem:[#allocation4 + $0x170] sm:$0xff]
    %v374 = vld [vmem:[#allocation4 + $0x178] sm:$0xff]
    %375 = vmatpush.msra.mxu0 %v372
    %376 = vmatpush.msra.mxu0 %v369
    %377 = vmatpush.msra.mxu0 %v366
    %378 = vmatpush.msra.mxu0 %v363
    %379 = vmatpush.msra.mxu0 %v360
    %380 = vmatpush.msra.mxu0 %v357
    %381 = vmatpush.msra.mxu0 %v354
    %382 = vmatpush.msra.mxu0 %v351
    %383 = vmatpush.msra.mxu0 %v348
    %384 = vmatpush.msra.mxu0 %v345
    %385 = vmatpush.msra.mxu0 %v342
    %386 = vmatpush.msra.mxu0 %v339
    %387 = vmatpush.msra.mxu0 %v336
    %388 = vmatpush.msra.mxu0 %v333
    %389 = vmatpush.msra.mxu0 %v330
    %390 = vmatpush.msra.mxu0 %v327
    %391 = vmatmul.f32.gmra.mxu0 0.0
    %v392 = vpop.f32.mrf.mxu0
    %v393 = vadd.f32 %v305, %v392
    %394 = vdwg.mxu0
    %395 = vmatpush.msra.mxu0 %v373
    %396 = vmatpush.msra.mxu0 %v370
    %397 = vmatpush.msra.mxu0 %v367
    %398 = vmatpush.msra.mxu0 %v364
    %399 = vmatpush.msra.mxu0 %v361
    %400 = vmatpush.msra.mxu0 %v358
    %401 = vmatpush.msra.mxu0 %v355
    %402 = vmatpush.msra.mxu0 %v352
    %403 = vmatpush.msra.mxu0 %v349
    %404 = vmatpush.msra.mxu0 %v346
    %405 = vmatpush.msra.mxu0 %v343
    %406 = vmatpush.msra.mxu0 %v340
    %407 = vmatpush.msra.mxu0 %v337
    %408 = vmatpush.msra.mxu0 %v334
    %409 = vmatpush.msra.mxu0 %v331
    %410 = vmatpush.msra.mxu0 %v328
    %411 = vmatmul.f32.gmra.mxu0 0.0
    %v412 = vpop.f32.mrf.mxu0
    %v413 = vadd.f32 %v306, %v412
    %414 = vdwg.mxu0
    %415 = vmatpush.msra.mxu0 %v374
    %416 = vmatpush.msra.mxu0 %v371
    %417 = vmatpush.msra.mxu0 %v368
    %418 = vmatpush.msra.mxu0 %v365
    %419 = vmatpush.msra.mxu0 %v362
    %420 = vmatpush.msra.mxu0 %v359
    %421 = vmatpush.msra.mxu0 %v356
    %422 = vmatpush.msra.mxu0 %v353
    %423 = vmatpush.msra.mxu0 %v350
    %424 = vmatpush.msra.mxu0 %v347
    %425 = vmatpush.msra.mxu0 %v344
    %426 = vmatpush.msra.mxu0 %v341
    %427 = vmatpush.msra.mxu0 %v338
    %428 = vmatpush.msra.mxu0 %v335
    %429 = vmatpush.msra.mxu0 %v332
    %430 = vmatpush.msra.mxu0 %v329
    %431 = vmatmul.f32.gmra.mxu0 0.0
    %v432 = vpop.f32.mrf.mxu0
    %v433 = vadd.f32 %v307, %v432
    %434 = vdwg.mxu0
    %v435 = vadd.f32 %v198, %v393
    %v436 = vxor.u32 %v435, 2147483648
    %v437 = vmul.f32 %v436, 1.442695
    %v438 = vpow.pop %v437
    %v439 = vadd.f32 %v438, 1.0
    %v440 = vrcp.pop %v439
    %v441 = vmul.f32 %v439, %v440
    %v442 = vsub.f32 1.0, %v441
    %v443 = vmul.f32 %v440, %v442
    %v444 = vadd.f32 %v440, %v443
    %vm445 = vweird.f32 %v439
    %vm446 = vweird.f32 %v440
    %vm447 = vmor %vm445, %vm446
    %v448 = vsel %vm447, %v440, %v444
    %v449 = vand.u32 2147483647, %v439
    %vm450 = vcmp.eq.f32.partialorder %v449, 8.507059e+37
    %v451 = vand.u32 %v439, 2147483648
    %v452 = vor.u32 1.1754944e-38, %v451
    %v453 = vsel %vm450, %v452, %v448
    %v454 = vmul.f32 1.0, %v453
    %v455 = vadd.f32 %v239, %v413
    %v456 = vxor.u32 %v455, 2147483648
    %v457 = vmul.f32 %v456, 1.442695
    %v458 = vpow.pop %v457
    %v459 = vadd.f32 %v458, 1.0
    %v460 = vrcp.pop %v459
    %v461 = vmul.f32 %v459, %v460
    %v462 = vsub.f32 1.0, %v461
    %v463 = vmul.f32 %v460, %v462
    %v464 = vadd.f32 %v460, %v463
    %vm465 = vweird.f32 %v459
    %vm466 = vweird.f32 %v460
    %vm467 = vmor %vm465, %vm466
    %v468 = vsel %vm467, %v460, %v464
    %v469 = vand.u32 2147483647, %v459
    %vm470 = vcmp.eq.f32.partialorder %v469, 8.507059e+37
    %v471 = vand.u32 %v459, 2147483648
    %v472 = vor.u32 1.1754944e-38, %v471
    %v473 = vsel %vm470, %v472, %v468
    %v474 = vmul.f32 1.0, %v473
    %v475 = vmul.f32 %v454, %v433
    %v476 = vadd.f32 %v280, %v475
    %v477 = vtanh.pop %v476
    %v478 = vsub.f32 1.0, %v474
    %v479 = vmul.f32 %v478, %v477
    %v480 = vmul.f32 %v474, 0.0
    %v481 = vadd.f32 %v479, %v480
    %v482 = vld [vmem:[#allocation6] sm:$0xff]
    %v483 = vld [vmem:[#allocation6 + $0x8] sm:$0xff]
    %v484 = vld [vmem:[#allocation6 + $0x10] sm:$0xff]
    %v485 = vld [vmem:[#allocation6 + $0x18] sm:$0xff]
    %v486 = vld [vmem:[#allocation6 + $0x20] sm:$0xff]
    %v487 = vld [vmem:[#allocation6 + $0x28] sm:$0xff]
    %v488 = vld [vmem:[#allocation6 + $0x30] sm:$0xff]
    %v489 = vld [vmem:[#allocation6 + $0x38] sm:$0xff]
    %v490 = vld [vmem:[#allocation6 + $0x40] sm:$0xff]
    %v491 = vld [vmem:[#allocation6 + $0x48] sm:$0xff]
    %v492 = vld [vmem:[#allocation6 + $0x50] sm:$0xff]
    %v493 = vld [vmem:[#allocation6 + $0x58] sm:$0xff]
    %v494 = vld [vmem:[#allocation6 + $0x60] sm:$0xff]
    %v495 = vld [vmem:[#allocation6 + $0x68] sm:$0xff]
    %v496 = vld [vmem:[#allocation6 + $0x70] sm:$0xff]
    %v497 = vld [vmem:[#allocation6 + $0x78] sm:$0xff]
    %v498 = vld [vmem:[#allocation6 + $0x80] sm:$0xff]
    %v499 = vld [vmem:[#allocation6 + $0x88] sm:$0xff]
    %v500 = vld [vmem:[#allocation6 + $0x90] sm:$0xff]
    %v501 = vld [vmem:[#allocation6 + $0x98] sm:$0xff]
    %v502 = vld [vmem:[#allocation6 + $0xa0] sm:$0xff]
    %v503 = vld [vmem:[#allocation6 + $0xa8] sm:$0xff]
    %v504 = vld [vmem:[#allocation6 + $0xb0] sm:$0xff]
    %v505 = vld [vmem:[#allocation6 + $0xb8] sm:$0xff]
    %v506 = vld [vmem:[#allocation6 + $0xc0] sm:$0xff]
    %v507 = vld [vmem:[#allocation6 + $0xc8] sm:$0xff]
    %v508 = vld [vmem:[#allocation6 + $0xd0] sm:$0xff]
    %v509 = vld [vmem:[#allocation6 + $0xd8] sm:$0xff]
    %v510 = vld [vmem:[#allocation6 + $0xe0] sm:$0xff]
    %v511 = vld [vmem:[#allocation6 + $0xe8] sm:$0xff]
    %v512 = vld [vmem:[#allocation6 + $0xf0] sm:$0xff]
    %v513 = vld [vmem:[#allocation6 + $0xf8] sm:$0xff]
    %v514 = vld [vmem:[#allocation6 + $0x100] sm:$0xff]
    %v515 = vld [vmem:[#allocation6 + $0x108] sm:$0xff]
    %v516 = vld [vmem:[#allocation6 + $0x110] sm:$0xff]
    %v517 = vld [vmem:[#allocation6 + $0x118] sm:$0xff]
    %v518 = vld [vmem:[#allocation6 + $0x120] sm:$0xff]
    %v519 = vld [vmem:[#allocation6 + $0x128] sm:$0xff]
    %v520 = vld [vmem:[#allocation6 + $0x130] sm:$0xff]
    %v521 = vld [vmem:[#allocation6 + $0x138] sm:$0xff]
    %v522 = vld [vmem:[#allocation6 + $0x140] sm:$0xff]
    %v523 = vld [vmem:[#allocation6 + $0x148] sm:$0xff]
    %v524 = vld [vmem:[#allocation6 + $0x150] sm:$0xff]
    %v525 = vld [vmem:[#allocation6 + $0x158] sm:$0xff]
    %v526 = vld [vmem:[#allocation6 + $0x160] sm:$0xff]
    %v527 = vld [vmem:[#allocation6 + $0x168] sm:$0xff]
    %v528 = vld [vmem:[#allocation6 + $0x170] sm:$0xff]
    %v529 = vld [vmem:[#allocation6 + $0x178] sm:$0xff]
    %530 = vmatpush.msra.mxu0 %v527
    %531 = vmatpush.msra.mxu0 %v524
    %532 = vmatpush.msra.mxu0 %v521
    %533 = vmatpush.msra.mxu0 %v518
    %534 = vmatpush.msra.mxu0 %v515
    %535 = vmatpush.msra.mxu0 %v512
    %536 = vmatpush.msra.mxu0 %v509
    %537 = vmatpush.msra.mxu0 %v506
    %538 = vmatpush.msra.mxu0 %v503
    %539 = vmatpush.msra.mxu0 %v500
    %540 = vmatpush.msra.mxu0 %v497
    %541 = vmatpush.msra.mxu0 %v494
    %542 = vmatpush.msra.mxu0 %v491
    %543 = vmatpush.msra.mxu0 %v488
    %544 = vmatpush.msra.mxu0 %v485
    %545 = vmatpush.msra.mxu0 %v482
    %546 = vmatmul.f32.gmra.mxu0 %v481
    %v547 = vpop.f32.mrf.mxu0
    %v548 = vadd.f32 %v313, %v547
    %549 = vdwg.mxu0
    %550 = vmatpush.msra.mxu0 %v528
    %551 = vmatpush.msra.mxu0 %v525
    %552 = vmatpush.msra.mxu0 %v522
    %553 = vmatpush.msra.mxu0 %v519
    %554 = vmatpush.msra.mxu0 %v516
    %555 = vmatpush.msra.mxu0 %v513
    %556 = vmatpush.msra.mxu0 %v510
    %557 = vmatpush.msra.mxu0 %v507
    %558 = vmatpush.msra.mxu0 %v504
    %559 = vmatpush.msra.mxu0 %v501
    %560 = vmatpush.msra.mxu0 %v498
    %561 = vmatpush.msra.mxu0 %v495
    %562 = vmatpush.msra.mxu0 %v492
    %563 = vmatpush.msra.mxu0 %v489
    %564 = vmatpush.msra.mxu0 %v486
    %565 = vmatpush.msra.mxu0 %v483
    %566 = vmatmul.f32.gmra.mxu0 %v481
    %v567 = vpop.f32.mrf.mxu0
    %v568 = vadd.f32 %v314, %v567
    %569 = vdwg.mxu0
    %570 = vmatpush.msra.mxu0 %v529
    %571 = vmatpush.msra.mxu0 %v526
    %572 = vmatpush.msra.mxu0 %v523
    %573 = vmatpush.msra.mxu0 %v520
    %574 = vmatpush.msra.mxu0 %v517
    %575 = vmatpush.msra.mxu0 %v514
    %576 = vmatpush.msra.mxu0 %v511
    %577 = vmatpush.msra.mxu0 %v508
    %578 = vmatpush.msra.mxu0 %v505
    %579 = vmatpush.msra.mxu0 %v502
    %580 = vmatpush.msra.mxu0 %v499
    %581 = vmatpush.msra.mxu0 %v496
    %582 = vmatpush.msra.mxu0 %v493
    %583 = vmatpush.msra.mxu0 %v490
    %584 = vmatpush.msra.mxu0 %v487
    %585 = vmatpush.msra.mxu0 %v484
    %586 = vmatmul.f32.gmra.mxu0 %v481
    %v587 = vpop.f32.mrf.mxu0
    %v588 = vadd.f32 %v315, %v587
    %589 = vdwg.mxu0
    %v590 = vld [vmem:[#allocation7] sm:$0xff]
    %v591 = vld [vmem:[#allocation7 + $0x8] sm:$0xff]
    %v592 = vld [vmem:[#allocation7 + $0x10] sm:$0xff]
    %v593 = vld [vmem:[#allocation7 + $0x18] sm:$0xff]
    %v594 = vld [vmem:[#allocation7 + $0x20] sm:$0xff]
    %v595 = vld [vmem:[#allocation7 + $0x28] sm:$0xff]
    %v596 = vld [vmem:[#allocation7 + $0x30] sm:$0xff]
    %v597 = vld [vmem:[#allocation7 + $0x38] sm:$0xff]
    %v598 = vld [vmem:[#allocation7 + $0x40] sm:$0xff]
    %v599 = vld [vmem:[#allocation7 + $0x48] sm:$0xff]
    %v600 = vld [vmem:[#allocation7 + $0x50] sm:$0xff]
    %v601 = vld [vmem:[#allocation7 + $0x58] sm:$0xff]
    %v602 = vld [vmem:[#allocation7 + $0x60] sm:$0xff]
    %v603 = vld [vmem:[#allocation7 + $0x68] sm:$0xff]
    %v604 = vld [vmem:[#allocation7 + $0x70] sm:$0xff]
    %v605 = vld [vmem:[#allocation7 + $0x78] sm:$0xff]
    %v606 = vld [vmem:[#allocation7 + $0x80] sm:$0xff]
    %v607 = vld [vmem:[#allocation7 + $0x88] sm:$0xff]
    %v608 = vld [vmem:[#allocation7 + $0x90] sm:$0xff]
    %v609 = vld [vmem:[#allocation7 + $0x98] sm:$0xff]
    %v610 = vld [vmem:[#allocation7 + $0xa0] sm:$0xff]
    %v611 = vld [vmem:[#allocation7 + $0xa8] sm:$0xff]
    %v612 = vld [vmem:[#allocation7 + $0xb0] sm:$0xff]
    %v613 = vld [vmem:[#allocation7 + $0xb8] sm:$0xff]
    %v614 = vld [vmem:[#allocation7 + $0xc0] sm:$0xff]
    %v615 = vld [vmem:[#allocation7 + $0xc8] sm:$0xff]
    %v616 = vld [vmem:[#allocation7 + $0xd0] sm:$0xff]
    %v617 = vld [vmem:[#allocation7 + $0xd8] sm:$0xff]
    %v618 = vld [vmem:[#allocation7 + $0xe0] sm:$0xff]
    %v619 = vld [vmem:[#allocation7 + $0xe8] sm:$0xff]
    %v620 = vld [vmem:[#allocation7 + $0xf0] sm:$0xff]
    %v621 = vld [vmem:[#allocation7 + $0xf8] sm:$0xff]
    %v622 = vld [vmem:[#allocation7 + $0x100] sm:$0xff]
    %v623 = vld [vmem:[#allocation7 + $0x108] sm:$0xff]
    %v624 = vld [vmem:[#allocation7 + $0x110] sm:$0xff]
    %v625 = vld [vmem:[#allocation7 + $0x118] sm:$0xff]
    %v626 = vld [vmem:[#allocation7 + $0x120] sm:$0xff]
    %v627 = vld [vmem:[#allocation7 + $0x128] sm:$0xff]
    %v628 = vld [vmem:[#allocation7 + $0x130] sm:$0xff]
    %v629 = vld [vmem:[#allocation7 + $0x138] sm:$0xff]
    %v630 = vld [vmem:[#allocation7 + $0x140] sm:$0xff]
    %v631 = vld [vmem:[#allocation7 + $0x148] sm:$0xff]
    %v632 = vld [vmem:[#allocation7 + $0x150] sm:$0xff]
    %v633 = vld [vmem:[#allocation7 + $0x158] sm:$0xff]
    %v634 = vld [vmem:[#allocation7 + $0x160] sm:$0xff]
    %v635 = vld [vmem:[#allocation7 + $0x168] sm:$0xff]
    %v636 = vld [vmem:[#allocation7 + $0x170] sm:$0xff]
    %v637 = vld [vmem:[#allocation7 + $0x178] sm:$0xff]
    %638 = vmatpush.msra.mxu0 %v635
    %639 = vmatpush.msra.mxu0 %v632
    %640 = vmatpush.msra.mxu0 %v629
    %641 = vmatpush.msra.mxu0 %v626
    %642 = vmatpush.msra.mxu0 %v623
    %643 = vmatpush.msra.mxu0 %v620
    %644 = vmatpush.msra.mxu0 %v617
    %645 = vmatpush.msra.mxu0 %v614
    %646 = vmatpush.msra.mxu0 %v611
    %647 = vmatpush.msra.mxu0 %v608
    %648 = vmatpush.msra.mxu0 %v605
    %649 = vmatpush.msra.mxu0 %v602
    %650 = vmatpush.msra.mxu0 %v599
    %651 = vmatpush.msra.mxu0 %v596
    %652 = vmatpush.msra.mxu0 %v593
    %653 = vmatpush.msra.mxu0 %v590
    %654 = vmatmul.f32.gmra.mxu0 0.0
    %v655 = vpop.f32.mrf.mxu0
    %v656 = vadd.f32 %v321, %v655
    %657 = vdwg.mxu0
    %658 = vmatpush.msra.mxu0 %v636
    %659 = vmatpush.msra.mxu0 %v633
    %660 = vmatpush.msra.mxu0 %v630
    %661 = vmatpush.msra.mxu0 %v627
    %662 = vmatpush.msra.mxu0 %v624
    %663 = vmatpush.msra.mxu0 %v621
    %664 = vmatpush.msra.mxu0 %v618
    %665 = vmatpush.msra.mxu0 %v615
    %666 = vmatpush.msra.mxu0 %v612
    %667 = vmatpush.msra.mxu0 %v609
    %668 = vmatpush.msra.mxu0 %v606
    %669 = vmatpush.msra.mxu0 %v603
    %670 = vmatpush.msra.mxu0 %v600
    %671 = vmatpush.msra.mxu0 %v597
    %672 = vmatpush.msra.mxu0 %v594
    %673 = vmatpush.msra.mxu0 %v591
    %674 = vmatmul.f32.gmra.mxu0 0.0
    %v675 = vpop.f32.mrf.mxu0
    %v676 = vadd.f32 %v322, %v675
    %677 = vdwg.mxu0
    %678 = vmatpush.msra.mxu0 %v637
    %679 = vmatpush.msra.mxu0 %v634
    %680 = vmatpush.msra.mxu0 %v631
    %681 = vmatpush.msra.mxu0 %v628
    %682 = vmatpush.msra.mxu0 %v625
    %683 = vmatpush.msra.mxu0 %v622
    %684 = vmatpush.msra.mxu0 %v619
    %685 = vmatpush.msra.mxu0 %v616
    %686 = vmatpush.msra.mxu0 %v613
    %687 = vmatpush.msra.mxu0 %v610
    %688 = vmatpush.msra.mxu0 %v607
    %689 = vmatpush.msra.mxu0 %v604
    %690 = vmatpush.msra.mxu0 %v601
    %691 = vmatpush.msra.mxu0 %v598
    %692 = vmatpush.msra.mxu0 %v595
    %693 = vmatpush.msra.mxu0 %v592
    %694 = vmatmul.f32.gmra.mxu0 0.0
    %v695 = vpop.f32.mrf.mxu0
    %v696 = vadd.f32 %v323, %v695
    %697 = vdwg.mxu0
    %v698 = vadd.f32 %v548, %v656
    %v699 = vxor.u32 %v698, 2147483648
    %v700 = vmul.f32 %v699, 1.442695
    %v701 = vpow.pop %v700
    %v702 = vadd.f32 %v701, 1.0
    %v703 = vrcp.pop %v702
    %v704 = vmul.f32 %v702, %v703
    %v705 = vsub.f32 1.0, %v704
    %v706 = vmul.f32 %v703, %v705
    %v707 = vadd.f32 %v703, %v706
    %vm708 = vweird.f32 %v702
    %vm709 = vweird.f32 %v703
    %vm710 = vmor %vm708, %vm709
    %v711 = vsel %vm710, %v703, %v707
    %v712 = vand.u32 2147483647, %v702
    %vm713 = vcmp.eq.f32.partialorder %v712, 8.507059e+37
    %v714 = vand.u32 %v702, 2147483648
    %v715 = vor.u32 1.1754944e-38, %v714
    %v716 = vsel %vm713, %v715, %v711
    %v717 = vmul.f32 1.0, %v716
    %v718 = vadd.f32 %v568, %v676
    %v719 = vxor.u32 %v718, 2147483648
    %v720 = vmul.f32 %v719, 1.442695
    %v721 = vpow.pop %v720
    %v722 = vadd.f32 %v721, 1.0
    %v723 = vrcp.pop %v722
    %v724 = vmul.f32 %v722, %v723
    %v725 = vsub.f32 1.0, %v724
    %v726 = vmul.f32 %v723, %v725
    %v727 = vadd.f32 %v723, %v726
    %vm728 = vweird.f32 %v722
    %vm729 = vweird.f32 %v723
    %vm730 = vmor %vm728, %vm729
    %v731 = vsel %vm730, %v723, %v727
    %v732 = vand.u32 2147483647, %v722
    %vm733 = vcmp.eq.f32.partialorder %v732, 8.507059e+37
    %v734 = vand.u32 %v722, 2147483648
    %v735 = vor.u32 1.1754944e-38, %v734
    %v736 = vsel %vm733, %v735, %v731
    %v737 = vmul.f32 1.0, %v736
    %v738 = vmul.f32 %v717, %v696
    %v739 = vadd.f32 %v588, %v738
    %v740 = vtanh.pop %v739
    %v741 = vsub.f32 1.0, %v737
    %v742 = vmul.f32 %v741, %v740
    %v743 = vmul.f32 %v737, 0.0
    %v744 = vadd.f32 %v742, %v743
    %745 = vmatpush.msra.mxu0 %v372
    %746 = vmatpush.msra.mxu0 %v369
    %747 = vmatpush.msra.mxu0 %v366
    %748 = vmatpush.msra.mxu0 %v363
    %749 = vmatpush.msra.mxu0 %v360
    %750 = vmatpush.msra.mxu0 %v357
    %751 = vmatpush.msra.mxu0 %v354
    %752 = vmatpush.msra.mxu0 %v351
    %753 = vmatpush.msra.mxu0 %v348
    %754 = vmatpush.msra.mxu0 %v345
    %755 = vmatpush.msra.mxu0 %v342
    %756 = vmatpush.msra.mxu0 %v339
    %757 = vmatpush.msra.mxu0 %v336
    %758 = vmatpush.msra.mxu0 %v333
    %759 = vmatpush.msra.mxu0 %v330
    %760 = vmatpush.msra.mxu0 %v327
    %761 = vmatmul.f32.gmra.mxu0 %v481
    %v762 = vpop.f32.mrf.mxu0
    %v763 = vadd.f32 %v305, %v762
    %764 = vdwg.mxu0
    %765 = vmatpush.msra.mxu0 %v373
    %766 = vmatpush.msra.mxu0 %v370
    %767 = vmatpush.msra.mxu0 %v367
    %768 = vmatpush.msra.mxu0 %v364
    %769 = vmatpush.msra.mxu0 %v361
    %770 = vmatpush.msra.mxu0 %v358
    %771 = vmatpush.msra.mxu0 %v355
    %772 = vmatpush.msra.mxu0 %v352
    %773 = vmatpush.msra.mxu0 %v349
    %774 = vmatpush.msra.mxu0 %v346
    %775 = vmatpush.msra.mxu0 %v343
    %776 = vmatpush.msra.mxu0 %v340
    %777 = vmatpush.msra.mxu0 %v337
    %778 = vmatpush.msra.mxu0 %v334
    %779 = vmatpush.msra.mxu0 %v331
    %780 = vmatpush.msra.mxu0 %v328
    %781 = vmatmul.f32.gmra.mxu0 %v481
    %v782 = vpop.f32.mrf.mxu0
    %v783 = vadd.f32 %v306, %v782
    %784 = vdwg.mxu0
    %785 = vmatpush.msra.mxu0 %v374
    %786 = vmatpush.msra.mxu0 %v371
    %787 = vmatpush.msra.mxu0 %v368
    %788 = vmatpush.msra.mxu0 %v365
    %789 = vmatpush.msra.mxu0 %v362
    %790 = vmatpush.msra.mxu0 %v359
    %791 = vmatpush.msra.mxu0 %v356
    %792 = vmatpush.msra.mxu0 %v353
    %793 = vmatpush.msra.mxu0 %v350
    %794 = vmatpush.msra.mxu0 %v347
    %795 = vmatpush.msra.mxu0 %v344
    %796 = vmatpush.msra.mxu0 %v341
    %797 = vmatpush.msra.mxu0 %v338
    %798 = vmatpush.msra.mxu0 %v335
    %799 = vmatpush.msra.mxu0 %v332
    %800 = vmatpush.msra.mxu0 %v329
    %801 = vmatmul.f32.gmra.mxu0 %v481
    %v802 = vpop.f32.mrf.mxu0
    %v803 = vadd.f32 %v307, %v802
    %804 = vdwg.mxu0
    %v805 = vadd.f32 %v201, %v763
    %v806 = vxor.u32 %v805, 2147483648
    %v807 = vmul.f32 %v806, 1.442695
    %v808 = vpow.pop %v807
    %v809 = vadd.f32 %v808, 1.0
    %v810 = vrcp.pop %v809
    %v811 = vmul.f32 %v809, %v810
    %v812 = vsub.f32 1.0, %v811
    %v813 = vmul.f32 %v810, %v812
    %v814 = vadd.f32 %v810, %v813
    %vm815 = vweird.f32 %v809
    %vm816 = vweird.f32 %v810
    %vm817 = vmor %vm815, %vm816
    %v818 = vsel %vm817, %v810, %v814
    %v819 = vand.u32 2147483647, %v809
    %vm820 = vcmp.eq.f32.partialorder %v819, 8.507059e+37
    %v821 = vand.u32 %v809, 2147483648
    %v822 = vor.u32 1.1754944e-38, %v821
    %v823 = vsel %vm820, %v822, %v818
    %v824 = vmul.f32 1.0, %v823
    %v825 = vadd.f32 %v242, %v783
    %v826 = vxor.u32 %v825, 2147483648
    %v827 = vmul.f32 %v826, 1.442695
    %v828 = vpow.pop %v827
    %v829 = vadd.f32 %v828, 1.0
    %v830 = vrcp.pop %v829
    %v831 = vmul.f32 %v829, %v830
    %v832 = vsub.f32 1.0, %v831
    %v833 = vmul.f32 %v830, %v832
    %v834 = vadd.f32 %v830, %v833
    %vm835 = vweird.f32 %v829
    %vm836 = vweird.f32 %v830
    %vm837 = vmor %vm835, %vm836
    %v838 = vsel %vm837, %v830, %v834
    %v839 = vand.u32 2147483647, %v829
    %vm840 = vcmp.eq.f32.partialorder %v839, 8.507059e+37
    %v841 = vand.u32 %v829, 2147483648
    %v842 = vor.u32 1.1754944e-38, %v841
    %v843 = vsel %vm840, %v842, %v838
    %v844 = vmul.f32 1.0, %v843
    %v845 = vmul.f32 %v824, %v803
    %v846 = vadd.f32 %v283, %v845
    %v847 = vtanh.pop %v846
    %v848 = vsub.f32 1.0, %v844
    %v849 = vmul.f32 %v848, %v847
    %v850 = vmul.f32 %v844, %v481
    %v851 = vadd.f32 %v849, %v850
    %852 = vmatpush.msra.mxu0 %v527
    %853 = vmatpush.msra.mxu0 %v524
    %854 = vmatpush.msra.mxu0 %v521
    %855 = vmatpush.msra.mxu0 %v518
    %856 = vmatpush.msra.mxu0 %v515
    %857 = vmatpush.msra.mxu0 %v512
    %858 = vmatpush.msra.mxu0 %v509
    %859 = vmatpush.msra.mxu0 %v506
    %860 = vmatpush.msra.mxu0 %v503
    %861 = vmatpush.msra.mxu0 %v500
    %862 = vmatpush.msra.mxu0 %v497
    %863 = vmatpush.msra.mxu0 %v494
    %864 = vmatpush.msra.mxu0 %v491
    %865 = vmatpush.msra.mxu0 %v488
    %866 = vmatpush.msra.mxu0 %v485
    %867 = vmatpush.msra.mxu0 %v482
    %868 = vmatmul.f32.gmra.mxu0 %v851
    %v869 = vpop.f32.mrf.mxu0
    %v870 = vadd.f32 %v313, %v869
    %871 = vdwg.mxu0
    %872 = vmatpush.msra.mxu0 %v528
    %873 = vmatpush.msra.mxu0 %v525
    %874 = vmatpush.msra.mxu0 %v522
    %875 = vmatpush.msra.mxu0 %v519
    %876 = vmatpush.msra.mxu0 %v516
    %877 = vmatpush.msra.mxu0 %v513
    %878 = vmatpush.msra.mxu0 %v510
    %879 = vmatpush.msra.mxu0 %v507
    %880 = vmatpush.msra.mxu0 %v504
    %881 = vmatpush.msra.mxu0 %v501
    %882 = vmatpush.msra.mxu0 %v498
    %883 = vmatpush.msra.mxu0 %v495
    %884 = vmatpush.msra.mxu0 %v492
    %885 = vmatpush.msra.mxu0 %v489
    %886 = vmatpush.msra.mxu0 %v486
    %887 = vmatpush.msra.mxu0 %v483
    %888 = vmatmul.f32.gmra.mxu0 %v851
    %v889 = vpop.f32.mrf.mxu0
    %v890 = vadd.f32 %v314, %v889
    %891 = vdwg.mxu0
    %892 = vmatpush.msra.mxu0 %v529
    %893 = vmatpush.msra.mxu0 %v526
    %894 = vmatpush.msra.mxu0 %v523
    %895 = vmatpush.msra.mxu0 %v520
    %896 = vmatpush.msra.mxu0 %v517
    %897 = vmatpush.msra.mxu0 %v514
    %898 = vmatpush.msra.mxu0 %v511
    %899 = vmatpush.msra.mxu0 %v508
    %900 = vmatpush.msra.mxu0 %v505
    %901 = vmatpush.msra.mxu0 %v502
    %902 = vmatpush.msra.mxu0 %v499
    %903 = vmatpush.msra.mxu0 %v496
    %904 = vmatpush.msra.mxu0 %v493
    %905 = vmatpush.msra.mxu0 %v490
    %906 = vmatpush.msra.mxu0 %v487
    %907 = vmatpush.msra.mxu0 %v484
    %908 = vmatmul.f32.gmra.mxu0 %v851
    %v909 = vpop.f32.mrf.mxu0
    %v910 = vadd.f32 %v315, %v909
    %911 = vdwg.mxu0
    %912 = vmatpush.msra.mxu0 %v635
    %913 = vmatpush.msra.mxu0 %v632
    %914 = vmatpush.msra.mxu0 %v629
    %915 = vmatpush.msra.mxu0 %v626
    %916 = vmatpush.msra.mxu0 %v623
    %917 = vmatpush.msra.mxu0 %v620
    %918 = vmatpush.msra.mxu0 %v617
    %919 = vmatpush.msra.mxu0 %v614
    %920 = vmatpush.msra.mxu0 %v611
    %921 = vmatpush.msra.mxu0 %v608
    %922 = vmatpush.msra.mxu0 %v605
    %923 = vmatpush.msra.mxu0 %v602
    %924 = vmatpush.msra.mxu0 %v599
    %925 = vmatpush.msra.mxu0 %v596
    %926 = vmatpush.msra.mxu0 %v593
    %927 = vmatpush.msra.mxu0 %v590
    %928 = vmatmul.f32.gmra.mxu0 %v744
    %v929 = vpop.f32.mrf.mxu0
    %v930 = vadd.f32 %v321, %v929
    %931 = vdwg.mxu0
    %932 = vmatpush.msra.mxu0 %v636
    %933 = vmatpush.msra.mxu0 %v633
    %934 = vmatpush.msra.mxu0 %v630
    %935 = vmatpush.msra.mxu0 %v627
    %936 = vmatpush.msra.mxu0 %v624
    %937 = vmatpush.msra.mxu0 %v621
    %938 = vmatpush.msra.mxu0 %v618
    %939 = vmatpush.msra.mxu0 %v615
    %940 = vmatpush.msra.mxu0 %v612
    %941 = vmatpush.msra.mxu0 %v609
    %942 = vmatpush.msra.mxu0 %v606
    %943 = vmatpush.msra.mxu0 %v603
    %944 = vmatpush.msra.mxu0 %v600
    %945 = vmatpush.msra.mxu0 %v597
    %946 = vmatpush.msra.mxu0 %v594
    %947 = vmatpush.msra.mxu0 %v591
    %948 = vmatmul.f32.gmra.mxu0 %v744
    %v949 = vpop.f32.mrf.mxu0
    %v950 = vadd.f32 %v322, %v949
    %951 = vdwg.mxu0
    %952 = vmatpush.msra.mxu0 %v637
    %953 = vmatpush.msra.mxu0 %v634
    %954 = vmatpush.msra.mxu0 %v631
    %955 = vmatpush.msra.mxu0 %v628
    %956 = vmatpush.msra.mxu0 %v625
    %957 = vmatpush.msra.mxu0 %v622
    %958 = vmatpush.msra.mxu0 %v619
    %959 = vmatpush.msra.mxu0 %v616
    %960 = vmatpush.msra.mxu0 %v613
    %961 = vmatpush.msra.mxu0 %v610
    %962 = vmatpush.msra.mxu0 %v607
    %963 = vmatpush.msra.mxu0 %v604
    %964 = vmatpush.msra.mxu0 %v601
    %965 = vmatpush.msra.mxu0 %v598
    %966 = vmatpush.msra.mxu0 %v595
    %967 = vmatpush.msra.mxu0 %v592
    %968 = vmatmul.f32.gmra.mxu0 %v744
    %v969 = vpop.f32.mrf.mxu0
    %v970 = vadd.f32 %v323, %v969
    %971 = vdwg.mxu0
    %v972 = vadd.f32 %v870, %v930
    %v973 = vxor.u32 %v972, 2147483648
    %v974 = vmul.f32 %v973, 1.442695
    %v975 = vpow.pop %v974
    %v976 = vadd.f32 %v975, 1.0
    %v977 = vrcp.pop %v976
    %v978 = vmul.f32 %v976, %v977
    %v979 = vsub.f32 1.0, %v978
    %v980 = vmul.f32 %v977, %v979
    %v981 = vadd.f32 %v977, %v980
    %vm982 = vweird.f32 %v976
    %vm983 = vweird.f32 %v977
    %vm984 = vmor %vm982, %vm983
    %v985 = vsel %vm984, %v977, %v981
    %v986 = vand.u32 2147483647, %v976
    %vm987 = vcmp.eq.f32.partialorder %v986, 8.507059e+37
    %v988 = vand.u32 %v976, 2147483648
    %v989 = vor.u32 1.1754944e-38, %v988
    %v990 = vsel %vm987, %v989, %v985
    %v991 = vmul.f32 1.0, %v990
    %v992 = vadd.f32 %v890, %v950
    %v993 = vxor.u32 %v992, 2147483648
    %v994 = vmul.f32 %v993, 1.442695
    %v995 = vpow.pop %v994
    %v996 = vadd.f32 %v995, 1.0
    %v997 = vrcp.pop %v996
    %v998 = vmul.f32 %v996, %v997
    %v999 = vsub.f32 1.0, %v998
    %v1000 = vmul.f32 %v997, %v999
    %v1001 = vadd.f32 %v997, %v1000
    %vm1002 = vweird.f32 %v996
    %vm1003 = vweird.f32 %v997
    %vm1004 = vmor %vm1002, %vm1003
    %v1005 = vsel %vm1004, %v997, %v1001
    %v1006 = vand.u32 2147483647, %v996
    %vm1007 = vcmp.eq.f32.partialorder %v1006, 8.507059e+37
    %v1008 = vand.u32 %v996, 2147483648
    %v1009 = vor.u32 1.1754944e-38, %v1008
    %v1010 = vsel %vm1007, %v1009, %v1005
    %v1011 = vmul.f32 1.0, %v1010
    %v1012 = vmul.f32 %v991, %v970
    %v1013 = vadd.f32 %v910, %v1012
    %v1014 = vtanh.pop %v1013
    %v1015 = vsub.f32 1.0, %v1011
    %v1016 = vmul.f32 %v1015, %v1014
    %v1017 = vmul.f32 %v1011, %v744
    %v1018 = vadd.f32 %v1016, %v1017
    %1019 = vmatpush.msra.mxu0 %v372
    %1020 = vmatpush.msra.mxu0 %v369
    %1021 = vmatpush.msra.mxu0 %v366
    %1022 = vmatpush.msra.mxu0 %v363
    %1023 = vmatpush.msra.mxu0 %v360
    %1024 = vmatpush.msra.mxu0 %v357
    %1025 = vmatpush.msra.mxu0 %v354
    %1026 = vmatpush.msra.mxu0 %v351
    %1027 = vmatpush.msra.mxu0 %v348
    %1028 = vmatpush.msra.mxu0 %v345
    %1029 = vmatpush.msra.mxu0 %v342
    %1030 = vmatpush.msra.mxu0 %v339
    %1031 = vmatpush.msra.mxu0 %v336
    %1032 = vmatpush.msra.mxu0 %v333
    %1033 = vmatpush.msra.mxu0 %v330
    %1034 = vmatpush.msra.mxu0 %v327
    %1035 = vmatmul.f32.gmra.mxu0 %v851
    %v1036 = vpop.f32.mrf.mxu0
    %v1037 = vadd.f32 %v305, %v1036
    %1038 = vdwg.mxu0
    %1039 = vmatpush.msra.mxu0 %v373
    %1040 = vmatpush.msra.mxu0 %v370
    %1041 = vmatpush.msra.mxu0 %v367
    %1042 = vmatpush.msra.mxu0 %v364
    %1043 = vmatpush.msra.mxu0 %v361
    %1044 = vmatpush.msra.mxu0 %v358
    %1045 = vmatpush.msra.mxu0 %v355
    %1046 = vmatpush.msra.mxu0 %v352
    %1047 = vmatpush.msra.mxu0 %v349
    %1048 = vmatpush.msra.mxu0 %v346
    %1049 = vmatpush.msra.mxu0 %v343
    %1050 = vmatpush.msra.mxu0 %v340
    %1051 = vmatpush.msra.mxu0 %v337
    %1052 = vmatpush.msra.mxu0 %v334
    %1053 = vmatpush.msra.mxu0 %v331
    %1054 = vmatpush.msra.mxu0 %v328
    %1055 = vmatmul.f32.gmra.mxu0 %v851
    %v1056 = vpop.f32.mrf.mxu0
    %v1057 = vadd.f32 %v306, %v1056
    %1058 = vdwg.mxu0
    %1059 = vmatpush.msra.mxu0 %v374
    %1060 = vmatpush.msra.mxu0 %v371
    %1061 = vmatpush.msra.mxu0 %v368
    %1062 = vmatpush.msra.mxu0 %v365
    %1063 = vmatpush.msra.mxu0 %v362
    %1064 = vmatpush.msra.mxu0 %v359
    %1065 = vmatpush.msra.mxu0 %v356
    %1066 = vmatpush.msra.mxu0 %v353
    %1067 = vmatpush.msra.mxu0 %v350
    %1068 = vmatpush.msra.mxu0 %v347
    %1069 = vmatpush.msra.mxu0 %v344
    %1070 = vmatpush.msra.mxu0 %v341
    %1071 = vmatpush.msra.mxu0 %v338
    %1072 = vmatpush.msra.mxu0 %v335
    %1073 = vmatpush.msra.mxu0 %v332
    %1074 = vmatpush.msra.mxu0 %v329
    %1075 = vmatmul.f32.gmra.mxu0 %v851
    %v1076 = vpop.f32.mrf.mxu0
    %v1077 = vadd.f32 %v307, %v1076
    %1078 = vdwg.mxu0
    %v1079 = vadd.f32 %v204, %v1037
    %v1080 = vxor.u32 %v1079, 2147483648
    %v1081 = vmul.f32 %v1080, 1.442695
    %v1082 = vpow.pop %v1081
    %v1083 = vadd.f32 %v1082, 1.0
    %v1084 = vrcp.pop %v1083
    %v1085 = vmul.f32 %v1083, %v1084
    %v1086 = vsub.f32 1.0, %v1085
    %v1087 = vmul.f32 %v1084, %v1086
    %v1088 = vadd.f32 %v1084, %v1087
    %vm1089 = vweird.f32 %v1083
    %vm1090 = vweird.f32 %v1084
    %vm1091 = vmor %vm1089, %vm1090
    %v1092 = vsel %vm1091, %v1084, %v1088
    %v1093 = vand.u32 2147483647, %v1083
    %vm1094 = vcmp.eq.f32.partialorder %v1093, 8.507059e+37
    %v1095 = vand.u32 %v1083, 2147483648
    %v1096 = vor.u32 1.1754944e-38, %v1095
    %v1097 = vsel %vm1094, %v1096, %v1092
    %v1098 = vmul.f32 1.0, %v1097
    %v1099 = vadd.f32 %v245, %v1057
    %v1100 = vxor.u32 %v1099, 2147483648
    %v1101 = vmul.f32 %v1100, 1.442695
    %v1102 = vpow.pop %v1101
    %v1103 = vadd.f32 %v1102, 1.0
    %v1104 = vrcp.pop %v1103
    %v1105 = vmul.f32 %v1103, %v1104
    %v1106 = vsub.f32 1.0, %v1105
    %v1107 = vmul.f32 %v1104, %v1106
    %v1108 = vadd.f32 %v1104, %v1107
    %vm1109 = vweird.f32 %v1103
    %vm1110 = vweird.f32 %v1104
    %vm1111 = vmor %vm1109, %vm1110
    %v1112 = vsel %vm1111, %v1104, %v1108
    %v1113 = vand.u32 2147483647, %v1103
    %vm1114 = vcmp.eq.f32.partialorder %v1113, 8.507059e+37
    %v1115 = vand.u32 %v1103, 2147483648
    %v1116 = vor.u32 1.1754944e-38, %v1115
    %v1117 = vsel %vm1114, %v1116, %v1112
    %v1118 = vmul.f32 1.0, %v1117
    %v1119 = vmul.f32 %v1098, %v1077
    %v1120 = vadd.f32 %v286, %v1119
    %v1121 = vtanh.pop %v1120
    %v1122 = vsub.f32 1.0, %v1118
    %v1123 = vmul.f32 %v1122, %v1121
    %v1124 = vmul.f32 %v1118, %v851
    %v1125 = vadd.f32 %v1123, %v1124
    %1126 = vmatpush.msra.mxu0 %v527
    %1127 = vmatpush.msra.mxu0 %v524
    %1128 = vmatpush.msra.mxu0 %v521
    %1129 = vmatpush.msra.mxu0 %v518
    %1130 = vmatpush.msra.mxu0 %v515
    %1131 = vmatpush.msra.mxu0 %v512
    %1132 = vmatpush.msra.mxu0 %v509
    %1133 = vmatpush.msra.mxu0 %v506
    %1134 = vmatpush.msra.mxu0 %v503
    %1135 = vmatpush.msra.mxu0 %v500
    %1136 = vmatpush.msra.mxu0 %v497
    %1137 = vmatpush.msra.mxu0 %v494
    %1138 = vmatpush.msra.mxu0 %v491
    %1139 = vmatpush.msra.mxu0 %v488
    %1140 = vmatpush.msra.mxu0 %v485
    %1141 = vmatpush.msra.mxu0 %v482
    %1142 = vmatmul.f32.gmra.mxu0 %v1125
    %v1143 = vpop.f32.mrf.mxu0
    %v1144 = vadd.f32 %v313, %v1143
    %1145 = vdwg.mxu0
    %1146 = vmatpush.msra.mxu0 %v528
    %1147 = vmatpush.msra.mxu0 %v525
    %1148 = vmatpush.msra.mxu0 %v522
    %1149 = vmatpush.msra.mxu0 %v519
    %1150 = vmatpush.msra.mxu0 %v516
    %1151 = vmatpush.msra.mxu0 %v513
    %1152 = vmatpush.msra.mxu0 %v510
    %1153 = vmatpush.msra.mxu0 %v507
    %1154 = vmatpush.msra.mxu0 %v504
    %1155 = vmatpush.msra.mxu0 %v501
    %1156 = vmatpush.msra.mxu0 %v498
    %1157 = vmatpush.msra.mxu0 %v495
    %1158 = vmatpush.msra.mxu0 %v492
    %1159 = vmatpush.msra.mxu0 %v489
    %1160 = vmatpush.msra.mxu0 %v486
    %1161 = vmatpush.msra.mxu0 %v483
    %1162 = vmatmul.f32.gmra.mxu0 %v1125
    %v1163 = vpop.f32.mrf.mxu0
    %v1164 = vadd.f32 %v314, %v1163
    %1165 = vdwg.mxu0
    %1166 = vmatpush.msra.mxu0 %v529
    %1167 = vmatpush.msra.mxu0 %v526
    %1168 = vmatpush.msra.mxu0 %v523
    %1169 = vmatpush.msra.mxu0 %v520
    %1170 = vmatpush.msra.mxu0 %v517
    %1171 = vmatpush.msra.mxu0 %v514
    %1172 = vmatpush.msra.mxu0 %v511
    %1173 = vmatpush.msra.mxu0 %v508
    %1174 = vmatpush.msra.mxu0 %v505
    %1175 = vmatpush.msra.mxu0 %v502
    %1176 = vmatpush.msra.mxu0 %v499
    %1177 = vmatpush.msra.mxu0 %v496
    %1178 = vmatpush.msra.mxu0 %v493
    %1179 = vmatpush.msra.mxu0 %v490
    %1180 = vmatpush.msra.mxu0 %v487
    %1181 = vmatpush.msra.mxu0 %v484
    %1182 = vmatmul.f32.gmra.mxu0 %v1125
    %v1183 = vpop.f32.mrf.mxu0
    %v1184 = vadd.f32 %v315, %v1183
    %1185 = vdwg.mxu0
    %1186 = vmatpush.msra.mxu0 %v635
    %1187 = vmatpush.msra.mxu0 %v632
    %1188 = vmatpush.msra.mxu0 %v629
    %1189 = vmatpush.msra.mxu0 %v626
    %1190 = vmatpush.msra.mxu0 %v623
    %1191 = vmatpush.msra.mxu0 %v620
    %1192 = vmatpush.msra.mxu0 %v617
    %1193 = vmatpush.msra.mxu0 %v614
    %1194 = vmatpush.msra.mxu0 %v611
    %1195 = vmatpush.msra.mxu0 %v608
    %1196 = vmatpush.msra.mxu0 %v605
    %1197 = vmatpush.msra.mxu0 %v602
    %1198 = vmatpush.msra.mxu0 %v599
    %1199 = vmatpush.msra.mxu0 %v596
    %1200 = vmatpush.msra.mxu0 %v593
    %1201 = vmatpush.msra.mxu0 %v590
    %1202 = vmatmul.f32.gmra.mxu0 %v1018
    %v1203 = vpop.f32.mrf.mxu0
    %v1204 = vadd.f32 %v321, %v1203
    %1205 = vdwg.mxu0
    %1206 = vmatpush.msra.mxu0 %v636
    %1207 = vmatpush.msra.mxu0 %v633
    %1208 = vmatpush.msra.mxu0 %v630
    %1209 = vmatpush.msra.mxu0 %v627
    %1210 = vmatpush.msra.mxu0 %v624
    %1211 = vmatpush.msra.mxu0 %v621
    %1212 = vmatpush.msra.mxu0 %v618
    %1213 = vmatpush.msra.mxu0 %v615
    %1214 = vmatpush.msra.mxu0 %v612
    %1215 = vmatpush.msra.mxu0 %v609
    %1216 = vmatpush.msra.mxu0 %v606
    %1217 = vmatpush.msra.mxu0 %v603
    %1218 = vmatpush.msra.mxu0 %v600
    %1219 = vmatpush.msra.mxu0 %v597
    %1220 = vmatpush.msra.mxu0 %v594
    %1221 = vmatpush.msra.mxu0 %v591
    %1222 = vmatmul.f32.gmra.mxu0 %v1018
    %v1223 = vpop.f32.mrf.mxu0
    %v1224 = vadd.f32 %v322, %v1223
    %1225 = vdwg.mxu0
    %1226 = vmatpush.msra.mxu0 %v637
    %1227 = vmatpush.msra.mxu0 %v634
    %1228 = vmatpush.msra.mxu0 %v631
    %1229 = vmatpush.msra.mxu0 %v628
    %1230 = vmatpush.msra.mxu0 %v625
    %1231 = vmatpush.msra.mxu0 %v622
    %1232 = vmatpush.msra.mxu0 %v619
    %1233 = vmatpush.msra.mxu0 %v616
    %1234 = vmatpush.msra.mxu0 %v613
    %1235 = vmatpush.msra.mxu0 %v610
    %1236 = vmatpush.msra.mxu0 %v607
    %1237 = vmatpush.msra.mxu0 %v604
    %1238 = vmatpush.msra.mxu0 %v601
    %1239 = vmatpush.msra.mxu0 %v598
    %1240 = vmatpush.msra.mxu0 %v595
    %1241 = vmatpush.msra.mxu0 %v592
    %1242 = vmatmul.f32.gmra.mxu0 %v1018
    %v1243 = vpop.f32.mrf.mxu0
    %v1244 = vadd.f32 %v323, %v1243
    %1245 = vdwg.mxu0
    %v1246 = vadd.f32 %v1144, %v1204
    %v1247 = vxor.u32 %v1246, 2147483648
    %v1248 = vmul.f32 %v1247, 1.442695
    %v1249 = vpow.pop %v1248
    %v1250 = vadd.f32 %v1249, 1.0
    %v1251 = vrcp.pop %v1250
    %v1252 = vmul.f32 %v1250, %v1251
    %v1253 = vsub.f32 1.0, %v1252
    %v1254 = vmul.f32 %v1251, %v1253
    %v1255 = vadd.f32 %v1251, %v1254
    %vm1256 = vweird.f32 %v1250
    %vm1257 = vweird.f32 %v1251
    %vm1258 = vmor %vm1256, %vm1257
    %v1259 = vsel %vm1258, %v1251, %v1255
    %v1260 = vand.u32 2147483647, %v1250
    %vm1261 = vcmp.eq.f32.partialorder %v1260, 8.507059e+37
    %v1262 = vand.u32 %v1250, 2147483648
    %v1263 = vor.u32 1.1754944e-38, %v1262
    %v1264 = vsel %vm1261, %v1263, %v1259
    %v1265 = vmul.f32 1.0, %v1264
    %v1266 = vadd.f32 %v1164, %v1224
    %v1267 = vxor.u32 %v1266, 2147483648
    %v1268 = vmul.f32 %v1267, 1.442695
    %v1269 = vpow.pop %v1268
    %v1270 = vadd.f32 %v1269, 1.0
    %v1271 = vrcp.pop %v1270
    %v1272 = vmul.f32 %v1270, %v1271
    %v1273 = vsub.f32 1.0, %v1272
    %v1274 = vmul.f32 %v1271, %v1273
    %v1275 = vadd.f32 %v1271, %v1274
    %vm1276 = vweird.f32 %v1270
    %vm1277 = vweird.f32 %v1271
    %vm1278 = vmor %vm1276, %vm1277
    %v1279 = vsel %vm1278, %v1271, %v1275
    %v1280 = vand.u32 2147483647, %v1270
    %vm1281 = vcmp.eq.f32.partialorder %v1280, 8.507059e+37
    %v1282 = vand.u32 %v1270, 2147483648
    %v1283 = vor.u32 1.1754944e-38, %v1282
    %v1284 = vsel %vm1281, %v1283, %v1279
    %v1285 = vmul.f32 1.0, %v1284
    %v1286 = vmul.f32 %v1265, %v1244
    %v1287 = vadd.f32 %v1184, %v1286
    %v1288 = vtanh.pop %v1287
    %v1289 = vsub.f32 1.0, %v1285
    %v1290 = vmul.f32 %v1289, %v1288
    %v1291 = vmul.f32 %v1285, %v1018
    %v1292 = vadd.f32 %v1290, %v1291
    %1293 = vmatpush.msra.mxu0 %v372
    %1294 = vmatpush.msra.mxu0 %v369
    %1295 = vmatpush.msra.mxu0 %v366
    %1296 = vmatpush.msra.mxu0 %v363
    %1297 = vmatpush.msra.mxu0 %v360
    %1298 = vmatpush.msra.mxu0 %v357
    %1299 = vmatpush.msra.mxu0 %v354
    %1300 = vmatpush.msra.mxu0 %v351
    %1301 = vmatpush.msra.mxu0 %v348
    %1302 = vmatpush.msra.mxu0 %v345
    %1303 = vmatpush.msra.mxu0 %v342
    %1304 = vmatpush.msra.mxu0 %v339
    %1305 = vmatpush.msra.mxu0 %v336
    %1306 = vmatpush.msra.mxu0 %v333
    %1307 = vmatpush.msra.mxu0 %v330
    %1308 = vmatpush.msra.mxu0 %v327
    %1309 = vmatmul.f32.gmra.mxu0 %v1125
    %v1310 = vpop.f32.mrf.mxu0
    %v1311 = vadd.f32 %v305, %v1310
    %1312 = vdwg.mxu0
    %1313 = vmatpush.msra.mxu0 %v373
    %1314 = vmatpush.msra.mxu0 %v370
    %1315 = vmatpush.msra.mxu0 %v367
    %1316 = vmatpush.msra.mxu0 %v364
    %1317 = vmatpush.msra.mxu0 %v361
    %1318 = vmatpush.msra.mxu0 %v358
    %1319 = vmatpush.msra.mxu0 %v355
    %1320 = vmatpush.msra.mxu0 %v352
    %1321 = vmatpush.msra.mxu0 %v349
    %1322 = vmatpush.msra.mxu0 %v346
    %1323 = vmatpush.msra.mxu0 %v343
    %1324 = vmatpush.msra.mxu0 %v340
    %1325 = vmatpush.msra.mxu0 %v337
    %1326 = vmatpush.msra.mxu0 %v334
    %1327 = vmatpush.msra.mxu0 %v331
    %1328 = vmatpush.msra.mxu0 %v328
    %1329 = vmatmul.f32.gmra.mxu0 %v1125
    %v1330 = vpop.f32.mrf.mxu0
    %v1331 = vadd.f32 %v306, %v1330
    %1332 = vdwg.mxu0
    %1333 = vmatpush.msra.mxu0 %v374
    %1334 = vmatpush.msra.mxu0 %v371
    %1335 = vmatpush.msra.mxu0 %v368
    %1336 = vmatpush.msra.mxu0 %v365
    %1337 = vmatpush.msra.mxu0 %v362
    %1338 = vmatpush.msra.mxu0 %v359
    %1339 = vmatpush.msra.mxu0 %v356
    %1340 = vmatpush.msra.mxu0 %v353
    %1341 = vmatpush.msra.mxu0 %v350
    %1342 = vmatpush.msra.mxu0 %v347
    %1343 = vmatpush.msra.mxu0 %v344
    %1344 = vmatpush.msra.mxu0 %v341
    %1345 = vmatpush.msra.mxu0 %v338
    %1346 = vmatpush.msra.mxu0 %v335
    %1347 = vmatpush.msra.mxu0 %v332
    %1348 = vmatpush.msra.mxu0 %v329
    %1349 = vmatmul.f32.gmra.mxu0 %v1125
    %v1350 = vpop.f32.mrf.mxu0
    %v1351 = vadd.f32 %v307, %v1350
    %1352 = vdwg.mxu0
    %v1353 = vadd.f32 %v207, %v1311
    %v1354 = vxor.u32 %v1353, 2147483648
    %v1355 = vmul.f32 %v1354, 1.442695
    %v1356 = vpow.pop %v1355
    %v1357 = vadd.f32 %v1356, 1.0
    %v1358 = vrcp.pop %v1357
    %v1359 = vmul.f32 %v1357, %v1358
    %v1360 = vsub.f32 1.0, %v1359
    %v1361 = vmul.f32 %v1358, %v1360
    %v1362 = vadd.f32 %v1358, %v1361
    %vm1363 = vweird.f32 %v1357
    %vm1364 = vweird.f32 %v1358
    %vm1365 = vmor %vm1363, %vm1364
    %v1366 = vsel %vm1365, %v1358, %v1362
    %v1367 = vand.u32 2147483647, %v1357
    %vm1368 = vcmp.eq.f32.partialorder %v1367, 8.507059e+37
    %v1369 = vand.u32 %v1357, 2147483648
    %v1370 = vor.u32 1.1754944e-38, %v1369
    %v1371 = vsel %vm1368, %v1370, %v1366
    %v1372 = vmul.f32 1.0, %v1371
    %v1373 = vadd.f32 %v248, %v1331
    %v1374 = vxor.u32 %v1373, 2147483648
    %v1375 = vmul.f32 %v1374, 1.442695
    %v1376 = vpow.pop %v1375
    %v1377 = vadd.f32 %v1376, 1.0
    %v1378 = vrcp.pop %v1377
    %v1379 = vmul.f32 %v1377, %v1378
    %v1380 = vsub.f32 1.0, %v1379
    %v1381 = vmul.f32 %v1378, %v1380
    %v1382 = vadd.f32 %v1378, %v1381
    %vm1383 = vweird.f32 %v1377
    %vm1384 = vweird.f32 %v1378
    %vm1385 = vmor %vm1383, %vm1384
    %v1386 = vsel %vm1385, %v1378, %v1382
    %v1387 = vand.u32 2147483647, %v1377
    %vm1388 = vcmp.eq.f32.partialorder %v1387, 8.507059e+37
    %v1389 = vand.u32 %v1377, 2147483648
    %v1390 = vor.u32 1.1754944e-38, %v1389
    %v1391 = vsel %vm1388, %v1390, %v1386
    %v1392 = vmul.f32 1.0, %v1391
    %v1393 = vmul.f32 %v1372, %v1351
    %v1394 = vadd.f32 %v289, %v1393
    %v1395 = vtanh.pop %v1394
    %v1396 = vsub.f32 1.0, %v1392
    %v1397 = vmul.f32 %v1396, %v1395
    %v1398 = vmul.f32 %v1392, %v1125
    %v1399 = vadd.f32 %v1397, %v1398
    %1400 = vmatpush.msra.mxu0 %v527
    %1401 = vmatpush.msra.mxu0 %v524
    %1402 = vmatpush.msra.mxu0 %v521
    %1403 = vmatpush.msra.mxu0 %v518
    %1404 = vmatpush.msra.mxu0 %v515
    %1405 = vmatpush.msra.mxu0 %v512
    %1406 = vmatpush.msra.mxu0 %v509
    %1407 = vmatpush.msra.mxu0 %v506
    %1408 = vmatpush.msra.mxu0 %v503
    %1409 = vmatpush.msra.mxu0 %v500
    %1410 = vmatpush.msra.mxu0 %v497
    %1411 = vmatpush.msra.mxu0 %v494
    %1412 = vmatpush.msra.mxu0 %v491
    %1413 = vmatpush.msra.mxu0 %v488
    %1414 = vmatpush.msra.mxu0 %v485
    %1415 = vmatpush.msra.mxu0 %v482
    %1416 = vmatmul.f32.gmra.mxu0 %v1399
    %v1417 = vpop.f32.mrf.mxu0
    %v1418 = vadd.f32 %v313, %v1417
    %1419 = vdwg.mxu0
    %1420 = vmatpush.msra.mxu0 %v528
    %1421 = vmatpush.msra.mxu0 %v525
    %1422 = vmatpush.msra.mxu0 %v522
    %1423 = vmatpush.msra.mxu0 %v519
    %1424 = vmatpush.msra.mxu0 %v516
    %1425 = vmatpush.msra.mxu0 %v513
    %1426 = vmatpush.msra.mxu0 %v510
    %1427 = vmatpush.msra.mxu0 %v507
    %1428 = vmatpush.msra.mxu0 %v504
    %1429 = vmatpush.msra.mxu0 %v501
    %1430 = vmatpush.msra.mxu0 %v498
    %1431 = vmatpush.msra.mxu0 %v495
    %1432 = vmatpush.msra.mxu0 %v492
    %1433 = vmatpush.msra.mxu0 %v489
    %1434 = vmatpush.msra.mxu0 %v486
    %1435 = vmatpush.msra.mxu0 %v483
    %1436 = vmatmul.f32.gmra.mxu0 %v1399
    %v1437 = vpop.f32.mrf.mxu0
    %v1438 = vadd.f32 %v314, %v1437
    %1439 = vdwg.mxu0
    %1440 = vmatpush.msra.mxu0 %v529
    %1441 = vmatpush.msra.mxu0 %v526
    %1442 = vmatpush.msra.mxu0 %v523
    %1443 = vmatpush.msra.mxu0 %v520
    %1444 = vmatpush.msra.mxu0 %v517
    %1445 = vmatpush.msra.mxu0 %v514
    %1446 = vmatpush.msra.mxu0 %v511
    %1447 = vmatpush.msra.mxu0 %v508
    %1448 = vmatpush.msra.mxu0 %v505
    %1449 = vmatpush.msra.mxu0 %v502
    %1450 = vmatpush.msra.mxu0 %v499
    %1451 = vmatpush.msra.mxu0 %v496
    %1452 = vmatpush.msra.mxu0 %v493
    %1453 = vmatpush.msra.mxu0 %v490
    %1454 = vmatpush.msra.mxu0 %v487
    %1455 = vmatpush.msra.mxu0 %v484
    %1456 = vmatmul.f32.gmra.mxu0 %v1399
    %v1457 = vpop.f32.mrf.mxu0
    %v1458 = vadd.f32 %v315, %v1457
    %1459 = vdwg.mxu0
    %1460 = vmatpush.msra.mxu0 %v635
    %1461 = vmatpush.msra.mxu0 %v632
    %1462 = vmatpush.msra.mxu0 %v629
    %1463 = vmatpush.msra.mxu0 %v626
    %1464 = vmatpush.msra.mxu0 %v623
    %1465 = vmatpush.msra.mxu0 %v620
    %1466 = vmatpush.msra.mxu0 %v617
    %1467 = vmatpush.msra.mxu0 %v614
    %1468 = vmatpush.msra.mxu0 %v611
    %1469 = vmatpush.msra.mxu0 %v608
    %1470 = vmatpush.msra.mxu0 %v605
    %1471 = vmatpush.msra.mxu0 %v602
    %1472 = vmatpush.msra.mxu0 %v599
    %1473 = vmatpush.msra.mxu0 %v596
    %1474 = vmatpush.msra.mxu0 %v593
    %1475 = vmatpush.msra.mxu0 %v590
    %1476 = vmatmul.f32.gmra.mxu0 %v1292
    %v1477 = vpop.f32.mrf.mxu0
    %v1478 = vadd.f32 %v321, %v1477
    %1479 = vdwg.mxu0
    %1480 = vmatpush.msra.mxu0 %v636
    %1481 = vmatpush.msra.mxu0 %v633
    %1482 = vmatpush.msra.mxu0 %v630
    %1483 = vmatpush.msra.mxu0 %v627
    %1484 = vmatpush.msra.mxu0 %v624
    %1485 = vmatpush.msra.mxu0 %v621
    %1486 = vmatpush.msra.mxu0 %v618
    %1487 = vmatpush.msra.mxu0 %v615
    %1488 = vmatpush.msra.mxu0 %v612
    %1489 = vmatpush.msra.mxu0 %v609
    %1490 = vmatpush.msra.mxu0 %v606
    %1491 = vmatpush.msra.mxu0 %v603
    %1492 = vmatpush.msra.mxu0 %v600
    %1493 = vmatpush.msra.mxu0 %v597
    %1494 = vmatpush.msra.mxu0 %v594
    %1495 = vmatpush.msra.mxu0 %v591
    %1496 = vmatmul.f32.gmra.mxu0 %v1292
    %v1497 = vpop.f32.mrf.mxu0
    %v1498 = vadd.f32 %v322, %v1497
    %1499 = vdwg.mxu0
    %1500 = vmatpush.msra.mxu0 %v637
    %1501 = vmatpush.msra.mxu0 %v634
    %1502 = vmatpush.msra.mxu0 %v631
    %1503 = vmatpush.msra.mxu0 %v628
    %1504 = vmatpush.msra.mxu0 %v625
    %1505 = vmatpush.msra.mxu0 %v622
    %1506 = vmatpush.msra.mxu0 %v619
    %1507 = vmatpush.msra.mxu0 %v616
    %1508 = vmatpush.msra.mxu0 %v613
    %1509 = vmatpush.msra.mxu0 %v610
    %1510 = vmatpush.msra.mxu0 %v607
    %1511 = vmatpush.msra.mxu0 %v604
    %1512 = vmatpush.msra.mxu0 %v601
    %1513 = vmatpush.msra.mxu0 %v598
    %1514 = vmatpush.msra.mxu0 %v595
    %1515 = vmatpush.msra.mxu0 %v592
    %1516 = vmatmul.f32.gmra.mxu0 %v1292
    %v1517 = vpop.f32.mrf.mxu0
    %v1518 = vadd.f32 %v323, %v1517
    %1519 = vdwg.mxu0
    %v1520 = vadd.f32 %v1418, %v1478
    %v1521 = vxor.u32 %v1520, 2147483648
    %v1522 = vmul.f32 %v1521, 1.442695
    %v1523 = vpow.pop %v1522
    %v1524 = vadd.f32 %v1523, 1.0
    %v1525 = vrcp.pop %v1524
    %v1526 = vmul.f32 %v1524, %v1525
    %v1527 = vsub.f32 1.0, %v1526
    %v1528 = vmul.f32 %v1525, %v1527
    %v1529 = vadd.f32 %v1525, %v1528
    %vm1530 = vweird.f32 %v1524
    %vm1531 = vweird.f32 %v1525
    %vm1532 = vmor %vm1530, %vm1531
    %v1533 = vsel %vm1532, %v1525, %v1529
    %v1534 = vand.u32 2147483647, %v1524
    %vm1535 = vcmp.eq.f32.partialorder %v1534, 8.507059e+37
    %v1536 = vand.u32 %v1524, 2147483648
    %v1537 = vor.u32 1.1754944e-38, %v1536
    %v1538 = vsel %vm1535, %v1537, %v1533
    %v1539 = vmul.f32 1.0, %v1538
    %v1540 = vadd.f32 %v1438, %v1498
    %v1541 = vxor.u32 %v1540, 2147483648
    %v1542 = vmul.f32 %v1541, 1.442695
    %v1543 = vpow.pop %v1542
    %v1544 = vadd.f32 %v1543, 1.0
    %v1545 = vrcp.pop %v1544
    %v1546 = vmul.f32 %v1544, %v1545
    %v1547 = vsub.f32 1.0, %v1546
    %v1548 = vmul.f32 %v1545, %v1547
    %v1549 = vadd.f32 %v1545, %v1548
    %vm1550 = vweird.f32 %v1544
    %vm1551 = vweird.f32 %v1545
    %vm1552 = vmor %vm1550, %vm1551
    %v1553 = vsel %vm1552, %v1545, %v1549
    %v1554 = vand.u32 2147483647, %v1544
    %vm1555 = vcmp.eq.f32.partialorder %v1554, 8.507059e+37
    %v1556 = vand.u32 %v1544, 2147483648
    %v1557 = vor.u32 1.1754944e-38, %v1556
    %v1558 = vsel %vm1555, %v1557, %v1553
    %v1559 = vmul.f32 1.0, %v1558
    %v1560 = vmul.f32 %v1539, %v1518
    %v1561 = vadd.f32 %v1458, %v1560
    %v1562 = vtanh.pop %v1561
    %v1563 = vsub.f32 1.0, %v1559
    %v1564 = vmul.f32 %v1563, %v1562
    %v1565 = vmul.f32 %v1559, %v1292
    %v1566 = vadd.f32 %v1564, %v1565
    %1567 = vmatpush.msra.mxu0 %v372
    %1568 = vmatpush.msra.mxu0 %v369
    %1569 = vmatpush.msra.mxu0 %v366
    %1570 = vmatpush.msra.mxu0 %v363
    %1571 = vmatpush.msra.mxu0 %v360
    %1572 = vmatpush.msra.mxu0 %v357
    %1573 = vmatpush.msra.mxu0 %v354
    %1574 = vmatpush.msra.mxu0 %v351
    %1575 = vmatpush.msra.mxu0 %v348
    %1576 = vmatpush.msra.mxu0 %v345
    %1577 = vmatpush.msra.mxu0 %v342
    %1578 = vmatpush.msra.mxu0 %v339
    %1579 = vmatpush.msra.mxu0 %v336
    %1580 = vmatpush.msra.mxu0 %v333
    %1581 = vmatpush.msra.mxu0 %v330
    %1582 = vmatpush.msra.mxu0 %v327
    %1583 = vmatmul.f32.gmra.mxu0 %v1399
    %v1584 = vpop.f32.mrf.mxu0
    %v1585 = vadd.f32 %v305, %v1584
    %1586 = vdwg.mxu0
    %1587 = vmatpush.msra.mxu0 %v373
    %1588 = vmatpush.msra.mxu0 %v370
    %1589 = vmatpush.msra.mxu0 %v367
    %1590 = vmatpush.msra.mxu0 %v364
    %1591 = vmatpush.msra.mxu0 %v361
    %1592 = vmatpush.msra.mxu0 %v358
    %1593 = vmatpush.msra.mxu0 %v355
    %1594 = vmatpush.msra.mxu0 %v352
    %1595 = vmatpush.msra.mxu0 %v349
    %1596 = vmatpush.msra.mxu0 %v346
    %1597 = vmatpush.msra.mxu0 %v343
    %1598 = vmatpush.msra.mxu0 %v340
    %1599 = vmatpush.msra.mxu0 %v337
    %1600 = vmatpush.msra.mxu0 %v334
    %1601 = vmatpush.msra.mxu0 %v331
    %1602 = vmatpush.msra.mxu0 %v328
    %1603 = vmatmul.f32.gmra.mxu0 %v1399
    %v1604 = vpop.f32.mrf.mxu0
    %v1605 = vadd.f32 %v306, %v1604
    %1606 = vdwg.mxu0
    %1607 = vmatpush.msra.mxu0 %v374
    %1608 = vmatpush.msra.mxu0 %v371
    %1609 = vmatpush.msra.mxu0 %v368
    %1610 = vmatpush.msra.mxu0 %v365
    %1611 = vmatpush.msra.mxu0 %v362
    %1612 = vmatpush.msra.mxu0 %v359
    %1613 = vmatpush.msra.mxu0 %v356
    %1614 = vmatpush.msra.mxu0 %v353
    %1615 = vmatpush.msra.mxu0 %v350
    %1616 = vmatpush.msra.mxu0 %v347
    %1617 = vmatpush.msra.mxu0 %v344
    %1618 = vmatpush.msra.mxu0 %v341
    %1619 = vmatpush.msra.mxu0 %v338
    %1620 = vmatpush.msra.mxu0 %v335
    %1621 = vmatpush.msra.mxu0 %v332
    %1622 = vmatpush.msra.mxu0 %v329
    %1623 = vmatmul.f32.gmra.mxu0 %v1399
    %v1624 = vpop.f32.mrf.mxu0
    %v1625 = vadd.f32 %v307, %v1624
    %1626 = vdwg.mxu0
    %v1627 = vadd.f32 %v210, %v1585
    %v1628 = vxor.u32 %v1627, 2147483648
    %v1629 = vmul.f32 %v1628, 1.442695
    %v1630 = vpow.pop %v1629
    %v1631 = vadd.f32 %v1630, 1.0
    %v1632 = vrcp.pop %v1631
    %v1633 = vmul.f32 %v1631, %v1632
    %v1634 = vsub.f32 1.0, %v1633
    %v1635 = vmul.f32 %v1632, %v1634
    %v1636 = vadd.f32 %v1632, %v1635
    %vm1637 = vweird.f32 %v1631
    %vm1638 = vweird.f32 %v1632
    %vm1639 = vmor %vm1637, %vm1638
    %v1640 = vsel %vm1639, %v1632, %v1636
    %v1641 = vand.u32 2147483647, %v1631
    %vm1642 = vcmp.eq.f32.partialorder %v1641, 8.507059e+37
    %v1643 = vand.u32 %v1631, 2147483648
    %v1644 = vor.u32 1.1754944e-38, %v1643
    %v1645 = vsel %vm1642, %v1644, %v1640
    %v1646 = vmul.f32 1.0, %v1645
    %v1647 = vadd.f32 %v251, %v1605
    %v1648 = vxor.u32 %v1647, 2147483648
    %v1649 = vmul.f32 %v1648, 1.442695
    %v1650 = vpow.pop %v1649
    %v1651 = vadd.f32 %v1650, 1.0
    %v1652 = vrcp.pop %v1651
    %v1653 = vmul.f32 %v1651, %v1652
    %v1654 = vsub.f32 1.0, %v1653
    %v1655 = vmul.f32 %v1652, %v1654
    %v1656 = vadd.f32 %v1652, %v1655
    %vm1657 = vweird.f32 %v1651
    %vm1658 = vweird.f32 %v1652
    %vm1659 = vmor %vm1657, %vm1658
    %v1660 = vsel %vm1659, %v1652, %v1656
    %v1661 = vand.u32 2147483647, %v1651
    %vm1662 = vcmp.eq.f32.partialorder %v1661, 8.507059e+37
    %v1663 = vand.u32 %v1651, 2147483648
    %v1664 = vor.u32 1.1754944e-38, %v1663
    %v1665 = vsel %vm1662, %v1664, %v1660
    %v1666 = vmul.f32 1.0, %v1665
    %v1667 = vmul.f32 %v1646, %v1625
    %v1668 = vadd.f32 %v292, %v1667
    %v1669 = vtanh.pop %v1668
    %v1670 = vsub.f32 1.0, %v1666
    %v1671 = vmul.f32 %v1670, %v1669
    %v1672 = vmul.f32 %v1666, %v1399
    %v1673 = vadd.f32 %v1671, %v1672
    %1674 = vmatpush.msra.mxu0 %v527
    %1675 = vmatpush.msra.mxu0 %v524
    %1676 = vmatpush.msra.mxu0 %v521
    %1677 = vmatpush.msra.mxu0 %v518
    %1678 = vmatpush.msra.mxu0 %v515
    %1679 = vmatpush.msra.mxu0 %v512
    %1680 = vmatpush.msra.mxu0 %v509
    %1681 = vmatpush.msra.mxu0 %v506
    %1682 = vmatpush.msra.mxu0 %v503
    %1683 = vmatpush.msra.mxu0 %v500
    %1684 = vmatpush.msra.mxu0 %v497
    %1685 = vmatpush.msra.mxu0 %v494
    %1686 = vmatpush.msra.mxu0 %v491
    %1687 = vmatpush.msra.mxu0 %v488
    %1688 = vmatpush.msra.mxu0 %v485
    %1689 = vmatpush.msra.mxu0 %v482
    %1690 = vmatmul.f32.gmra.mxu0 %v1673
    %v1691 = vpop.f32.mrf.mxu0
    %v1692 = vadd.f32 %v313, %v1691
    %1693 = vdwg.mxu0
    %1694 = vmatpush.msra.mxu0 %v528
    %1695 = vmatpush.msra.mxu0 %v525
    %1696 = vmatpush.msra.mxu0 %v522
    %1697 = vmatpush.msra.mxu0 %v519
    %1698 = vmatpush.msra.mxu0 %v516
    %1699 = vmatpush.msra.mxu0 %v513
    %1700 = vmatpush.msra.mxu0 %v510
    %1701 = vmatpush.msra.mxu0 %v507
    %1702 = vmatpush.msra.mxu0 %v504
    %1703 = vmatpush.msra.mxu0 %v501
    %1704 = vmatpush.msra.mxu0 %v498
    %1705 = vmatpush.msra.mxu0 %v495
    %1706 = vmatpush.msra.mxu0 %v492
    %1707 = vmatpush.msra.mxu0 %v489
    %1708 = vmatpush.msra.mxu0 %v486
    %1709 = vmatpush.msra.mxu0 %v483
    %1710 = vmatmul.f32.gmra.mxu0 %v1673
    %v1711 = vpop.f32.mrf.mxu0
    %v1712 = vadd.f32 %v314, %v1711
    %1713 = vdwg.mxu0
    %1714 = vmatpush.msra.mxu0 %v529
    %1715 = vmatpush.msra.mxu0 %v526
    %1716 = vmatpush.msra.mxu0 %v523
    %1717 = vmatpush.msra.mxu0 %v520
    %1718 = vmatpush.msra.mxu0 %v517
    %1719 = vmatpush.msra.mxu0 %v514
    %1720 = vmatpush.msra.mxu0 %v511
    %1721 = vmatpush.msra.mxu0 %v508
    %1722 = vmatpush.msra.mxu0 %v505
    %1723 = vmatpush.msra.mxu0 %v502
    %1724 = vmatpush.msra.mxu0 %v499
    %1725 = vmatpush.msra.mxu0 %v496
    %1726 = vmatpush.msra.mxu0 %v493
    %1727 = vmatpush.msra.mxu0 %v490
    %1728 = vmatpush.msra.mxu0 %v487
    %1729 = vmatpush.msra.mxu0 %v484
    %1730 = vmatmul.f32.gmra.mxu0 %v1673
    %v1731 = vpop.f32.mrf.mxu0
    %v1732 = vadd.f32 %v315, %v1731
    %1733 = vdwg.mxu0
    %1734 = vmatpush.msra.mxu0 %v635
    %1735 = vmatpush.msra.mxu0 %v632
    %1736 = vmatpush.msra.mxu0 %v629
    %1737 = vmatpush.msra.mxu0 %v626
    %1738 = vmatpush.msra.mxu0 %v623
    %1739 = vmatpush.msra.mxu0 %v620
    %1740 = vmatpush.msra.mxu0 %v617
    %1741 = vmatpush.msra.mxu0 %v614
    %1742 = vmatpush.msra.mxu0 %v611
    %1743 = vmatpush.msra.mxu0 %v608
    %1744 = vmatpush.msra.mxu0 %v605
    %1745 = vmatpush.msra.mxu0 %v602
    %1746 = vmatpush.msra.mxu0 %v599
    %1747 = vmatpush.msra.mxu0 %v596
    %1748 = vmatpush.msra.mxu0 %v593
    %1749 = vmatpush.msra.mxu0 %v590
    %1750 = vmatmul.f32.gmra.mxu0 %v1566
    %v1751 = vpop.f32.mrf.mxu0
    %v1752 = vadd.f32 %v321, %v1751
    %1753 = vdwg.mxu0
    %1754 = vmatpush.msra.mxu0 %v636
    %1755 = vmatpush.msra.mxu0 %v633
    %1756 = vmatpush.msra.mxu0 %v630
    %1757 = vmatpush.msra.mxu0 %v627
    %1758 = vmatpush.msra.mxu0 %v624
    %1759 = vmatpush.msra.mxu0 %v621
    %1760 = vmatpush.msra.mxu0 %v618
    %1761 = vmatpush.msra.mxu0 %v615
    %1762 = vmatpush.msra.mxu0 %v612
    %1763 = vmatpush.msra.mxu0 %v609
    %1764 = vmatpush.msra.mxu0 %v606
    %1765 = vmatpush.msra.mxu0 %v603
    %1766 = vmatpush.msra.mxu0 %v600
    %1767 = vmatpush.msra.mxu0 %v597
    %1768 = vmatpush.msra.mxu0 %v594
    %1769 = vmatpush.msra.mxu0 %v591
    %1770 = vmatmul.f32.gmra.mxu0 %v1566
    %v1771 = vpop.f32.mrf.mxu0
    %v1772 = vadd.f32 %v322, %v1771
    %1773 = vdwg.mxu0
    %1774 = vmatpush.msra.mxu0 %v637
    %1775 = vmatpush.msra.mxu0 %v634
    %1776 = vmatpush.msra.mxu0 %v631
    %1777 = vmatpush.msra.mxu0 %v628
    %1778 = vmatpush.msra.mxu0 %v625
    %1779 = vmatpush.msra.mxu0 %v622
    %1780 = vmatpush.msra.mxu0 %v619
    %1781 = vmatpush.msra.mxu0 %v616
    %1782 = vmatpush.msra.mxu0 %v613
    %1783 = vmatpush.msra.mxu0 %v610
    %1784 = vmatpush.msra.mxu0 %v607
    %1785 = vmatpush.msra.mxu0 %v604
    %1786 = vmatpush.msra.mxu0 %v601
    %1787 = vmatpush.msra.mxu0 %v598
    %1788 = vmatpush.msra.mxu0 %v595
    %1789 = vmatpush.msra.mxu0 %v592
    %1790 = vmatmul.f32.gmra.mxu0 %v1566
    %v1791 = vpop.f32.mrf.mxu0
    %v1792 = vadd.f32 %v323, %v1791
    %1793 = vdwg.mxu0
    %v1794 = vadd.f32 %v1692, %v1752
    %v1795 = vxor.u32 %v1794, 2147483648
    %v1796 = vmul.f32 %v1795, 1.442695
    %v1797 = vpow.pop %v1796
    %v1798 = vadd.f32 %v1797, 1.0
    %v1799 = vrcp.pop %v1798
    %v1800 = vmul.f32 %v1798, %v1799
    %v1801 = vsub.f32 1.0, %v1800
    %v1802 = vmul.f32 %v1799, %v1801
    %v1803 = vadd.f32 %v1799, %v1802
    %vm1804 = vweird.f32 %v1798
    %vm1805 = vweird.f32 %v1799
    %vm1806 = vmor %vm1804, %vm1805
    %v1807 = vsel %vm1806, %v1799, %v1803
    %v1808 = vand.u32 2147483647, %v1798
    %vm1809 = vcmp.eq.f32.partialorder %v1808, 8.507059e+37
    %v1810 = vand.u32 %v1798, 2147483648
    %v1811 = vor.u32 1.1754944e-38, %v1810
    %v1812 = vsel %vm1809, %v1811, %v1807
    %v1813 = vmul.f32 1.0, %v1812
    %v1814 = vadd.f32 %v1712, %v1772
    %v1815 = vxor.u32 %v1814, 2147483648
    %v1816 = vmul.f32 %v1815, 1.442695
    %v1817 = vpow.pop %v1816
    %v1818 = vadd.f32 %v1817, 1.0
    %v1819 = vrcp.pop %v1818
    %v1820 = vmul.f32 %v1818, %v1819
    %v1821 = vsub.f32 1.0, %v1820
    %v1822 = vmul.f32 %v1819, %v1821
    %v1823 = vadd.f32 %v1819, %v1822
    %vm1824 = vweird.f32 %v1818
    %vm1825 = vweird.f32 %v1819
    %vm1826 = vmor %vm1824, %vm1825
    %v1827 = vsel %vm1826, %v1819, %v1823
    %v1828 = vand.u32 2147483647, %v1818
    %vm1829 = vcmp.eq.f32.partialorder %v1828, 8.507059e+37
    %v1830 = vand.u32 %v1818, 2147483648
    %v1831 = vor.u32 1.1754944e-38, %v1830
    %v1832 = vsel %vm1829, %v1831, %v1827
    %v1833 = vmul.f32 1.0, %v1832
    %v1834 = vmul.f32 %v1813, %v1792
    %v1835 = vadd.f32 %v1732, %v1834
    %v1836 = vtanh.pop %v1835
    %v1837 = vsub.f32 1.0, %v1833
    %v1838 = vmul.f32 %v1837, %v1836
    %v1839 = vmul.f32 %v1833, %v1566
    %v1840 = vadd.f32 %v1838, %v1839
    %1841 = vmatpush.msra.mxu0 %v372
    %1842 = vmatpush.msra.mxu0 %v369
    %1843 = vmatpush.msra.mxu0 %v366
    %1844 = vmatpush.msra.mxu0 %v363
    %1845 = vmatpush.msra.mxu0 %v360
    %1846 = vmatpush.msra.mxu0 %v357
    %1847 = vmatpush.msra.mxu0 %v354
    %1848 = vmatpush.msra.mxu0 %v351
    %1849 = vmatpush.msra.mxu0 %v348
    %1850 = vmatpush.msra.mxu0 %v345
    %1851 = vmatpush.msra.mxu0 %v342
    %1852 = vmatpush.msra.mxu0 %v339
    %1853 = vmatpush.msra.mxu0 %v336
    %1854 = vmatpush.msra.mxu0 %v333
    %1855 = vmatpush.msra.mxu0 %v330
    %1856 = vmatpush.msra.mxu0 %v327
    %1857 = vmatmul.f32.gmra.mxu0 %v1673
    %v1858 = vpop.f32.mrf.mxu0
    %v1859 = vadd.f32 %v305, %v1858
    %1860 = vdwg.mxu0
    %1861 = vmatpush.msra.mxu0 %v373
    %1862 = vmatpush.msra.mxu0 %v370
    %1863 = vmatpush.msra.mxu0 %v367
    %1864 = vmatpush.msra.mxu0 %v364
    %1865 = vmatpush.msra.mxu0 %v361
    %1866 = vmatpush.msra.mxu0 %v358
    %1867 = vmatpush.msra.mxu0 %v355
    %1868 = vmatpush.msra.mxu0 %v352
    %1869 = vmatpush.msra.mxu0 %v349
    %1870 = vmatpush.msra.mxu0 %v346
    %1871 = vmatpush.msra.mxu0 %v343
    %1872 = vmatpush.msra.mxu0 %v340
    %1873 = vmatpush.msra.mxu0 %v337
    %1874 = vmatpush.msra.mxu0 %v334
    %1875 = vmatpush.msra.mxu0 %v331
    %1876 = vmatpush.msra.mxu0 %v328
    %1877 = vmatmul.f32.gmra.mxu0 %v1673
    %v1878 = vpop.f32.mrf.mxu0
    %v1879 = vadd.f32 %v306, %v1878
    %1880 = vdwg.mxu0
    %1881 = vmatpush.msra.mxu0 %v374
    %1882 = vmatpush.msra.mxu0 %v371
    %1883 = vmatpush.msra.mxu0 %v368
    %1884 = vmatpush.msra.mxu0 %v365
    %1885 = vmatpush.msra.mxu0 %v362
    %1886 = vmatpush.msra.mxu0 %v359
    %1887 = vmatpush.msra.mxu0 %v356
    %1888 = vmatpush.msra.mxu0 %v353
    %1889 = vmatpush.msra.mxu0 %v350
    %1890 = vmatpush.msra.mxu0 %v347
    %1891 = vmatpush.msra.mxu0 %v344
    %1892 = vmatpush.msra.mxu0 %v341
    %1893 = vmatpush.msra.mxu0 %v338
    %1894 = vmatpush.msra.mxu0 %v335
    %1895 = vmatpush.msra.mxu0 %v332
    %1896 = vmatpush.msra.mxu0 %v329
    %1897 = vmatmul.f32.gmra.mxu0 %v1673
    %v1898 = vpop.f32.mrf.mxu0
    %v1899 = vadd.f32 %v307, %v1898
    %1900 = vdwg.mxu0
    %v1901 = vadd.f32 %v213, %v1859
    %v1902 = vxor.u32 %v1901, 2147483648
    %v1903 = vmul.f32 %v1902, 1.442695
    %v1904 = vpow.pop %v1903
    %v1905 = vadd.f32 %v1904, 1.0
    %v1906 = vrcp.pop %v1905
    %v1907 = vmul.f32 %v1905, %v1906
    %v1908 = vsub.f32 1.0, %v1907
    %v1909 = vmul.f32 %v1906, %v1908
    %v1910 = vadd.f32 %v1906, %v1909
    %vm1911 = vweird.f32 %v1905
    %vm1912 = vweird.f32 %v1906
    %vm1913 = vmor %vm1911, %vm1912
    %v1914 = vsel %vm1913, %v1906, %v1910
    %v1915 = vand.u32 2147483647, %v1905
    %vm1916 = vcmp.eq.f32.partialorder %v1915, 8.507059e+37
    %v1917 = vand.u32 %v1905, 2147483648
    %v1918 = vor.u32 1.1754944e-38, %v1917
    %v1919 = vsel %vm1916, %v1918, %v1914
    %v1920 = vmul.f32 1.0, %v1919
    %v1921 = vadd.f32 %v254, %v1879
    %v1922 = vxor.u32 %v1921, 2147483648
    %v1923 = vmul.f32 %v1922, 1.442695
    %v1924 = vpow.pop %v1923
    %v1925 = vadd.f32 %v1924, 1.0
    %v1926 = vrcp.pop %v1925
    %v1927 = vmul.f32 %v1925, %v1926
    %v1928 = vsub.f32 1.0, %v1927
    %v1929 = vmul.f32 %v1926, %v1928
    %v1930 = vadd.f32 %v1926, %v1929
    %vm1931 = vweird.f32 %v1925
    %vm1932 = vweird.f32 %v1926
    %vm1933 = vmor %vm1931, %vm1932
    %v1934 = vsel %vm1933, %v1926, %v1930
    %v1935 = vand.u32 2147483647, %v1925
    %vm1936 = vcmp.eq.f32.partialorder %v1935, 8.507059e+37
    %v1937 = vand.u32 %v1925, 2147483648
    %v1938 = vor.u32 1.1754944e-38, %v1937
    %v1939 = vsel %vm1936, %v1938, %v1934
    %v1940 = vmul.f32 1.0, %v1939
    %v1941 = vmul.f32 %v1920, %v1899
    %v1942 = vadd.f32 %v295, %v1941
    %v1943 = vtanh.pop %v1942
    %v1944 = vsub.f32 1.0, %v1940
    %v1945 = vmul.f32 %v1944, %v1943
    %v1946 = vmul.f32 %v1940, %v1673
    %v1947 = vadd.f32 %v1945, %v1946
    %1948 = vmatpush.msra.mxu0 %v527
    %1949 = vmatpush.msra.mxu0 %v524
    %1950 = vmatpush.msra.mxu0 %v521
    %1951 = vmatpush.msra.mxu0 %v518
    %1952 = vmatpush.msra.mxu0 %v515
    %1953 = vmatpush.msra.mxu0 %v512
    %1954 = vmatpush.msra.mxu0 %v509
    %1955 = vmatpush.msra.mxu0 %v506
    %1956 = vmatpush.msra.mxu0 %v503
    %1957 = vmatpush.msra.mxu0 %v500
    %1958 = vmatpush.msra.mxu0 %v497
    %1959 = vmatpush.msra.mxu0 %v494
    %1960 = vmatpush.msra.mxu0 %v491
    %1961 = vmatpush.msra.mxu0 %v488
    %1962 = vmatpush.msra.mxu0 %v485
    %1963 = vmatpush.msra.mxu0 %v482
    %1964 = vmatmul.f32.gmra.mxu0 %v1947
    %v1965 = vpop.f32.mrf.mxu0
    %v1966 = vadd.f32 %v313, %v1965
    %1967 = vdwg.mxu0
    %1968 = vmatpush.msra.mxu0 %v528
    %1969 = vmatpush.msra.mxu0 %v525
    %1970 = vmatpush.msra.mxu0 %v522
    %1971 = vmatpush.msra.mxu0 %v519
    %1972 = vmatpush.msra.mxu0 %v516
    %1973 = vmatpush.msra.mxu0 %v513
    %1974 = vmatpush.msra.mxu0 %v510
    %1975 = vmatpush.msra.mxu0 %v507
    %1976 = vmatpush.msra.mxu0 %v504
    %1977 = vmatpush.msra.mxu0 %v501
    %1978 = vmatpush.msra.mxu0 %v498
    %1979 = vmatpush.msra.mxu0 %v495
    %1980 = vmatpush.msra.mxu0 %v492
    %1981 = vmatpush.msra.mxu0 %v489
    %1982 = vmatpush.msra.mxu0 %v486
    %1983 = vmatpush.msra.mxu0 %v483
    %1984 = vmatmul.f32.gmra.mxu0 %v1947
    %v1985 = vpop.f32.mrf.mxu0
    %v1986 = vadd.f32 %v314, %v1985
    %1987 = vdwg.mxu0
    %1988 = vmatpush.msra.mxu0 %v529
    %1989 = vmatpush.msra.mxu0 %v526
    %1990 = vmatpush.msra.mxu0 %v523
    %1991 = vmatpush.msra.mxu0 %v520
    %1992 = vmatpush.msra.mxu0 %v517
    %1993 = vmatpush.msra.mxu0 %v514
    %1994 = vmatpush.msra.mxu0 %v511
    %1995 = vmatpush.msra.mxu0 %v508
    %1996 = vmatpush.msra.mxu0 %v505
    %1997 = vmatpush.msra.mxu0 %v502
    %1998 = vmatpush.msra.mxu0 %v499
    %1999 = vmatpush.msra.mxu0 %v496
    %2000 = vmatpush.msra.mxu0 %v493
    %2001 = vmatpush.msra.mxu0 %v490
    %2002 = vmatpush.msra.mxu0 %v487
    %2003 = vmatpush.msra.mxu0 %v484
    %2004 = vmatmul.f32.gmra.mxu0 %v1947
    %v2005 = vpop.f32.mrf.mxu0
    %v2006 = vadd.f32 %v315, %v2005
    %2007 = vdwg.mxu0
    %2008 = vmatpush.msra.mxu0 %v635
    %2009 = vmatpush.msra.mxu0 %v632
    %2010 = vmatpush.msra.mxu0 %v629
    %2011 = vmatpush.msra.mxu0 %v626
    %2012 = vmatpush.msra.mxu0 %v623
    %2013 = vmatpush.msra.mxu0 %v620
    %2014 = vmatpush.msra.mxu0 %v617
    %2015 = vmatpush.msra.mxu0 %v614
    %2016 = vmatpush.msra.mxu0 %v611
    %2017 = vmatpush.msra.mxu0 %v608
    %2018 = vmatpush.msra.mxu0 %v605
    %2019 = vmatpush.msra.mxu0 %v602
    %2020 = vmatpush.msra.mxu0 %v599
    %2021 = vmatpush.msra.mxu0 %v596
    %2022 = vmatpush.msra.mxu0 %v593
    %2023 = vmatpush.msra.mxu0 %v590
    %2024 = vmatmul.f32.gmra.mxu0 %v1840
    %v2025 = vpop.f32.mrf.mxu0
    %v2026 = vadd.f32 %v321, %v2025
    %2027 = vdwg.mxu0
    %2028 = vmatpush.msra.mxu0 %v636
    %2029 = vmatpush.msra.mxu0 %v633
    %2030 = vmatpush.msra.mxu0 %v630
    %2031 = vmatpush.msra.mxu0 %v627
    %2032 = vmatpush.msra.mxu0 %v624
    %2033 = vmatpush.msra.mxu0 %v621
    %2034 = vmatpush.msra.mxu0 %v618
    %2035 = vmatpush.msra.mxu0 %v615
    %2036 = vmatpush.msra.mxu0 %v612
    %2037 = vmatpush.msra.mxu0 %v609
    %2038 = vmatpush.msra.mxu0 %v606
    %2039 = vmatpush.msra.mxu0 %v603
    %2040 = vmatpush.msra.mxu0 %v600
    %2041 = vmatpush.msra.mxu0 %v597
    %2042 = vmatpush.msra.mxu0 %v594
    %2043 = vmatpush.msra.mxu0 %v591
    %2044 = vmatmul.f32.gmra.mxu0 %v1840
    %v2045 = vpop.f32.mrf.mxu0
    %v2046 = vadd.f32 %v322, %v2045
    %2047 = vdwg.mxu0
    %2048 = vmatpush.msra.mxu0 %v637
    %2049 = vmatpush.msra.mxu0 %v634
    %2050 = vmatpush.msra.mxu0 %v631
    %2051 = vmatpush.msra.mxu0 %v628
    %2052 = vmatpush.msra.mxu0 %v625
    %2053 = vmatpush.msra.mxu0 %v622
    %2054 = vmatpush.msra.mxu0 %v619
    %2055 = vmatpush.msra.mxu0 %v616
    %2056 = vmatpush.msra.mxu0 %v613
    %2057 = vmatpush.msra.mxu0 %v610
    %2058 = vmatpush.msra.mxu0 %v607
    %2059 = vmatpush.msra.mxu0 %v604
    %2060 = vmatpush.msra.mxu0 %v601
    %2061 = vmatpush.msra.mxu0 %v598
    %2062 = vmatpush.msra.mxu0 %v595
    %2063 = vmatpush.msra.mxu0 %v592
    %2064 = vmatmul.f32.gmra.mxu0 %v1840
    %v2065 = vpop.f32.mrf.mxu0
    %v2066 = vadd.f32 %v323, %v2065
    %2067 = vdwg.mxu0
    %v2068 = vadd.f32 %v1966, %v2026
    %v2069 = vxor.u32 %v2068, 2147483648
    %v2070 = vmul.f32 %v2069, 1.442695
    %v2071 = vpow.pop %v2070
    %v2072 = vadd.f32 %v2071, 1.0
    %v2073 = vrcp.pop %v2072
    %v2074 = vmul.f32 %v2072, %v2073
    %v2075 = vsub.f32 1.0, %v2074
    %v2076 = vmul.f32 %v2073, %v2075
    %v2077 = vadd.f32 %v2073, %v2076
    %vm2078 = vweird.f32 %v2072
    %vm2079 = vweird.f32 %v2073
    %vm2080 = vmor %vm2078, %vm2079
    %v2081 = vsel %vm2080, %v2073, %v2077
    %v2082 = vand.u32 2147483647, %v2072
    %vm2083 = vcmp.eq.f32.partialorder %v2082, 8.507059e+37
    %v2084 = vand.u32 %v2072, 2147483648
    %v2085 = vor.u32 1.1754944e-38, %v2084
    %v2086 = vsel %vm2083, %v2085, %v2081
    %v2087 = vmul.f32 1.0, %v2086
    %v2088 = vadd.f32 %v1986, %v2046
    %v2089 = vxor.u32 %v2088, 2147483648
    %v2090 = vmul.f32 %v2089, 1.442695
    %v2091 = vpow.pop %v2090
    %v2092 = vadd.f32 %v2091, 1.0
    %v2093 = vrcp.pop %v2092
    %v2094 = vmul.f32 %v2092, %v2093
    %v2095 = vsub.f32 1.0, %v2094
    %v2096 = vmul.f32 %v2093, %v2095
    %v2097 = vadd.f32 %v2093, %v2096
    %vm2098 = vweird.f32 %v2092
    %vm2099 = vweird.f32 %v2093
    %vm2100 = vmor %vm2098, %vm2099
    %v2101 = vsel %vm2100, %v2093, %v2097
    %v2102 = vand.u32 2147483647, %v2092
    %vm2103 = vcmp.eq.f32.partialorder %v2102, 8.507059e+37
    %v2104 = vand.u32 %v2092, 2147483648
    %v2105 = vor.u32 1.1754944e-38, %v2104
    %v2106 = vsel %vm2103, %v2105, %v2101
    %v2107 = vmul.f32 1.0, %v2106
    %v2108 = vmul.f32 %v2087, %v2066
    %v2109 = vadd.f32 %v2006, %v2108
    %v2110 = vtanh.pop %v2109
    %v2111 = vsub.f32 1.0, %v2107
    %v2112 = vmul.f32 %v2111, %v2110
    %v2113 = vmul.f32 %v2107, %v1840
    %v2114 = vadd.f32 %v2112, %v2113
    %2115 = vmatpush.msra.mxu0 %v372
    %2116 = vmatpush.msra.mxu0 %v369
    %2117 = vmatpush.msra.mxu0 %v366
    %2118 = vmatpush.msra.mxu0 %v363
    %2119 = vmatpush.msra.mxu0 %v360
    %2120 = vmatpush.msra.mxu0 %v357
    %2121 = vmatpush.msra.mxu0 %v354
    %2122 = vmatpush.msra.mxu0 %v351
    %2123 = vmatpush.msra.mxu0 %v348
    %2124 = vmatpush.msra.mxu0 %v345
    %2125 = vmatpush.msra.mxu0 %v342
    %2126 = vmatpush.msra.mxu0 %v339
    %2127 = vmatpush.msra.mxu0 %v336
    %2128 = vmatpush.msra.mxu0 %v333
    %2129 = vmatpush.msra.mxu0 %v330
    %2130 = vmatpush.msra.mxu0 %v327
    %2131 = vmatmul.f32.gmra.mxu0 %v1947
    %v2132 = vpop.f32.mrf.mxu0
    %v2133 = vadd.f32 %v305, %v2132
    %2134 = vdwg.mxu0
    %2135 = vmatpush.msra.mxu0 %v373
    %2136 = vmatpush.msra.mxu0 %v370
    %2137 = vmatpush.msra.mxu0 %v367
    %2138 = vmatpush.msra.mxu0 %v364
    %2139 = vmatpush.msra.mxu0 %v361
    %2140 = vmatpush.msra.mxu0 %v358
    %2141 = vmatpush.msra.mxu0 %v355
    %2142 = vmatpush.msra.mxu0 %v352
    %2143 = vmatpush.msra.mxu0 %v349
    %2144 = vmatpush.msra.mxu0 %v346
    %2145 = vmatpush.msra.mxu0 %v343
    %2146 = vmatpush.msra.mxu0 %v340
    %2147 = vmatpush.msra.mxu0 %v337
    %2148 = vmatpush.msra.mxu0 %v334
    %2149 = vmatpush.msra.mxu0 %v331
    %2150 = vmatpush.msra.mxu0 %v328
    %2151 = vmatmul.f32.gmra.mxu0 %v1947
    %v2152 = vpop.f32.mrf.mxu0
    %v2153 = vadd.f32 %v306, %v2152
    %2154 = vdwg.mxu0
    %2155 = vmatpush.msra.mxu0 %v374
    %2156 = vmatpush.msra.mxu0 %v371
    %2157 = vmatpush.msra.mxu0 %v368
    %2158 = vmatpush.msra.mxu0 %v365
    %2159 = vmatpush.msra.mxu0 %v362
    %2160 = vmatpush.msra.mxu0 %v359
    %2161 = vmatpush.msra.mxu0 %v356
    %2162 = vmatpush.msra.mxu0 %v353
    %2163 = vmatpush.msra.mxu0 %v350
    %2164 = vmatpush.msra.mxu0 %v347
    %2165 = vmatpush.msra.mxu0 %v344
    %2166 = vmatpush.msra.mxu0 %v341
    %2167 = vmatpush.msra.mxu0 %v338
    %2168 = vmatpush.msra.mxu0 %v335
    %2169 = vmatpush.msra.mxu0 %v332
    %2170 = vmatpush.msra.mxu0 %v329
    %2171 = vmatmul.f32.gmra.mxu0 %v1947
    %v2172 = vpop.f32.mrf.mxu0
    %v2173 = vadd.f32 %v307, %v2172
    %2174 = vdwg.mxu0
    %v2175 = vadd.f32 %v216, %v2133
    %v2176 = vxor.u32 %v2175, 2147483648
    %v2177 = vmul.f32 %v2176, 1.442695
    %v2178 = vpow.pop %v2177
    %v2179 = vadd.f32 %v2178, 1.0
    %v2180 = vrcp.pop %v2179
    %v2181 = vmul.f32 %v2179, %v2180
    %v2182 = vsub.f32 1.0, %v2181
    %v2183 = vmul.f32 %v2180, %v2182
    %v2184 = vadd.f32 %v2180, %v2183
    %vm2185 = vweird.f32 %v2179
    %vm2186 = vweird.f32 %v2180
    %vm2187 = vmor %vm2185, %vm2186
    %v2188 = vsel %vm2187, %v2180, %v2184
    %v2189 = vand.u32 2147483647, %v2179
    %vm2190 = vcmp.eq.f32.partialorder %v2189, 8.507059e+37
    %v2191 = vand.u32 %v2179, 2147483648
    %v2192 = vor.u32 1.1754944e-38, %v2191
    %v2193 = vsel %vm2190, %v2192, %v2188
    %v2194 = vmul.f32 1.0, %v2193
    %v2195 = vadd.f32 %v257, %v2153
    %v2196 = vxor.u32 %v2195, 2147483648
    %v2197 = vmul.f32 %v2196, 1.442695
    %v2198 = vpow.pop %v2197
    %v2199 = vadd.f32 %v2198, 1.0
    %v2200 = vrcp.pop %v2199
    %v2201 = vmul.f32 %v2199, %v2200
    %v2202 = vsub.f32 1.0, %v2201
    %v2203 = vmul.f32 %v2200, %v2202
    %v2204 = vadd.f32 %v2200, %v2203
    %vm2205 = vweird.f32 %v2199
    %vm2206 = vweird.f32 %v2200
    %vm2207 = vmor %vm2205, %vm2206
    %v2208 = vsel %vm2207, %v2200, %v2204
    %v2209 = vand.u32 2147483647, %v2199
    %vm2210 = vcmp.eq.f32.partialorder %v2209, 8.507059e+37
    %v2211 = vand.u32 %v2199, 2147483648
    %v2212 = vor.u32 1.1754944e-38, %v2211
    %v2213 = vsel %vm2210, %v2212, %v2208
    %v2214 = vmul.f32 1.0, %v2213
    %v2215 = vmul.f32 %v2194, %v2173
    %v2216 = vadd.f32 %v298, %v2215
    %v2217 = vtanh.pop %v2216
    %v2218 = vsub.f32 1.0, %v2214
    %v2219 = vmul.f32 %v2218, %v2217
    %v2220 = vmul.f32 %v2214, %v1947
    %v2221 = vadd.f32 %v2219, %v2220
    %2222 = vmatpush.msra.mxu0 %v527
    %2223 = vmatpush.msra.mxu0 %v524
    %2224 = vmatpush.msra.mxu0 %v521
    %2225 = vmatpush.msra.mxu0 %v518
    %2226 = vmatpush.msra.mxu0 %v515
    %2227 = vmatpush.msra.mxu0 %v512
    %2228 = vmatpush.msra.mxu0 %v509
    %2229 = vmatpush.msra.mxu0 %v506
    %2230 = vmatpush.msra.mxu0 %v503
    %2231 = vmatpush.msra.mxu0 %v500
    %2232 = vmatpush.msra.mxu0 %v497
    %2233 = vmatpush.msra.mxu0 %v494
    %2234 = vmatpush.msra.mxu0 %v491
    %2235 = vmatpush.msra.mxu0 %v488
    %2236 = vmatpush.msra.mxu0 %v485
    %2237 = vmatpush.msra.mxu0 %v482
    %2238 = vmatmul.f32.gmra.mxu0 %v2221
    %v2239 = vpop.f32.mrf.mxu0
    %v2240 = vadd.f32 %v313, %v2239
    %2241 = vdwg.mxu0
    %2242 = vmatpush.msra.mxu0 %v528
    %2243 = vmatpush.msra.mxu0 %v525
    %2244 = vmatpush.msra.mxu0 %v522
    %2245 = vmatpush.msra.mxu0 %v519
    %2246 = vmatpush.msra.mxu0 %v516
    %2247 = vmatpush.msra.mxu0 %v513
    %2248 = vmatpush.msra.mxu0 %v510
    %2249 = vmatpush.msra.mxu0 %v507
    %2250 = vmatpush.msra.mxu0 %v504
    %2251 = vmatpush.msra.mxu0 %v501
    %2252 = vmatpush.msra.mxu0 %v498
    %2253 = vmatpush.msra.mxu0 %v495
    %2254 = vmatpush.msra.mxu0 %v492
    %2255 = vmatpush.msra.mxu0 %v489
    %2256 = vmatpush.msra.mxu0 %v486
    %2257 = vmatpush.msra.mxu0 %v483
    %2258 = vmatmul.f32.gmra.mxu0 %v2221
    %v2259 = vpop.f32.mrf.mxu0
    %v2260 = vadd.f32 %v314, %v2259
    %2261 = vdwg.mxu0
    %2262 = vmatpush.msra.mxu0 %v529
    %2263 = vmatpush.msra.mxu0 %v526
    %2264 = vmatpush.msra.mxu0 %v523
    %2265 = vmatpush.msra.mxu0 %v520
    %2266 = vmatpush.msra.mxu0 %v517
    %2267 = vmatpush.msra.mxu0 %v514
    %2268 = vmatpush.msra.mxu0 %v511
    %2269 = vmatpush.msra.mxu0 %v508
    %2270 = vmatpush.msra.mxu0 %v505
    %2271 = vmatpush.msra.mxu0 %v502
    %2272 = vmatpush.msra.mxu0 %v499
    %2273 = vmatpush.msra.mxu0 %v496
    %2274 = vmatpush.msra.mxu0 %v493
    %2275 = vmatpush.msra.mxu0 %v490
    %2276 = vmatpush.msra.mxu0 %v487
    %2277 = vmatpush.msra.mxu0 %v484
    %2278 = vmatmul.f32.gmra.mxu0 %v2221
    %v2279 = vpop.f32.mrf.mxu0
    %v2280 = vadd.f32 %v315, %v2279
    %2281 = vdwg.mxu0
    %2282 = vmatpush.msra.mxu0 %v635
    %2283 = vmatpush.msra.mxu0 %v632
    %2284 = vmatpush.msra.mxu0 %v629
    %2285 = vmatpush.msra.mxu0 %v626
    %2286 = vmatpush.msra.mxu0 %v623
    %2287 = vmatpush.msra.mxu0 %v620
    %2288 = vmatpush.msra.mxu0 %v617
    %2289 = vmatpush.msra.mxu0 %v614
    %2290 = vmatpush.msra.mxu0 %v611
    %2291 = vmatpush.msra.mxu0 %v608
    %2292 = vmatpush.msra.mxu0 %v605
    %2293 = vmatpush.msra.mxu0 %v602
    %2294 = vmatpush.msra.mxu0 %v599
    %2295 = vmatpush.msra.mxu0 %v596
    %2296 = vmatpush.msra.mxu0 %v593
    %2297 = vmatpush.msra.mxu0 %v590
    %2298 = vmatmul.f32.gmra.mxu0 %v2114
    %v2299 = vpop.f32.mrf.mxu0
    %v2300 = vadd.f32 %v321, %v2299
    %2301 = vdwg.mxu0
    %2302 = vmatpush.msra.mxu0 %v636
    %2303 = vmatpush.msra.mxu0 %v633
    %2304 = vmatpush.msra.mxu0 %v630
    %2305 = vmatpush.msra.mxu0 %v627
    %2306 = vmatpush.msra.mxu0 %v624
    %2307 = vmatpush.msra.mxu0 %v621
    %2308 = vmatpush.msra.mxu0 %v618
    %2309 = vmatpush.msra.mxu0 %v615
    %2310 = vmatpush.msra.mxu0 %v612
    %2311 = vmatpush.msra.mxu0 %v609
    %2312 = vmatpush.msra.mxu0 %v606
    %2313 = vmatpush.msra.mxu0 %v603
    %2314 = vmatpush.msra.mxu0 %v600
    %2315 = vmatpush.msra.mxu0 %v597
    %2316 = vmatpush.msra.mxu0 %v594
    %2317 = vmatpush.msra.mxu0 %v591
    %2318 = vmatmul.f32.gmra.mxu0 %v2114
    %v2319 = vpop.f32.mrf.mxu0
    %v2320 = vadd.f32 %v322, %v2319
    %2321 = vdwg.mxu0
    %2322 = vmatpush.msra.mxu0 %v637
    %2323 = vmatpush.msra.mxu0 %v634
    %2324 = vmatpush.msra.mxu0 %v631
    %2325 = vmatpush.msra.mxu0 %v628
    %2326 = vmatpush.msra.mxu0 %v625
    %2327 = vmatpush.msra.mxu0 %v622
    %2328 = vmatpush.msra.mxu0 %v619
    %2329 = vmatpush.msra.mxu0 %v616
    %2330 = vmatpush.msra.mxu0 %v613
    %2331 = vmatpush.msra.mxu0 %v610
    %2332 = vmatpush.msra.mxu0 %v607
    %2333 = vmatpush.msra.mxu0 %v604
    %2334 = vmatpush.msra.mxu0 %v601
    %2335 = vmatpush.msra.mxu0 %v598
    %2336 = vmatpush.msra.mxu0 %v595
    %2337 = vmatpush.msra.mxu0 %v592
    %2338 = vmatmul.f32.gmra.mxu0 %v2114
    %v2339 = vpop.f32.mrf.mxu0
    %v2340 = vadd.f32 %v323, %v2339
    %2341 = vdwg.mxu0
    %v2342 = vadd.f32 %v2240, %v2300
    %v2343 = vxor.u32 %v2342, 2147483648
    %v2344 = vmul.f32 %v2343, 1.442695
    %v2345 = vpow.pop %v2344
    %v2346 = vadd.f32 %v2345, 1.0
    %v2347 = vrcp.pop %v2346
    %v2348 = vmul.f32 %v2346, %v2347
    %v2349 = vsub.f32 1.0, %v2348
    %v2350 = vmul.f32 %v2347, %v2349
    %v2351 = vadd.f32 %v2347, %v2350
    %vm2352 = vweird.f32 %v2346
    %vm2353 = vweird.f32 %v2347
    %vm2354 = vmor %vm2352, %vm2353
    %v2355 = vsel %vm2354, %v2347, %v2351
    %v2356 = vand.u32 2147483647, %v2346
    %vm2357 = vcmp.eq.f32.partialorder %v2356, 8.507059e+37
    %v2358 = vand.u32 %v2346, 2147483648
    %v2359 = vor.u32 1.1754944e-38, %v2358
    %v2360 = vsel %vm2357, %v2359, %v2355
    %v2361 = vmul.f32 1.0, %v2360
    %v2362 = vadd.f32 %v2260, %v2320
    %v2363 = vxor.u32 %v2362, 2147483648
    %v2364 = vmul.f32 %v2363, 1.442695
    %v2365 = vpow.pop %v2364
    %v2366 = vadd.f32 %v2365, 1.0
    %v2367 = vrcp.pop %v2366
    %v2368 = vmul.f32 %v2366, %v2367
    %v2369 = vsub.f32 1.0, %v2368
    %v2370 = vmul.f32 %v2367, %v2369
    %v2371 = vadd.f32 %v2367, %v2370
    %vm2372 = vweird.f32 %v2366
    %vm2373 = vweird.f32 %v2367
    %vm2374 = vmor %vm2372, %vm2373
    %v2375 = vsel %vm2374, %v2367, %v2371
    %v2376 = vand.u32 2147483647, %v2366
    %vm2377 = vcmp.eq.f32.partialorder %v2376, 8.507059e+37
    %v2378 = vand.u32 %v2366, 2147483648
    %v2379 = vor.u32 1.1754944e-38, %v2378
    %v2380 = vsel %vm2377, %v2379, %v2375
    %v2381 = vmul.f32 1.0, %v2380
    %v2382 = vmul.f32 %v2361, %v2340
    %v2383 = vadd.f32 %v2280, %v2382
    %v2384 = vtanh.pop %v2383
    %v2385 = vsub.f32 1.0, %v2381
    %v2386 = vmul.f32 %v2385, %v2384
    %v2387 = vmul.f32 %v2381, %v2114
    %v2388 = vadd.f32 %v2386, %v2387
    %2389 = vmatpush.msra.mxu0 %v372
    %2390 = vmatpush.msra.mxu0 %v369
    %2391 = vmatpush.msra.mxu0 %v366
    %2392 = vmatpush.msra.mxu0 %v363
    %2393 = vmatpush.msra.mxu0 %v360
    %2394 = vmatpush.msra.mxu0 %v357
    %2395 = vmatpush.msra.mxu0 %v354
    %2396 = vmatpush.msra.mxu0 %v351
    %2397 = vmatpush.msra.mxu0 %v348
    %2398 = vmatpush.msra.mxu0 %v345
    %2399 = vmatpush.msra.mxu0 %v342
    %2400 = vmatpush.msra.mxu0 %v339
    %2401 = vmatpush.msra.mxu0 %v336
    %2402 = vmatpush.msra.mxu0 %v333
    %2403 = vmatpush.msra.mxu0 %v330
    %2404 = vmatpush.msra.mxu0 %v327
    %2405 = vmatmul.f32.gmra.mxu0 %v2221
    %v2406 = vpop.f32.mrf.mxu0
    %v2407 = vadd.f32 %v305, %v2406
    %2408 = vdwg.mxu0
    %2409 = vmatpush.msra.mxu0 %v373
    %2410 = vmatpush.msra.mxu0 %v370
    %2411 = vmatpush.msra.mxu0 %v367
    %2412 = vmatpush.msra.mxu0 %v364
    %2413 = vmatpush.msra.mxu0 %v361
    %2414 = vmatpush.msra.mxu0 %v358
    %2415 = vmatpush.msra.mxu0 %v355
    %2416 = vmatpush.msra.mxu0 %v352
    %2417 = vmatpush.msra.mxu0 %v349
    %2418 = vmatpush.msra.mxu0 %v346
    %2419 = vmatpush.msra.mxu0 %v343
    %2420 = vmatpush.msra.mxu0 %v340
    %2421 = vmatpush.msra.mxu0 %v337
    %2422 = vmatpush.msra.mxu0 %v334
    %2423 = vmatpush.msra.mxu0 %v331
    %2424 = vmatpush.msra.mxu0 %v328
    %2425 = vmatmul.f32.gmra.mxu0 %v2221
    %v2426 = vpop.f32.mrf.mxu0
    %v2427 = vadd.f32 %v306, %v2426
    %2428 = vdwg.mxu0
    %2429 = vmatpush.msra.mxu0 %v374
    %2430 = vmatpush.msra.mxu0 %v371
    %2431 = vmatpush.msra.mxu0 %v368
    %2432 = vmatpush.msra.mxu0 %v365
    %2433 = vmatpush.msra.mxu0 %v362
    %2434 = vmatpush.msra.mxu0 %v359
    %2435 = vmatpush.msra.mxu0 %v356
    %2436 = vmatpush.msra.mxu0 %v353
    %2437 = vmatpush.msra.mxu0 %v350
    %2438 = vmatpush.msra.mxu0 %v347
    %2439 = vmatpush.msra.mxu0 %v344
    %2440 = vmatpush.msra.mxu0 %v341
    %2441 = vmatpush.msra.mxu0 %v338
    %2442 = vmatpush.msra.mxu0 %v335
    %2443 = vmatpush.msra.mxu0 %v332
    %2444 = vmatpush.msra.mxu0 %v329
    %2445 = vmatmul.f32.gmra.mxu0 %v2221
    %v2446 = vpop.f32.mrf.mxu0
    %v2447 = vadd.f32 %v307, %v2446
    %2448 = vdwg.mxu0
    %v2449 = vadd.f32 %v219, %v2407
    %v2450 = vxor.u32 %v2449, 2147483648
    %v2451 = vmul.f32 %v2450, 1.442695
    %v2452 = vpow.pop %v2451
    %v2453 = vadd.f32 %v2452, 1.0
    %v2454 = vrcp.pop %v2453
    %v2455 = vmul.f32 %v2453, %v2454
    %v2456 = vsub.f32 1.0, %v2455
    %v2457 = vmul.f32 %v2454, %v2456
    %v2458 = vadd.f32 %v2454, %v2457
    %vm2459 = vweird.f32 %v2453
    %vm2460 = vweird.f32 %v2454
    %vm2461 = vmor %vm2459, %vm2460
    %v2462 = vsel %vm2461, %v2454, %v2458
    %v2463 = vand.u32 2147483647, %v2453
    %vm2464 = vcmp.eq.f32.partialorder %v2463, 8.507059e+37
    %v2465 = vand.u32 %v2453, 2147483648
    %v2466 = vor.u32 1.1754944e-38, %v2465
    %v2467 = vsel %vm2464, %v2466, %v2462
    %v2468 = vmul.f32 1.0, %v2467
    %v2469 = vadd.f32 %v260, %v2427
    %v2470 = vxor.u32 %v2469, 2147483648
    %v2471 = vmul.f32 %v2470, 1.442695
    %v2472 = vpow.pop %v2471
    %v2473 = vadd.f32 %v2472, 1.0
    %v2474 = vrcp.pop %v2473
    %v2475 = vmul.f32 %v2473, %v2474
    %v2476 = vsub.f32 1.0, %v2475
    %v2477 = vmul.f32 %v2474, %v2476
    %v2478 = vadd.f32 %v2474, %v2477
    %vm2479 = vweird.f32 %v2473
    %vm2480 = vweird.f32 %v2474
    %vm2481 = vmor %vm2479, %vm2480
    %v2482 = vsel %vm2481, %v2474, %v2478
    %v2483 = vand.u32 2147483647, %v2473
    %vm2484 = vcmp.eq.f32.partialorder %v2483, 8.507059e+37
    %v2485 = vand.u32 %v2473, 2147483648
    %v2486 = vor.u32 1.1754944e-38, %v2485
    %v2487 = vsel %vm2484, %v2486, %v2482
    %v2488 = vmul.f32 1.0, %v2487
    %v2489 = vmul.f32 %v2468, %v2447
    %v2490 = vadd.f32 %v301, %v2489
    %v2491 = vtanh.pop %v2490
    %v2492 = vsub.f32 1.0, %v2488
    %v2493 = vmul.f32 %v2492, %v2491
    %v2494 = vmul.f32 %v2488, %v2221
    %v2495 = vadd.f32 %v2493, %v2494
    %2496 = vmatpush.msra.mxu0 %v527
    %2497 = vmatpush.msra.mxu0 %v524
    %2498 = vmatpush.msra.mxu0 %v521
    %2499 = vmatpush.msra.mxu0 %v518
    %2500 = vmatpush.msra.mxu0 %v515
    %2501 = vmatpush.msra.mxu0 %v512
    %2502 = vmatpush.msra.mxu0 %v509
    %2503 = vmatpush.msra.mxu0 %v506
    %2504 = vmatpush.msra.mxu0 %v503
    %2505 = vmatpush.msra.mxu0 %v500
    %2506 = vmatpush.msra.mxu0 %v497
    %2507 = vmatpush.msra.mxu0 %v494
    %2508 = vmatpush.msra.mxu0 %v491
    %2509 = vmatpush.msra.mxu0 %v488
    %2510 = vmatpush.msra.mxu0 %v485
    %2511 = vmatpush.msra.mxu0 %v482
    %2512 = vmatmul.f32.gmra.mxu0 %v2495
    %v2513 = vpop.f32.mrf.mxu0
    %v2514 = vadd.f32 %v313, %v2513
    %2515 = vdwg.mxu0
    %2516 = vmatpush.msra.mxu0 %v528
    %2517 = vmatpush.msra.mxu0 %v525
    %2518 = vmatpush.msra.mxu0 %v522
    %2519 = vmatpush.msra.mxu0 %v519
    %2520 = vmatpush.msra.mxu0 %v516
    %2521 = vmatpush.msra.mxu0 %v513
    %2522 = vmatpush.msra.mxu0 %v510
    %2523 = vmatpush.msra.mxu0 %v507
    %2524 = vmatpush.msra.mxu0 %v504
    %2525 = vmatpush.msra.mxu0 %v501
    %2526 = vmatpush.msra.mxu0 %v498
    %2527 = vmatpush.msra.mxu0 %v495
    %2528 = vmatpush.msra.mxu0 %v492
    %2529 = vmatpush.msra.mxu0 %v489
    %2530 = vmatpush.msra.mxu0 %v486
    %2531 = vmatpush.msra.mxu0 %v483
    %2532 = vmatmul.f32.gmra.mxu0 %v2495
    %v2533 = vpop.f32.mrf.mxu0
    %v2534 = vadd.f32 %v314, %v2533
    %2535 = vdwg.mxu0
    %2536 = vmatpush.msra.mxu0 %v529
    %2537 = vmatpush.msra.mxu0 %v526
    %2538 = vmatpush.msra.mxu0 %v523
    %2539 = vmatpush.msra.mxu0 %v520
    %2540 = vmatpush.msra.mxu0 %v517
    %2541 = vmatpush.msra.mxu0 %v514
    %2542 = vmatpush.msra.mxu0 %v511
    %2543 = vmatpush.msra.mxu0 %v508
    %2544 = vmatpush.msra.mxu0 %v505
    %2545 = vmatpush.msra.mxu0 %v502
    %2546 = vmatpush.msra.mxu0 %v499
    %2547 = vmatpush.msra.mxu0 %v496
    %2548 = vmatpush.msra.mxu0 %v493
    %2549 = vmatpush.msra.mxu0 %v490
    %2550 = vmatpush.msra.mxu0 %v487
    %2551 = vmatpush.msra.mxu0 %v484
    %2552 = vmatmul.f32.gmra.mxu0 %v2495
    %v2553 = vpop.f32.mrf.mxu0
    %v2554 = vadd.f32 %v315, %v2553
    %2555 = vdwg.mxu0
    %2556 = vmatpush.msra.mxu0 %v635
    %2557 = vmatpush.msra.mxu0 %v632
    %2558 = vmatpush.msra.mxu0 %v629
    %2559 = vmatpush.msra.mxu0 %v626
    %2560 = vmatpush.msra.mxu0 %v623
    %2561 = vmatpush.msra.mxu0 %v620
    %2562 = vmatpush.msra.mxu0 %v617
    %2563 = vmatpush.msra.mxu0 %v614
    %2564 = vmatpush.msra.mxu0 %v611
    %2565 = vmatpush.msra.mxu0 %v608
    %2566 = vmatpush.msra.mxu0 %v605
    %2567 = vmatpush.msra.mxu0 %v602
    %2568 = vmatpush.msra.mxu0 %v599
    %2569 = vmatpush.msra.mxu0 %v596
    %2570 = vmatpush.msra.mxu0 %v593
    %2571 = vmatpush.msra.mxu0 %v590
    %2572 = vmatmul.f32.gmra.mxu0 %v2388
    %v2573 = vpop.f32.mrf.mxu0
    %v2574 = vadd.f32 %v321, %v2573
    %2575 = vdwg.mxu0
    %2576 = vmatpush.msra.mxu0 %v636
    %2577 = vmatpush.msra.mxu0 %v633
    %2578 = vmatpush.msra.mxu0 %v630
    %2579 = vmatpush.msra.mxu0 %v627
    %2580 = vmatpush.msra.mxu0 %v624
    %2581 = vmatpush.msra.mxu0 %v621
    %2582 = vmatpush.msra.mxu0 %v618
    %2583 = vmatpush.msra.mxu0 %v615
    %2584 = vmatpush.msra.mxu0 %v612
    %2585 = vmatpush.msra.mxu0 %v609
    %2586 = vmatpush.msra.mxu0 %v606
    %2587 = vmatpush.msra.mxu0 %v603
    %2588 = vmatpush.msra.mxu0 %v600
    %2589 = vmatpush.msra.mxu0 %v597
    %2590 = vmatpush.msra.mxu0 %v594
    %2591 = vmatpush.msra.mxu0 %v591
    %2592 = vmatmul.f32.gmra.mxu0 %v2388
    %v2593 = vpop.f32.mrf.mxu0
    %v2594 = vadd.f32 %v322, %v2593
    %2595 = vdwg.mxu0
    %2596 = vmatpush.msra.mxu0 %v637
    %2597 = vmatpush.msra.mxu0 %v634
    %2598 = vmatpush.msra.mxu0 %v631
    %2599 = vmatpush.msra.mxu0 %v628
    %2600 = vmatpush.msra.mxu0 %v625
    %2601 = vmatpush.msra.mxu0 %v622
    %2602 = vmatpush.msra.mxu0 %v619
    %2603 = vmatpush.msra.mxu0 %v616
    %2604 = vmatpush.msra.mxu0 %v613
    %2605 = vmatpush.msra.mxu0 %v610
    %2606 = vmatpush.msra.mxu0 %v607
    %2607 = vmatpush.msra.mxu0 %v604
    %2608 = vmatpush.msra.mxu0 %v601
    %2609 = vmatpush.msra.mxu0 %v598
    %2610 = vmatpush.msra.mxu0 %v595
    %2611 = vmatpush.msra.mxu0 %v592
    %2612 = vmatmul.f32.gmra.mxu0 %v2388
    %v2613 = vpop.f32.mrf.mxu0
    %v2614 = vadd.f32 %v323, %v2613
    %2615 = vdwg.mxu0
    %v2616 = vadd.f32 %v2514, %v2574
    %v2617 = vxor.u32 %v2616, 2147483648
    %v2618 = vmul.f32 %v2617, 1.442695
    %v2619 = vpow.pop %v2618
    %v2620 = vadd.f32 %v2619, 1.0
    %v2621 = vrcp.pop %v2620
    %v2622 = vmul.f32 %v2620, %v2621
    %v2623 = vsub.f32 1.0, %v2622
    %v2624 = vmul.f32 %v2621, %v2623
    %v2625 = vadd.f32 %v2621, %v2624
    %vm2626 = vweird.f32 %v2620
    %vm2627 = vweird.f32 %v2621
    %vm2628 = vmor %vm2626, %vm2627
    %v2629 = vsel %vm2628, %v2621, %v2625
    %v2630 = vand.u32 2147483647, %v2620
    %vm2631 = vcmp.eq.f32.partialorder %v2630, 8.507059e+37
    %v2632 = vand.u32 %v2620, 2147483648
    %v2633 = vor.u32 1.1754944e-38, %v2632
    %v2634 = vsel %vm2631, %v2633, %v2629
    %v2635 = vmul.f32 1.0, %v2634
    %v2636 = vadd.f32 %v2534, %v2594
    %v2637 = vxor.u32 %v2636, 2147483648
    %v2638 = vmul.f32 %v2637, 1.442695
    %v2639 = vpow.pop %v2638
    %v2640 = vadd.f32 %v2639, 1.0
    %v2641 = vrcp.pop %v2640
    %v2642 = vmul.f32 %v2640, %v2641
    %v2643 = vsub.f32 1.0, %v2642
    %v2644 = vmul.f32 %v2641, %v2643
    %v2645 = vadd.f32 %v2641, %v2644
    %vm2646 = vweird.f32 %v2640
    %vm2647 = vweird.f32 %v2641
    %vm2648 = vmor %vm2646, %vm2647
    %v2649 = vsel %vm2648, %v2641, %v2645
    %v2650 = vand.u32 2147483647, %v2640
    %vm2651 = vcmp.eq.f32.partialorder %v2650, 8.507059e+37
    %v2652 = vand.u32 %v2640, 2147483648
    %v2653 = vor.u32 1.1754944e-38, %v2652
    %v2654 = vsel %vm2651, %v2653, %v2649
    %v2655 = vmul.f32 1.0, %v2654
    %v2656 = vmul.f32 %v2635, %v2614
    %v2657 = vadd.f32 %v2554, %v2656
    %v2658 = vtanh.pop %v2657
    %v2659 = vsub.f32 1.0, %v2655
    %v2660 = vmul.f32 %v2659, %v2658
    %v2661 = vmul.f32 %v2655, %v2388
    %v2662 = vadd.f32 %v2660, %v2661
    %v2663 = vld [vmem:[#allocation9] sm:$0xff]
    %v2664 = vld [vmem:[#allocation9 + $0x8] sm:$0xff]
    %v2665 = vld [vmem:[#allocation9 + $0x10] sm:$0xff]
    %v2666 = vld [vmem:[#allocation9 + $0x18] sm:$0xff]
    %v2667 = vld [vmem:[#allocation9 + $0x20] sm:$0xff]
    %v2668 = vld [vmem:[#allocation9 + $0x28] sm:$0xff]
    %v2669 = vld [vmem:[#allocation9 + $0x30] sm:$0xff]
    %v2670 = vld [vmem:[#allocation9 + $0x38] sm:$0xff]
    %v2671 = vld [vmem:[#allocation9 + $0x40] sm:$0xff]
    %v2672 = vld [vmem:[#allocation9 + $0x48] sm:$0xff]
    %v2673 = vld [vmem:[#allocation9 + $0x50] sm:$0xff]
    %v2674 = vld [vmem:[#allocation9 + $0x58] sm:$0xff]
    %v2675 = vld [vmem:[#allocation9 + $0x60] sm:$0xff]
    %v2676 = vld [vmem:[#allocation9 + $0x68] sm:$0xff]
    %v2677 = vld [vmem:[#allocation9 + $0x70] sm:$0xff]
    %v2678 = vld [vmem:[#allocation9 + $0x78] sm:$0xff]
    %v2679 = vld [vmem:[%s10] sm:$0x1]
    %v2681 = vperm.slane %v2679, 0
    %2683 = vmatpush.msra.mxu0 %v2678
    %2684 = vmatpush.msra.mxu0 %v2677
    %2685 = vmatpush.msra.mxu0 %v2676
    %2686 = vmatpush.msra.mxu0 %v2675
    %2687 = vmatpush.msra.mxu0 %v2674
    %2688 = vmatpush.msra.mxu0 %v2673
    %2689 = vmatpush.msra.mxu0 %v2672
    %2690 = vmatpush.msra.mxu0 %v2671
    %2691 = vmatpush.msra.mxu0 %v2670
    %2692 = vmatpush.msra.mxu0 %v2669
    %2693 = vmatpush.msra.mxu0 %v2668
    %2694 = vmatpush.msra.mxu0 %v2667
    %2695 = vmatpush.msra.mxu0 %v2666
    %2696 = vmatpush.msra.mxu0 %v2665
    %2697 = vmatpush.msra.mxu0 %v2664
    %2698 = vmatpush.msra.mxu0 %v2663
    %2699 = vmatmul.f32.gmra.mxu0 %v2662
    %v2700 = vpop.f32.mrf.mxu0
    %v2701 = vadd.f32 %v2681, %v2700
    %2702 = vdwg.mxu0
    %2703 = vst [vmem:[%s11] sm:$0xff] %v2701
    // Predicated region
    $region66: #{gru_model_forward.1} parent=1 // pred_check
      _
    $region67: #{gru_model_forward.1} parent=1 // pred_check_branch
      %2705 = sbr.rel (0) target = $region69
    $region68: #{gru_model_forward.1} parent=1 // pred_region
      _
    $region69: #{gru_model_forward.1} parent=1 // pred_fallthru
      _
    // Predicated region
    $region70: #{gru_model_forward.1} parent=1 // pred_check
      _
    $region71: #{gru_model_forward.1} parent=1 // pred_check_branch
      %2707 = sbr.rel (0) target = $region73
    $region72: #{gru_model_forward.1} parent=1 // pred_region
      _
    $region73: #{gru_model_forward.1} parent=1 // pred_fallthru
      _
    %2708 = vsyncpa [#allocation3], 1
    %2709 = vsyncpa [#allocation5], 1
    %2710 = vsyncpa [#allocation8], 1

</llo_original>
